<compile_context>
chip_gen: v6e
topology: v6e:2x2x1
jax: 0.10.0
libtpu: 0.0.40
codegen_flags: <defaults>
</compile_context>

<pallas_src>
import functools

import jax
import jax.numpy as jnp
from jax.experimental import pallas as pl
from jax.experimental.pallas import tpu as pltpu


def basic_block_kernel(xp_ref, w1_ref, b1_ref, w2_ref, b2_ref, o_ref, mid_ref,
                       *, th, w, cp):
    """One (batch, h-tile) per grid step.

    xp_ref : (H+4, Wp, Cp)   zero-padded input (2 rows top/bottom, >=1 col l/r)
    w1_ref : (3, 3, Cp, Cp)  conv1 weights, BN1 scale folded in (HWIO)
    b1_ref : (1, Cp)         folded BN1 bias
    w2_ref : (3, 3, Cp, Cp)  conv2 weights, BN2 scale folded in
    b2_ref : (1, Cp)         folded BN2 bias
    o_ref  : (TH, W, Cp)     output tile (TH image rows)
    mid_ref: (TH+2, Wp, Cp)  scratch: conv1 output rows incl. 1-row halo,
                             zero-padded by 1 column on each side
    """
    ht = pl.program_id(1)
    nt = pl.num_programs(1)
    r0 = pl.multiple_of(ht * th, th)

    # Input row slab covering the receptive field of this tile's TH+2
    # intermediate rows (single dynamic load; static slices below are free).
    xs = xp_ref[pl.ds(r0, th + 4)]                 # (TH+4, Wp, Cp)

    # ---- conv1 (3x3, stride 1), BN1 scale pre-folded: 9 full-K matmuls ----
    m1 = (th + 2) * w
    acc1 = None
    for ky in range(3):
        for kx in range(3):
            patch = xs[ky:ky + th + 2, kx:kx + w, :].reshape(m1, cp)
            d = jnp.dot(patch, w1_ref[ky, kx],
                        preferred_element_type=jnp.float32)
            acc1 = d if acc1 is None else acc1 + d
    out1 = jnp.maximum(acc1 + b1_ref[0], 0.0)       # (M1, Cp), f32, BN1+ReLU

    # ---- stage into padded scratch for conv2 ----
    zcol = jnp.zeros((th + 2, 1, cp), mid_ref.dtype)
    mid_ref[:, 0:1, :] = zcol                       # left zero border (conv2 pad)
    mid_ref[:, w + 1:w + 2, :] = zcol               # right zero border
    mid_ref[:, 1:w + 1, :] = out1.reshape(th + 2, w, cp).astype(mid_ref.dtype)

    # conv2's zero padding in H: zero the halo rows lying outside the image.
    @pl.when(ht == 0)
    def _():
        mid_ref[0:1, 1:w + 1, :] = jnp.zeros((1, w, cp), mid_ref.dtype)

    @pl.when(ht == nt - 1)
    def _():
        mid_ref[th + 1:th + 2, 1:w + 1, :] = jnp.zeros((1, w, cp), mid_ref.dtype)

    # ---- conv2 (3x3, stride 1), BN2 scale pre-folded ----
    m2 = th * w
    midv = mid_ref[...]
    acc2 = None
    for ky in range(3):
        for kx in range(3):
            patch = midv[ky:ky + th, kx:kx + w, :].reshape(m2, cp)
            d = jnp.dot(patch, w2_ref[ky, kx],
                        preferred_element_type=jnp.float32)
            acc2 = d if acc2 is None else acc2 + d

    # ---- BN2 bias + residual add + final ReLU ----
    identity = xs[2:th + 2, 1:w + 1, :].reshape(m2, cp).astype(jnp.float32)
    res = jnp.maximum(acc2 + b2_ref[0] + identity, 0.0)
    o_ref[...] = res.reshape(th, w, cp).astype(o_ref.dtype)


def basic_block(x_nchw, w1, g1, be1, m1, v1, w2, g2, be2, m2, v2, eps=1e-5,
                tile_h=8, compute_dtype=jnp.float32):
    """BasicBlock forward. x_nchw: (B, C, H, W) float32; torch OIHW weights.

    compute_dtype=jnp.bfloat16 is recommended on v6e/v7x (f32 accumulation is
    kept); the default f32 matches PyTorch numerics for the self-test.
    """
    B, Cin, H, W = x_nchw.shape
    C = w1.shape[0]
    assert Cin == C, "stride=1 / downsample=None requires inplanes == planes"
    # TODO(synk): stride>1 / downsample path of BasicBlock is not implemented.

    LANE = 128
    Cp = ((C + LANE - 1) // LANE) * LANE            # channel pad -> lane-dense
    TH = tile_h if (tile_h <= H and H % tile_h == 0) else H
    HT = H // TH
    Wp = ((W + 2 + 7) // 8) * 8                     # padded width, sublane x8

    # Fold BatchNorm (eval) into the convs: scale into weights, bias separate.
    s1 = g1 / jnp.sqrt(v1 + eps)
    b1 = be1 - m1 * s1
    s2 = g2 / jnp.sqrt(v2 + eps)
    b2 = be2 - m2 * s2

    def prep_w(wt, s):
        # torch OIHW -> HWIO, scale output channels, zero-pad channels to Cp.
        whwio = jnp.transpose(wt, (2, 3, 1, 0)) * s[None, None, None, :]
        whwio = jnp.pad(whwio, ((0, 0), (0, 0), (0, Cp - C), (0, Cp - C)))
        return whwio.astype(compute_dtype)

    w1p = prep_w(w1, s1)
    w2p = prep_w(w2, s2)
    b1p = jnp.pad(b1, (0, Cp - C)).reshape(1, Cp).astype(jnp.float32)
    b2p = jnp.pad(b2, (0, Cp - C)).reshape(1, Cp).astype(jnp.float32)

    # NCHW -> NHWC; pad H by 2 (so halo-row recompute never goes OOB), W by 1
    # (+ alignment), channels to Cp.  All padding is zeros.
    x_nhwc = jnp.transpose(x_nchw, (0, 2, 3, 1)).astype(compute_dtype)
    xp = jnp.pad(x_nhwc, ((0, 0), (2, 2), (1, Wp - W - 1), (0, Cp - C)))

    kernel = functools.partial(basic_block_kernel, th=TH, w=W, cp=Cp)

    out_nhwc = pl.pallas_call(
        kernel,
        out_shape=jax.ShapeDtypeStruct((B, H, W, Cp), jnp.float32),
        grid_spec=pltpu.PrefetchScalarGridSpec(
            num_scalar_prefetch=0,
            grid=(B, HT),
            in_specs=[
                # index_map ignores t -> input slab DMAed once per batch and
                # kept resident in VMEM across all h-tiles.
                pl.BlockSpec((None, H + 4, Wp, Cp), lambda b, t: (b, 0, 0, 0)),
                pl.BlockSpec((3, 3, Cp, Cp), lambda b, t: (0, 0, 0, 0)),
                pl.BlockSpec((1, Cp), lambda b, t: (0, 0)),
                pl.BlockSpec((3, 3, Cp, Cp), lambda b, t: (0, 0, 0, 0)),
                pl.BlockSpec((1, Cp), lambda b, t: (0, 0)),
            ],
            out_specs=pl.BlockSpec((None, TH, W, Cp), lambda b, t: (b, t, 0, 0)),
            scratch_shapes=[pltpu.VMEM((TH + 2, Wp, Cp), compute_dtype)],
        ),
        # Both grid axes are independent -> shardable across v7x's 2 TCs.
        # Per-step VMEM use is a few MiB at these shapes, well under every
        # chip's default scoped limit, so vmem_limit_bytes stays at default.
        compiler_params=pltpu.CompilerParams(
            dimension_semantics=("parallel", "parallel")),
    )(xp, w1p, b1p, w2p, b2p)

    # Drop channel padding, NHWC -> NCHW.
    return jnp.transpose(out_nhwc[..., :C], (0, 3, 1, 2))


def basic_block_reference(x, w1, g1, be1, m1, v1, w2, g2, be2, m2, v2, eps=1e-5):
    """Pure-JAX reference (NCHW, lax conv) mirroring torch semantics."""
    def bn(o, g, be, m, v):
        return ((o - m[None, :, None, None]) /
                jnp.sqrt(v + eps)[None, :, None, None] *
                g[None, :, None, None] + be[None, :, None, None])

    dn = jax.lax.conv_dimension_numbers(x.shape, w1.shape,
                                        ('NCHW', 'OIHW', 'NCHW'))
    out = jax.lax.conv_general_dilated(x, w1, (1, 1), ((1, 1), (1, 1)),
                                       dimension_numbers=dn)
    out = jnp.maximum(bn(out, g1, be1, m1, v1), 0.0)
    out = jax.lax.conv_general_dilated(out, w2, (1, 1), ((1, 1), (1, 1)),
                                       dimension_numbers=dn)
    out = bn(out, g2, be2, m2, v2)
    return jnp.maximum(out + x, 0.0)


if __name__ == "__main__":
    B, C, H, W = 2, 8, 16, 16  # inplanes == planes == 8 (stride=1, no downsample)

    key = jax.random.PRNGKey(0)
    ks = jax.random.split(key, 11)
    x = jax.random.normal(ks[0], (B, C, H, W), jnp.float32)

    # conv weights (torch OIHW), small magnitude
    w1 = jax.random.normal(ks[1], (C, C, 3, 3), jnp.float32) * 0.1
    w2 = jax.random.normal(ks[2], (C, C, 3, 3), jnp.float32) * 0.1

    # BatchNorm parameters / running stats
    g1 = jax.random.uniform(ks[3], (C,), jnp.float32, 0.5, 1.5)
    be1 = jax.random.normal(ks[4], (C,), jnp.float32) * 0.1
    m1 = jax.random.normal(ks[5], (C,), jnp.float32) * 0.1
    v1 = jax.random.uniform(ks[6], (C,), jnp.float32, 0.5, 1.5)
    g2 = jax.random.uniform(ks[7], (C,), jnp.float32, 0.5, 1.5)
    be2 = jax.random.normal(ks[8], (C,), jnp.float32) * 0.1
    m2 = jax.random.normal(ks[9], (C,), jnp.float32) * 0.1
    v2 = jax.random.uniform(ks[10], (C,), jnp.float32, 0.5, 1.5)

    # tile_h=4 -> 4 h-tiles per image: exercises boundary AND interior tiles
    # (halo recompute + zero-padding paths) of the spatially-tiled kernel.
    out = basic_block(x, w1, g1, be1, m1, v1, w2, g2, be2, m2, v2, tile_h=4)
    out = jax.block_until_ready(out)

    ref = basic_block_reference(x, w1, g1, be1, m1, v1, w2, g2, be2, m2, v2)
    ref = jax.block_until_ready(ref)

    assert out.shape == (B, C, H, W)
    assert jnp.allclose(out, ref, rtol=1e-4, atol=2e-4), (
        f"max abs err {jnp.max(jnp.abs(out - ref))}")
    print("KERNEL_OK")
</pallas_src>

<mosaic_0001>
module attributes {stable_mosaic.version = 11 : i64} {
  func.func @basic_block_kernel(%arg0: i32, %arg1: i32, %arg2: memref<1x20x24x128xf32, #tpu.memory_space<vmem>>, %arg3: memref<3x3x128x128xf32, #tpu.memory_space<vmem>>, %arg4: memref<1x128xf32, #tpu.memory_space<vmem>>, %arg5: memref<3x3x128x128xf32, #tpu.memory_space<vmem>>, %arg6: memref<1x128xf32, #tpu.memory_space<vmem>>, %arg7: memref<1x4x16x128xf32, #tpu.memory_space<vmem>>, %arg8: memref<6x24x128xf32, #tpu.memory_space<vmem>>) attributes {dimension_semantics = [#tpu.dimension_semantics<parallel>, #tpu.dimension_semantics<parallel>], iteration_bounds = array<i64: 2, 4>, scalar_prefetch = 0 : i64, scratch_operands = 1 : i64, tpu.core_type = #tpu.core_type<tc>, window_params = [{transform_indices = @transform_0, window_bounds = array<i64: 1, 20, 24, 128>}, {pipeline_mode = #tpu.pipeline_mode<synchronous>, transform_indices = @transform_1, window_bounds = array<i64: 3, 3, 128, 128>}, {pipeline_mode = #tpu.pipeline_mode<synchronous>, transform_indices = @transform_2, window_bounds = array<i64: 1, 128>}, {pipeline_mode = #tpu.pipeline_mode<synchronous>, transform_indices = @transform_3, window_bounds = array<i64: 3, 3, 128, 128>}, {pipeline_mode = #tpu.pipeline_mode<synchronous>, transform_indices = @transform_4, window_bounds = array<i64: 1, 128>}, {transform_indices = @transform_5, window_bounds = array<i64: 1, 4, 16, 128>}]} {
    %c4_i32 = arith.constant 4 : i32
    %0 = arith.muli %arg1, %c4_i32 : i32
    %1 = tpu.assume_multiple %0, 4 : i32
    %c0 = arith.constant 0 : index
    %2 = arith.index_cast %1 : i32 to index
    %c0_0 = arith.constant 0 : index
    %c0_1 = arith.constant 0 : index
    %3 = vector.load %arg2[%c0, %2, %c0_0, %c0_1] : memref<1x20x24x128xf32, #tpu.memory_space<vmem>>, vector<1x8x24x128xf32>
    %4 = vector.shape_cast %3 : vector<1x8x24x128xf32> to vector<8x24x128xf32>
    %5 = vector.extract_strided_slice %4 {offsets = [0, 0, 0], sizes = [6, 16, 128], strides = [1, 1, 1]} : vector<8x24x128xf32> to vector<6x16x128xf32>
    %6 = vector.shape_cast %5 : vector<6x16x128xf32> to vector<96x128xf32>
    %c0_2 = arith.constant 0 : index
    %c0_3 = arith.constant 0 : index
    %c0_4 = arith.constant 0 : index
    %c0_5 = arith.constant 0 : index
    %7 = vector.load %arg3[%c0_2, %c0_3, %c0_4, %c0_5] : memref<3x3x128x128xf32, #tpu.memory_space<vmem>>, vector<1x1x128x128xf32>
    %8 = vector.shape_cast %7 : vector<1x1x128x128xf32> to vector<128x128xf32>
    %cst = arith.constant dense<0.000000e+00> : vector<96x128xf32>
    %9 = tpu.matmul %6, %8, %cst {dimension_numbers = #tpu.dot_dimension_numbers<[1], [0], [0], [1], [0, 0, 1, 1], [], []>} : vector<96x128xf32>, vector<128x128xf32>, vector<96x128xf32> -> vector<96x128xf32>
    %10 = vector.extract_strided_slice %4 {offsets = [0, 1, 0], sizes = [6, 16, 128], strides = [1, 1, 1]} : vector<8x24x128xf32> to vector<6x16x128xf32>
    %11 = vector.shape_cast %10 : vector<6x16x128xf32> to vector<96x128xf32>
    %c0_6 = arith.constant 0 : index
    %c1 = arith.constant 1 : index
    %c0_7 = arith.constant 0 : index
    %c0_8 = arith.constant 0 : index
    %12 = vector.load %arg3[%c0_6, %c1, %c0_7, %c0_8] : memref<3x3x128x128xf32, #tpu.memory_space<vmem>>, vector<1x1x128x128xf32>
    %13 = vector.shape_cast %12 : vector<1x1x128x128xf32> to vector<128x128xf32>
    %cst_9 = arith.constant dense<0.000000e+00> : vector<96x128xf32>
    %14 = tpu.matmul %11, %13, %cst_9 {dimension_numbers = #tpu.dot_dimension_numbers<[1], [0], [0], [1], [0, 0, 1, 1], [], []>} : vector<96x128xf32>, vector<128x128xf32>, vector<96x128xf32> -> vector<96x128xf32>
    %15 = arith.addf %9, %14 : vector<96x128xf32>
    %16 = vector.extract_strided_slice %4 {offsets = [0, 2, 0], sizes = [6, 16, 128], strides = [1, 1, 1]} : vector<8x24x128xf32> to vector<6x16x128xf32>
    %17 = vector.shape_cast %16 : vector<6x16x128xf32> to vector<96x128xf32>
    %c0_10 = arith.constant 0 : index
    %c2 = arith.constant 2 : index
    %c0_11 = arith.constant 0 : index
    %c0_12 = arith.constant 0 : index
    %18 = vector.load %arg3[%c0_10, %c2, %c0_11, %c0_12] : memref<3x3x128x128xf32, #tpu.memory_space<vmem>>, vector<1x1x128x128xf32>
    %19 = vector.shape_cast %18 : vector<1x1x128x128xf32> to vector<128x128xf32>
    %cst_13 = arith.constant dense<0.000000e+00> : vector<96x128xf32>
    %20 = tpu.matmul %17, %19, %cst_13 {dimension_numbers = #tpu.dot_dimension_numbers<[1], [0], [0], [1], [0, 0, 1, 1], [], []>} : vector<96x128xf32>, vector<128x128xf32>, vector<96x128xf32> -> vector<96x128xf32>
    %21 = arith.addf %15, %20 : vector<96x128xf32>
    %22 = vector.extract_strided_slice %4 {offsets = [1, 0, 0], sizes = [6, 16, 128], strides = [1, 1, 1]} : vector<8x24x128xf32> to vector<6x16x128xf32>
    %23 = vector.shape_cast %22 : vector<6x16x128xf32> to vector<96x128xf32>
    %c1_14 = arith.constant 1 : index
    %c0_15 = arith.constant 0 : index
    %c0_16 = arith.constant 0 : index
    %c0_17 = arith.constant 0 : index
    %24 = vector.load %arg3[%c1_14, %c0_15, %c0_16, %c0_17] : memref<3x3x128x128xf32, #tpu.memory_space<vmem>>, vector<1x1x128x128xf32>
    %25 = vector.shape_cast %24 : vector<1x1x128x128xf32> to vector<128x128xf32>
    %cst_18 = arith.constant dense<0.000000e+00> : vector<96x128xf32>
    %26 = tpu.matmul %23, %25, %cst_18 {dimension_numbers = #tpu.dot_dimension_numbers<[1], [0], [0], [1], [0, 0, 1, 1], [], []>} : vector<96x128xf32>, vector<128x128xf32>, vector<96x128xf32> -> vector<96x128xf32>
    %27 = arith.addf %21, %26 : vector<96x128xf32>
    %28 = vector.extract_strided_slice %4 {offsets = [1, 1, 0], sizes = [6, 16, 128], strides = [1, 1, 1]} : vector<8x24x128xf32> to vector<6x16x128xf32>
    %29 = vector.shape_cast %28 : vector<6x16x128xf32> to vector<96x128xf32>
    %c1_19 = arith.constant 1 : index
    %c1_20 = arith.constant 1 : index
    %c0_21 = arith.constant 0 : index
    %c0_22 = arith.constant 0 : index
    %30 = vector.load %arg3[%c1_19, %c1_20, %c0_21, %c0_22] : memref<3x3x128x128xf32, #tpu.memory_space<vmem>>, vector<1x1x128x128xf32>
    %31 = vector.shape_cast %30 : vector<1x1x128x128xf32> to vector<128x128xf32>
    %cst_23 = arith.constant dense<0.000000e+00> : vector<96x128xf32>
    %32 = tpu.matmul %29, %31, %cst_23 {dimension_numbers = #tpu.dot_dimension_numbers<[1], [0], [0], [1], [0, 0, 1, 1], [], []>} : vector<96x128xf32>, vector<128x128xf32>, vector<96x128xf32> -> vector<96x128xf32>
    %33 = arith.addf %27, %32 : vector<96x128xf32>
    %34 = vector.extract_strided_slice %4 {offsets = [1, 2, 0], sizes = [6, 16, 128], strides = [1, 1, 1]} : vector<8x24x128xf32> to vector<6x16x128xf32>
    %35 = vector.shape_cast %34 : vector<6x16x128xf32> to vector<96x128xf32>
    %c1_24 = arith.constant 1 : index
    %c2_25 = arith.constant 2 : index
    %c0_26 = arith.constant 0 : index
    %c0_27 = arith.constant 0 : index
    %36 = vector.load %arg3[%c1_24, %c2_25, %c0_26, %c0_27] : memref<3x3x128x128xf32, #tpu.memory_space<vmem>>, vector<1x1x128x128xf32>
    %37 = vector.shape_cast %36 : vector<1x1x128x128xf32> to vector<128x128xf32>
    %cst_28 = arith.constant dense<0.000000e+00> : vector<96x128xf32>
    %38 = tpu.matmul %35, %37, %cst_28 {dimension_numbers = #tpu.dot_dimension_numbers<[1], [0], [0], [1], [0, 0, 1, 1], [], []>} : vector<96x128xf32>, vector<128x128xf32>, vector<96x128xf32> -> vector<96x128xf32>
    %39 = arith.addf %33, %38 : vector<96x128xf32>
    %40 = vector.extract_strided_slice %4 {offsets = [2, 0, 0], sizes = [6, 16, 128], strides = [1, 1, 1]} : vector<8x24x128xf32> to vector<6x16x128xf32>
    %41 = vector.shape_cast %40 : vector<6x16x128xf32> to vector<96x128xf32>
    %c2_29 = arith.constant 2 : index
    %c0_30 = arith.constant 0 : index
    %c0_31 = arith.constant 0 : index
    %c0_32 = arith.constant 0 : index
    %42 = vector.load %arg3[%c2_29, %c0_30, %c0_31, %c0_32] : memref<3x3x128x128xf32, #tpu.memory_space<vmem>>, vector<1x1x128x128xf32>
    %43 = vector.shape_cast %42 : vector<1x1x128x128xf32> to vector<128x128xf32>
    %cst_33 = arith.constant dense<0.000000e+00> : vector<96x128xf32>
    %44 = tpu.matmul %41, %43, %cst_33 {dimension_numbers = #tpu.dot_dimension_numbers<[1], [0], [0], [1], [0, 0, 1, 1], [], []>} : vector<96x128xf32>, vector<128x128xf32>, vector<96x128xf32> -> vector<96x128xf32>
    %45 = arith.addf %39, %44 : vector<96x128xf32>
    %46 = vector.extract_strided_slice %4 {offsets = [2, 1, 0], sizes = [6, 16, 128], strides = [1, 1, 1]} : vector<8x24x128xf32> to vector<6x16x128xf32>
    %47 = vector.shape_cast %46 : vector<6x16x128xf32> to vector<96x128xf32>
    %c2_34 = arith.constant 2 : index
    %c1_35 = arith.constant 1 : index
    %c0_36 = arith.constant 0 : index
    %c0_37 = arith.constant 0 : index
    %48 = vector.load %arg3[%c2_34, %c1_35, %c0_36, %c0_37] : memref<3x3x128x128xf32, #tpu.memory_space<vmem>>, vector<1x1x128x128xf32>
    %49 = vector.shape_cast %48 : vector<1x1x128x128xf32> to vector<128x128xf32>
    %cst_38 = arith.constant dense<0.000000e+00> : vector<96x128xf32>
    %50 = tpu.matmul %47, %49, %cst_38 {dimension_numbers = #tpu.dot_dimension_numbers<[1], [0], [0], [1], [0, 0, 1, 1], [], []>} : vector<96x128xf32>, vector<128x128xf32>, vector<96x128xf32> -> vector<96x128xf32>
    %51 = arith.addf %45, %50 : vector<96x128xf32>
    %52 = vector.extract_strided_slice %4 {offsets = [2, 2, 0], sizes = [6, 16, 128], strides = [1, 1, 1]} : vector<8x24x128xf32> to vector<6x16x128xf32>
    %53 = vector.shape_cast %52 : vector<6x16x128xf32> to vector<96x128xf32>
    %c2_39 = arith.constant 2 : index
    %c2_40 = arith.constant 2 : index
    %c0_41 = arith.constant 0 : index
    %c0_42 = arith.constant 0 : index
    %54 = vector.load %arg3[%c2_39, %c2_40, %c0_41, %c0_42] : memref<3x3x128x128xf32, #tpu.memory_space<vmem>>, vector<1x1x128x128xf32>
    %55 = vector.shape_cast %54 : vector<1x1x128x128xf32> to vector<128x128xf32>
    %cst_43 = arith.constant dense<0.000000e+00> : vector<96x128xf32>
    %56 = tpu.matmul %53, %55, %cst_43 {dimension_numbers = #tpu.dot_dimension_numbers<[1], [0], [0], [1], [0, 0, 1, 1], [], []>} : vector<96x128xf32>, vector<128x128xf32>, vector<96x128xf32> -> vector<96x128xf32>
    %57 = arith.addf %51, %56 : vector<96x128xf32>
    %c0_44 = arith.constant 0 : index
    %c0_45 = arith.constant 0 : index
    %58 = vector.load %arg4[%c0_44, %c0_45] : memref<1x128xf32, #tpu.memory_space<vmem>>, vector<1x128xf32>
    %59 = vector.shape_cast %58 : vector<1x128xf32> to vector<128xf32>
    %60 = vector.shape_cast %59 : vector<128xf32> to vector<1x128xf32>
    %61 = vector.broadcast %60 : vector<1x128xf32> to vector<96x128xf32>
    %62 = arith.addf %57, %61 : vector<96x128xf32>
    %cst_46 = arith.constant 0.000000e+00 : f32
    %63 = vector.broadcast %cst_46 : f32 to vector<96x128xf32>
    %64 = arith.maximumf %62, %63 : vector<96x128xf32>
    %cst_47 = arith.constant 0.000000e+00 : f32
    %65 = vector.broadcast %cst_47 : f32 to vector<6x1x128xf32>
    %c0_48 = arith.constant 0 : index
    %c0_49 = arith.constant 0 : index
    %c0_50 = arith.constant 0 : index
    %66 = vector.load %arg8[%c0_48, %c0_49, %c0_50] : memref<6x24x128xf32, #tpu.memory_space<vmem>>, vector<6x1x128xf32>
    tpu.vector_store %arg8[%c0_48, %c0_49, %c0_50], %65 {strides = array<i32>} : memref<6x24x128xf32, #tpu.memory_space<vmem>>, vector<6x1x128xf32>,
    %c0_51 = arith.constant 0 : index
    %c17 = arith.constant 17 : index
    %c0_52 = arith.constant 0 : index
    %67 = vector.load %arg8[%c0_51, %c17, %c0_52] : memref<6x24x128xf32, #tpu.memory_space<vmem>>, vector<6x1x128xf32>
    tpu.vector_store %arg8[%c0_51, %c17, %c0_52], %65 {strides = array<i32>} : memref<6x24x128xf32, #tpu.memory_space<vmem>>, vector<6x1x128xf32>,
    %68 = vector.shape_cast %64 : vector<96x128xf32> to vector<6x16x128xf32>
    %c0_53 = arith.constant 0 : index
    %c1_54 = arith.constant 1 : index
    %c0_55 = arith.constant 0 : index
    %69 = vector.load %arg8[%c0_53, %c1_54, %c0_55] : memref<6x24x128xf32, #tpu.memory_space<vmem>>, vector<6x16x128xf32>
    tpu.vector_store %arg8[%c0_53, %c1_54, %c0_55], %68 {strides = array<i32>} : memref<6x24x128xf32, #tpu.memory_space<vmem>>, vector<6x16x128xf32>,
    %c0_i32 = arith.constant 0 : i32
    %70 = arith.cmpi eq, %arg1, %c0_i32 : i32
    %71 = arith.extui %70 : i1 to i32
    %c0_i32_56 = arith.constant 0 : i32
    %72 = arith.cmpi ne, %71, %c0_i32_56 : i32
    scf.if %72 {
      %cst_113 = arith.constant 0.000000e+00 : f32
      %144 = vector.broadcast %cst_113 : f32 to vector<1x16x128xf32>
      %c0_114 = arith.constant 0 : index
      %c1_115 = arith.constant 1 : index
      %c0_116 = arith.constant 0 : index
      %145 = vector.load %arg8[%c0_114, %c1_115, %c0_116] : memref<6x24x128xf32, #tpu.memory_space<vmem>>, vector<1x16x128xf32>
      tpu.vector_store %arg8[%c0_114, %c1_115, %c0_116], %144 {strides = array<i32>} : memref<6x24x128xf32, #tpu.memory_space<vmem>>, vector<1x16x128xf32>,
    } else {
    }
    %c3_i32 = arith.constant 3 : i32
    %73 = arith.cmpi eq, %arg1, %c3_i32 : i32
    %74 = arith.extui %73 : i1 to i32
    %c0_i32_57 = arith.constant 0 : i32
    %75 = arith.cmpi ne, %74, %c0_i32_57 : i32
    scf.if %75 {
      %cst_113 = arith.constant 0.000000e+00 : f32
      %144 = vector.broadcast %cst_113 : f32 to vector<1x16x128xf32>
      %c5 = arith.constant 5 : index
      %c1_114 = arith.constant 1 : index
      %c0_115 = arith.constant 0 : index
      %145 = vector.load %arg8[%c5, %c1_114, %c0_115] : memref<6x24x128xf32, #tpu.memory_space<vmem>>, vector<1x16x128xf32>
      tpu.vector_store %arg8[%c5, %c1_114, %c0_115], %144 {strides = array<i32>} : memref<6x24x128xf32, #tpu.memory_space<vmem>>, vector<1x16x128xf32>,
    } else {
    }
    %c0_58 = arith.constant 0 : index
    %c0_59 = arith.constant 0 : index
    %c0_60 = arith.constant 0 : index
    %76 = vector.load %arg8[%c0_58, %c0_59, %c0_60] : memref<6x24x128xf32, #tpu.memory_space<vmem>>, vector<6x24x128xf32>
    %77 = vector.extract_strided_slice %76 {offsets = [0, 0, 0], sizes = [4, 16, 128], strides = [1, 1, 1]} : vector<6x24x128xf32> to vector<4x16x128xf32>
    %78 = vector.shape_cast %77 : vector<4x16x128xf32> to vector<64x128xf32>
    %c0_61 = arith.constant 0 : index
    %c0_62 = arith.constant 0 : index
    %c0_63 = arith.constant 0 : index
    %c0_64 = arith.constant 0 : index
    %79 = vector.load %arg5[%c0_61, %c0_62, %c0_63, %c0_64] : memref<3x3x128x128xf32, #tpu.memory_space<vmem>>, vector<1x1x128x128xf32>
    %80 = vector.shape_cast %79 : vector<1x1x128x128xf32> to vector<128x128xf32>
    %cst_65 = arith.constant dense<0.000000e+00> : vector<64x128xf32>
    %81 = tpu.matmul %78, %80, %cst_65 {dimension_numbers = #tpu.dot_dimension_numbers<[1], [0], [0], [1], [0, 0, 1, 1], [], []>} : vector<64x128xf32>, vector<128x128xf32>, vector<64x128xf32> -> vector<64x128xf32>
    %82 = vector.extract_strided_slice %76 {offsets = [0, 1, 0], sizes = [4, 16, 128], strides = [1, 1, 1]} : vector<6x24x128xf32> to vector<4x16x128xf32>
    %83 = vector.shape_cast %82 : vector<4x16x128xf32> to vector<64x128xf32>
    %c0_66 = arith.constant 0 : index
    %c1_67 = arith.constant 1 : index
    %c0_68 = arith.constant 0 : index
    %c0_69 = arith.constant 0 : index
    %84 = vector.load %arg5[%c0_66, %c1_67, %c0_68, %c0_69] : memref<3x3x128x128xf32, #tpu.memory_space<vmem>>, vector<1x1x128x128xf32>
    %85 = vector.shape_cast %84 : vector<1x1x128x128xf32> to vector<128x128xf32>
    %cst_70 = arith.constant dense<0.000000e+00> : vector<64x128xf32>
    %86 = tpu.matmul %83, %85, %cst_70 {dimension_numbers = #tpu.dot_dimension_numbers<[1], [0], [0], [1], [0, 0, 1, 1], [], []>} : vector<64x128xf32>, vector<128x128xf32>, vector<64x128xf32> -> vector<64x128xf32>
    %87 = arith.addf %81, %86 : vector<64x128xf32>
    %88 = vector.extract_strided_slice %76 {offsets = [0, 2, 0], sizes = [4, 16, 128], strides = [1, 1, 1]} : vector<6x24x128xf32> to vector<4x16x128xf32>
    %89 = vector.shape_cast %88 : vector<4x16x128xf32> to vector<64x128xf32>
    %c0_71 = arith.constant 0 : index
    %c2_72 = arith.constant 2 : index
    %c0_73 = arith.constant 0 : index
    %c0_74 = arith.constant 0 : index
    %90 = vector.load %arg5[%c0_71, %c2_72, %c0_73, %c0_74] : memref<3x3x128x128xf32, #tpu.memory_space<vmem>>, vector<1x1x128x128xf32>
    %91 = vector.shape_cast %90 : vector<1x1x128x128xf32> to vector<128x128xf32>
    %cst_75 = arith.constant dense<0.000000e+00> : vector<64x128xf32>
    %92 = tpu.matmul %89, %91, %cst_75 {dimension_numbers = #tpu.dot_dimension_numbers<[1], [0], [0], [1], [0, 0, 1, 1], [], []>} : vector<64x128xf32>, vector<128x128xf32>, vector<64x128xf32> -> vector<64x128xf32>
    %93 = arith.addf %87, %92 : vector<64x128xf32>
    %94 = vector.extract_strided_slice %76 {offsets = [1, 0, 0], sizes = [4, 16, 128], strides = [1, 1, 1]} : vector<6x24x128xf32> to vector<4x16x128xf32>
    %95 = vector.shape_cast %94 : vector<4x16x128xf32> to vector<64x128xf32>
    %c1_76 = arith.constant 1 : index
    %c0_77 = arith.constant 0 : index
    %c0_78 = arith.constant 0 : index
    %c0_79 = arith.constant 0 : index
    %96 = vector.load %arg5[%c1_76, %c0_77, %c0_78, %c0_79] : memref<3x3x128x128xf32, #tpu.memory_space<vmem>>, vector<1x1x128x128xf32>
    %97 = vector.shape_cast %96 : vector<1x1x128x128xf32> to vector<128x128xf32>
    %cst_80 = arith.constant dense<0.000000e+00> : vector<64x128xf32>
    %98 = tpu.matmul %95, %97, %cst_80 {dimension_numbers = #tpu.dot_dimension_numbers<[1], [0], [0], [1], [0, 0, 1, 1], [], []>} : vector<64x128xf32>, vector<128x128xf32>, vector<64x128xf32> -> vector<64x128xf32>
    %99 = arith.addf %93, %98 : vector<64x128xf32>
    %100 = vector.extract_strided_slice %76 {offsets = [1, 1, 0], sizes = [4, 16, 128], strides = [1, 1, 1]} : vector<6x24x128xf32> to vector<4x16x128xf32>
    %101 = vector.shape_cast %100 : vector<4x16x128xf32> to vector<64x128xf32>
    %c1_81 = arith.constant 1 : index
    %c1_82 = arith.constant 1 : index
    %c0_83 = arith.constant 0 : index
    %c0_84 = arith.constant 0 : index
    %102 = vector.load %arg5[%c1_81, %c1_82, %c0_83, %c0_84] : memref<3x3x128x128xf32, #tpu.memory_space<vmem>>, vector<1x1x128x128xf32>
    %103 = vector.shape_cast %102 : vector<1x1x128x128xf32> to vector<128x128xf32>
    %cst_85 = arith.constant dense<0.000000e+00> : vector<64x128xf32>
    %104 = tpu.matmul %101, %103, %cst_85 {dimension_numbers = #tpu.dot_dimension_numbers<[1], [0], [0], [1], [0, 0, 1, 1], [], []>} : vector<64x128xf32>, vector<128x128xf32>, vector<64x128xf32> -> vector<64x128xf32>
    %105 = arith.addf %99, %104 : vector<64x128xf32>
    %106 = vector.extract_strided_slice %76 {offsets = [1, 2, 0], sizes = [4, 16, 128], strides = [1, 1, 1]} : vector<6x24x128xf32> to vector<4x16x128xf32>
    %107 = vector.shape_cast %106 : vector<4x16x128xf32> to vector<64x128xf32>
    %c1_86 = arith.constant 1 : index
    %c2_87 = arith.constant 2 : index
    %c0_88 = arith.constant 0 : index
    %c0_89 = arith.constant 0 : index
    %108 = vector.load %arg5[%c1_86, %c2_87, %c0_88, %c0_89] : memref<3x3x128x128xf32, #tpu.memory_space<vmem>>, vector<1x1x128x128xf32>
    %109 = vector.shape_cast %108 : vector<1x1x128x128xf32> to vector<128x128xf32>
    %cst_90 = arith.constant dense<0.000000e+00> : vector<64x128xf32>
    %110 = tpu.matmul %107, %109, %cst_90 {dimension_numbers = #tpu.dot_dimension_numbers<[1], [0], [0], [1], [0, 0, 1, 1], [], []>} : vector<64x128xf32>, vector<128x128xf32>, vector<64x128xf32> -> vector<64x128xf32>
    %111 = arith.addf %105, %110 : vector<64x128xf32>
    %112 = vector.extract_strided_slice %76 {offsets = [2, 0, 0], sizes = [4, 16, 128], strides = [1, 1, 1]} : vector<6x24x128xf32> to vector<4x16x128xf32>
    %113 = vector.shape_cast %112 : vector<4x16x128xf32> to vector<64x128xf32>
    %c2_91 = arith.constant 2 : index
    %c0_92 = arith.constant 0 : index
    %c0_93 = arith.constant 0 : index
    %c0_94 = arith.constant 0 : index
    %114 = vector.load %arg5[%c2_91, %c0_92, %c0_93, %c0_94] : memref<3x3x128x128xf32, #tpu.memory_space<vmem>>, vector<1x1x128x128xf32>
    %115 = vector.shape_cast %114 : vector<1x1x128x128xf32> to vector<128x128xf32>
    %cst_95 = arith.constant dense<0.000000e+00> : vector<64x128xf32>
    %116 = tpu.matmul %113, %115, %cst_95 {dimension_numbers = #tpu.dot_dimension_numbers<[1], [0], [0], [1], [0, 0, 1, 1], [], []>} : vector<64x128xf32>, vector<128x128xf32>, vector<64x128xf32> -> vector<64x128xf32>
    %117 = arith.addf %111, %116 : vector<64x128xf32>
    %118 = vector.extract_strided_slice %76 {offsets = [2, 1, 0], sizes = [4, 16, 128], strides = [1, 1, 1]} : vector<6x24x128xf32> to vector<4x16x128xf32>
    %119 = vector.shape_cast %118 : vector<4x16x128xf32> to vector<64x128xf32>
    %c2_96 = arith.constant 2 : index
    %c1_97 = arith.constant 1 : index
    %c0_98 = arith.constant 0 : index
    %c0_99 = arith.constant 0 : index
    %120 = vector.load %arg5[%c2_96, %c1_97, %c0_98, %c0_99] : memref<3x3x128x128xf32, #tpu.memory_space<vmem>>, vector<1x1x128x128xf32>
    %121 = vector.shape_cast %120 : vector<1x1x128x128xf32> to vector<128x128xf32>
    %cst_100 = arith.constant dense<0.000000e+00> : vector<64x128xf32>
    %122 = tpu.matmul %119, %121, %cst_100 {dimension_numbers = #tpu.dot_dimension_numbers<[1], [0], [0], [1], [0, 0, 1, 1], [], []>} : vector<64x128xf32>, vector<128x128xf32>, vector<64x128xf32> -> vector<64x128xf32>
    %123 = arith.addf %117, %122 : vector<64x128xf32>
    %124 = vector.extract_strided_slice %76 {offsets = [2, 2, 0], sizes = [4, 16, 128], strides = [1, 1, 1]} : vector<6x24x128xf32> to vector<4x16x128xf32>
    %125 = vector.shape_cast %124 : vector<4x16x128xf32> to vector<64x128xf32>
    %c2_101 = arith.constant 2 : index
    %c2_102 = arith.constant 2 : index
    %c0_103 = arith.constant 0 : index
    %c0_104 = arith.constant 0 : index
    %126 = vector.load %arg5[%c2_101, %c2_102, %c0_103, %c0_104] : memref<3x3x128x128xf32, #tpu.memory_space<vmem>>, vector<1x1x128x128xf32>
    %127 = vector.shape_cast %126 : vector<1x1x128x128xf32> to vector<128x128xf32>
    %cst_105 = arith.constant dense<0.000000e+00> : vector<64x128xf32>
    %128 = tpu.matmul %125, %127, %cst_105 {dimension_numbers = #tpu.dot_dimension_numbers<[1], [0], [0], [1], [0, 0, 1, 1], [], []>} : vector<64x128xf32>, vector<128x128xf32>, vector<64x128xf32> -> vector<64x128xf32>
    %129 = arith.addf %123, %128 : vector<64x128xf32>
    %130 = vector.extract_strided_slice %4 {offsets = [2, 1, 0], sizes = [4, 16, 128], strides = [1, 1, 1]} : vector<8x24x128xf32> to vector<4x16x128xf32>
    %131 = vector.shape_cast %130 : vector<4x16x128xf32> to vector<64x128xf32>
    %c0_106 = arith.constant 0 : index
    %c0_107 = arith.constant 0 : index
    %132 = vector.load %arg6[%c0_106, %c0_107] : memref<1x128xf32, #tpu.memory_space<vmem>>, vector<1x128xf32>
    %133 = vector.shape_cast %132 : vector<1x128xf32> to vector<128xf32>
    %134 = vector.shape_cast %133 : vector<128xf32> to vector<1x128xf32>
    %135 = vector.broadcast %134 : vector<1x128xf32> to vector<64x128xf32>
    %136 = arith.addf %129, %135 : vector<64x128xf32>
    %137 = arith.addf %136, %131 : vector<64x128xf32>
    %cst_108 = arith.constant 0.000000e+00 : f32
    %138 = vector.broadcast %cst_108 : f32 to vector<64x128xf32>
    %139 = arith.maximumf %137, %138 : vector<64x128xf32>
    %140 = vector.shape_cast %139 : vector<64x128xf32> to vector<4x16x128xf32>
    %c0_109 = arith.constant 0 : index
    %c0_110 = arith.constant 0 : index
    %c0_111 = arith.constant 0 : index
    %c0_112 = arith.constant 0 : index
    %141 = vector.load %arg7[%c0_109, %c0_110, %c0_111, %c0_112] : memref<1x4x16x128xf32, #tpu.memory_space<vmem>>, vector<1x4x16x128xf32>
    %142 = vector.shape_cast %141 : vector<1x4x16x128xf32> to vector<4x16x128xf32>
    %143 = vector.shape_cast %140 : vector<4x16x128xf32> to vector<1x4x16x128xf32>
    tpu.vector_store %arg7[%c0_109, %c0_110, %c0_111, %c0_112], %143 {strides = array<i32>} : memref<1x4x16x128xf32, #tpu.memory_space<vmem>>, vector<1x4x16x128xf32>,
    return
  }
  func.func @transform_0(%arg0: i32, %arg1: i32) -> (i32, i32, i32, i32) {
    %c0_i32 = arith.constant 0 : i32
    %c0_i32_0 = arith.constant 0 : i32
    %c0_i32_1 = arith.constant 0 : i32
    %c0_i32_2 = arith.constant 0 : i32
    return %arg0, %c0_i32, %c0_i32_0, %c0_i32_1 : i32, i32, i32, i32
  }
  func.func @transform_1(%arg0: i32, %arg1: i32) -> (i32, i32, i32, i32) {
    %c0_i32 = arith.constant 0 : i32
    %c0_i32_0 = arith.constant 0 : i32
    %c0_i32_1 = arith.constant 0 : i32
    %c0_i32_2 = arith.constant 0 : i32
    %c0_i32_3 = arith.constant 0 : i32
    return %c0_i32, %c0_i32_0, %c0_i32_1, %c0_i32_2 : i32, i32, i32, i32
  }
  func.func @transform_2(%arg0: i32, %arg1: i32) -> (i32, i32) {
    %c0_i32 = arith.constant 0 : i32
    %c0_i32_0 = arith.constant 0 : i32
    %c0_i32_1 = arith.constant 0 : i32
    return %c0_i32, %c0_i32_0 : i32, i32
  }
  func.func @transform_3(%arg0: i32, %arg1: i32) -> (i32, i32, i32, i32) {
    %c0_i32 = arith.constant 0 : i32
    %c0_i32_0 = arith.constant 0 : i32
    %c0_i32_1 = arith.constant 0 : i32
    %c0_i32_2 = arith.constant 0 : i32
    %c0_i32_3 = arith.constant 0 : i32
    return %c0_i32, %c0_i32_0, %c0_i32_1, %c0_i32_2 : i32, i32, i32, i32
  }
  func.func @transform_4(%arg0: i32, %arg1: i32) -> (i32, i32) {
    %c0_i32 = arith.constant 0 : i32
    %c0_i32_0 = arith.constant 0 : i32
    %c0_i32_1 = arith.constant 0 : i32
    return %c0_i32, %c0_i32_0 : i32, i32
  }
  func.func @transform_5(%arg0: i32, %arg1: i32) -> (i32, i32, i32, i32) {
    %c0_i32 = arith.constant 0 : i32
    %c0_i32_0 = arith.constant 0 : i32
    %c0_i32_1 = arith.constant 0 : i32
    return %arg0, %arg1, %c0_i32, %c0_i32_0 : i32, i32, i32, i32
  }
}

</mosaic_0001>

<llo_original>
// kernel: tpu_custom_call.1
$region0: #{tpu_custom_call.1}
  #allocation0 [shape = 'u32[]', space=smem, size = 0x4, offset = 0x4, fixed_abs, tag = 'smem constant byte address 0x4 - core index']
  #allocation1 [shape = 'u32[144,128]{1,0:T(1,128)}', space=vmem, size = 0x12000, scoped, tag = 'internal scratch']
  #allocation2 [shape = 'f32[6,24,128]{2,1,0:T(8,128)}', space=vmem, size = 0x12000, scoped, tag = 'scratch operand']
  %s0 = inlined_call_operand.hbm [shape: f32[2,20,24,128], index: 0, kind: input, shape index: {}]
  %s1 = inlined_call_operand.hbm [shape: f32[3,3,128,128], index: 1, kind: input, shape index: {}]
  %s2 = inlined_call_operand.vmem [shape: f32[1,128], index: 2, kind: input, shape index: {}]
  %s3 = inlined_call_operand.hbm [shape: f32[3,3,128,128], index: 3, kind: input, shape index: {}]
  %s4 = inlined_call_operand.vmem [shape: f32[1,128], index: 4, kind: input, shape index: {}]
  %s5 = inlined_call_operand.hbm [shape: f32[2,16,16,128], index: 5, kind: output, shape index: {}]
  %s6 = sld [smem:[#allocation0]]
  $region73: #{tpu_custom_call.1} parent=0
    _
  %s8 = ssub.s32 1, %s6
  %s9 = scalar_select 0, %s8, %s6
  $region1: #{tpu_custom_call.1} parent=0
    #allocation3 [shape = 'u8[491520]{0}', space=vmem, size = 0x78000, scoped, tag = 'input window, operand 0']
    #allocation4 [shape = 's32[2]{0}', space=sflag, size = 0x8, scoped, tag = 'scoped memory for tpu_custom_call.1']
    #allocation5 [shape = 's32[2]{0}', space=sflag, size = 0x8, scoped, tag = 'scoped memory for tpu_custom_call.1']
    #allocation6 [shape = 'u8[589824]{0}', space=vmem, size = 0x90000, scoped, tag = 'input window, operand 1, single buffered']
    #allocation7 [shape = 's32[1]{0}', space=sflag, size = 0x4, scoped, tag = 'scoped memory for tpu_custom_call.1']
    #allocation8 [shape = 'u8[589824]{0}', space=vmem, size = 0x90000, scoped, tag = 'input window, operand 3, single buffered']
    #allocation9 [shape = 'u8[65536]{0}', space=vmem, size = 0x10000, scoped, tag = 'output window, operand 0']
    %10 = vsyncpa [#allocation4], 0
    %s11 = scalar_lea.sflag [#allocation4], 1
    %12 = vsyncpa %s11, 0
    %13 = vsyncpa [#allocation7], 0
    %14 = vsyncpa [#allocation5], 0
    %s15 = scalar_lea.sflag [#allocation5], 1
    %16 = vsyncpa %s15, 0
    loop: start=0, step=1, limit=10
    $region2: #{tpu_custom_call.1} parent=1 // loop_pre_header
      _
    $region3: #{tpu_custom_call.1} parent=1 // loop_header
      %s18 = sphi 0, %s22
      %p19 = scmp.ge.s32.totalorder %s18, 10
      %s25 = sphi 0, %s37
      %s26 = sphi 0, %s33
      %s27 = sphi 0, %s25
      %s28 = sphi 0, %s26
      %s29 = sphi 0, %s27
      %s30 = sphi 0, %s28
      %s40 = sphi 0, %s42
      %s43 = sphi 0, %s40
      %s44 = sphi 0, %s43
      %s60 = sphi 0, %s44
      %s64 = sphi 0, %s64
      %s66 = sphi 0, %s64
      %s67 = sphi 0, %s66
      %s81 = sphi 0, %s67
      %s85 = sphi 0, %s85
      %s87 = sphi 0, %s85
      %s88 = sphi 0, %s87
      %s102 = sphi 0, %s88
      %s106 = sphi 0, %s106
      %s108 = sphi 0, %s106
      %s109 = sphi 0, %s108
      %s123 = sphi 0, %s109
      %s127 = sphi 0, %s127
      %s129 = sphi 0, %s127
      %s130 = sphi 0, %s129
      %s144 = sphi 0, %s130
      %s152 = sphi 0, %s154
      %s155 = sphi 0, %s152
      %s156 = sphi 0, %s155
      %s172 = sphi 0, %s156
    $region4: #{tpu_custom_call.1} parent=1 // loop_header_branch
      %21 = sbr.rel (%p19) target = $region8
    $region5: #{tpu_custom_call.1} parent=1 // loop_body
      %s23 = ssub.s32 %s18, 1
      %s24 = ssub.s32 %s18, 2
      %s31 = sadd.s32 1, %s26
      %p32 = scmp.ge.s32.totalorder %s31, 4
      %s33 = scalar_select %p32, 0, %s31
      %s34 = sadd.s32 1, %s25
      %s35 = scalar_select %p32, %s34, %s25
      %p36 = scmp.ge.s32.totalorder %s35, 2
      %s37 = scalar_select %p36, 0, %s35
      %s38 = ssub.s32 %s25, %s37
      %p39 = scmp.eq.s32.totalorder %s38, 0
      %s41 = sadd.s32 %s40, 1
      %s42 = scalar_select %p39, %s40, %s41
      %p45 = pneg %p39
      %p46 = scmp.eq.s32.totalorder %s18, 7
      %p47 = por %p45, %p46
      %p48 = scmp.ne.s32.totalorder %s40, %s43
      %p49 = scmp.eq.s32.totalorder %s18, 0
      %p50 = por %p48, %p49
      %p51 = scmp.ne.s32.totalorder %s40, %s43
      %p52 = scmp.eq.s32.totalorder %s23, 7
      %p53 = por %p51, %p52
      %p54 = scmp.ne.s32.totalorder %s43, %s44
      %p55 = scmp.eq.s32.totalorder %s23, 0
      %p56 = por %p54, %p55
      %p57 = scmp.ne.s32.totalorder %s43, %s44
      %p58 = scmp.eq.s32.totalorder %s24, 7
      %p59 = por %p57, %p58
      %p61 = scmp.ne.s32.totalorder %s44, %s60
      %p62 = scmp.eq.s32.totalorder %s24, 0
      %p63 = por %p61, %p62
      %s65 = sadd.s32 %s64, 1
      %p68 = scmp.eq.s32.totalorder %s18, 7
      %p69 = scmp.ne.s32.totalorder %s64, %s66
      %p70 = scmp.eq.s32.totalorder %s18, 0
      %p71 = por %p69, %p70
      %p72 = scmp.ne.s32.totalorder %s64, %s66
      %p73 = scmp.eq.s32.totalorder %s23, 7
      %p74 = por %p72, %p73
      %p75 = scmp.ne.s32.totalorder %s66, %s67
      %p76 = scmp.eq.s32.totalorder %s23, 0
      %p77 = por %p75, %p76
      %p78 = scmp.ne.s32.totalorder %s66, %s67
      %p79 = scmp.eq.s32.totalorder %s24, 7
      %p80 = por %p78, %p79
      %p82 = scmp.ne.s32.totalorder %s67, %s81
      %p83 = scmp.eq.s32.totalorder %s24, 0
      %p84 = por %p82, %p83
      %s86 = sadd.s32 %s85, 1
      %p89 = scmp.eq.s32.totalorder %s18, 7
      %p90 = scmp.ne.s32.totalorder %s85, %s87
      %p91 = scmp.eq.s32.totalorder %s18, 0
      %p92 = por %p90, %p91
      %p93 = scmp.ne.s32.totalorder %s85, %s87
      %p94 = scmp.eq.s32.totalorder %s23, 7
      %p95 = por %p93, %p94
      %p96 = scmp.ne.s32.totalorder %s87, %s88
      %p97 = scmp.eq.s32.totalorder %s23, 0
      %p98 = por %p96, %p97
      %p99 = scmp.ne.s32.totalorder %s87, %s88
      %p100 = scmp.eq.s32.totalorder %s24, 7
      %p101 = por %p99, %p100
      %p103 = scmp.ne.s32.totalorder %s88, %s102
      %p104 = scmp.eq.s32.totalorder %s24, 0
      %p105 = por %p103, %p104
      %s107 = sadd.s32 %s106, 1
      %p110 = scmp.eq.s32.totalorder %s18, 7
      %p111 = scmp.ne.s32.totalorder %s106, %s108
      %p112 = scmp.eq.s32.totalorder %s18, 0
      %p113 = por %p111, %p112
      %p114 = scmp.ne.s32.totalorder %s106, %s108
      %p115 = scmp.eq.s32.totalorder %s23, 7
      %p116 = por %p114, %p115
      %p117 = scmp.ne.s32.totalorder %s108, %s109
      %p118 = scmp.eq.s32.totalorder %s23, 0
      %p119 = por %p117, %p118
      %p120 = scmp.ne.s32.totalorder %s108, %s109
      %p121 = scmp.eq.s32.totalorder %s24, 7
      %p122 = por %p120, %p121
      %p124 = scmp.ne.s32.totalorder %s109, %s123
      %p125 = scmp.eq.s32.totalorder %s24, 0
      %p126 = por %p124, %p125
      %s128 = sadd.s32 %s127, 1
      %p131 = scmp.eq.s32.totalorder %s18, 7
      %p132 = scmp.ne.s32.totalorder %s127, %s129
      %p133 = scmp.eq.s32.totalorder %s18, 0
      %p134 = por %p132, %p133
      %p135 = scmp.ne.s32.totalorder %s127, %s129
      %p136 = scmp.eq.s32.totalorder %s23, 7
      %p137 = por %p135, %p136
      %p138 = scmp.ne.s32.totalorder %s129, %s130
      %p139 = scmp.eq.s32.totalorder %s23, 0
      %p140 = por %p138, %p139
      %p141 = scmp.ne.s32.totalorder %s129, %s130
      %p142 = scmp.eq.s32.totalorder %s24, 7
      %p143 = por %p141, %p142
      %p145 = scmp.ne.s32.totalorder %s130, %s144
      %p146 = scmp.eq.s32.totalorder %s24, 0
      %p147 = por %p145, %p146
      %s148 = ssub.s32 %s25, %s37
      %s149 = ssub.s32 %s26, %s33
      %s150 = sor.u32 %s148, %s149
      %p151 = scmp.eq.s32.totalorder %s150, 0
      %s153 = sadd.s32 %s152, 1
      %s154 = scalar_select %p151, %s152, %s153
      %p157 = pneg %p151
      %p158 = scmp.eq.s32.totalorder %s18, 7
      %p159 = por %p157, %p158
      %p160 = scmp.ne.s32.totalorder %s152, %s155
      %p161 = scmp.eq.s32.totalorder %s18, 0
      %p162 = por %p160, %p161
      %p163 = scmp.ne.s32.totalorder %s152, %s155
      %p164 = scmp.eq.s32.totalorder %s23, 7
      %p165 = por %p163, %p164
      %p166 = scmp.ne.s32.totalorder %s155, %s156
      %p167 = scmp.eq.s32.totalorder %s23, 0
      %p168 = por %p166, %p167
      %p169 = scmp.ne.s32.totalorder %s155, %s156
      %p170 = scmp.eq.s32.totalorder %s24, 7
      %p171 = por %p169, %p170
      %p173 = scmp.ne.s32.totalorder %s156, %s172
      %p174 = scmp.eq.s32.totalorder %s24, 0
      %p175 = por %p173, %p174
      %p176 = scmp.le.s32.totalorder 1, %s18
      %p177 = scmp.lt.s32.totalorder %s18, 9
      %p178 = pnand %p176, %p177
      %p179 = pneg %p178
      // Predicated region
      $region9: #{tpu_custom_call.1} parent=5 // pred_check
        _
      $region10: #{tpu_custom_call.1} parent=5 // pred_check_branch
        %181 = sbr.rel (%p178) target = $region12
      $region11: #{tpu_custom_call.1} parent=5 // pred_region
        %s182 = ssub.s32 %s18, 1
        // Predicated region
        $region13: #{tpu_custom_call.1} parent=11 // pred_check
          %p183 = pneg %p77
        $region14: #{tpu_custom_call.1} parent=11 // pred_check_branch
          %185 = sbr.rel (%p183) target = $region16
        $region15: #{tpu_custom_call.1} parent=11 // pred_region
          %s187 = ssub.s32 18432, 18432
          %188 = vsyncadd [#allocation7], %s187
          %s189 = sshll.u32 [#allocation6], 4
          %s190 = int_to_ptr.vmem [resolvable:$true] %s189
          %195 = dma.hbm_to_vmem [thread:$0]  %s1, 18432, %s190, [#allocation7], 128, 128, 8
        $region16: #{tpu_custom_call.1} parent=11 // pred_fallthru
          _
        // Predicated region
        $region17: #{tpu_custom_call.1} parent=11 // pred_check
          %p196 = pneg %p98
        $region18: #{tpu_custom_call.1} parent=11 // pred_check_branch
          %198 = sbr.rel (%p196) target = $region20
        $region19: #{tpu_custom_call.1} parent=11 // pred_region
          _
        $region20: #{tpu_custom_call.1} parent=11 // pred_fallthru
          _
        // Predicated region
        $region21: #{tpu_custom_call.1} parent=11 // pred_check
          %p199 = pneg %p119
        $region22: #{tpu_custom_call.1} parent=11 // pred_check_branch
          %201 = sbr.rel (%p199) target = $region24
        $region23: #{tpu_custom_call.1} parent=11 // pred_region
          %s203 = ssub.s32 18432, 18432
          %204 = vsyncadd [#allocation7], %s203
          %s205 = sshll.u32 [#allocation8], 4
          %s206 = int_to_ptr.vmem [resolvable:$true] %s205
          %211 = dma.hbm_to_vmem [thread:$0]  %s3, 18432, %s206, [#allocation7], 128, 128, 8
        $region24: #{tpu_custom_call.1} parent=11 // pred_fallthru
          _
        // Predicated region
        $region25: #{tpu_custom_call.1} parent=11 // pred_check
          %p212 = pneg %p140
        $region26: #{tpu_custom_call.1} parent=11 // pred_check_branch
          %214 = sbr.rel (%p212) target = $region28
        $region27: #{tpu_custom_call.1} parent=11 // pred_region
          _
        $region28: #{tpu_custom_call.1} parent=11 // pred_fallthru
          _
      $region12: #{tpu_custom_call.1} parent=5 // pred_fallthru
        _
      %p215 = scmp.lt.s32.totalorder %s18, 8
      // Predicated region
      $region29: #{tpu_custom_call.1} parent=5 // pred_check
        %p216 = pneg %p215
      $region30: #{tpu_custom_call.1} parent=5 // pred_check_branch
        %218 = sbr.rel (%p216) target = $region32
      $region31: #{tpu_custom_call.1} parent=5 // pred_region
        // Predicated region
        $region33: #{tpu_custom_call.1} parent=31 // pred_check
          %p219 = pneg %p50
        $region34: #{tpu_custom_call.1} parent=31 // pred_check_branch
          %221 = sbr.rel (%p219) target = $region36
        $region35: #{tpu_custom_call.1} parent=31 // pred_region
          %s222 = sand.u32 %s40, 1
          %s223 = scalar_lea.sflag [#allocation4], %s222
          %s224 = sand.u32 %s40, 1
          %s225 = smul.addr %s224, 480
          %s226 = scalar_lea.vmem [#allocation3], %s225
          %s228 = ssub.s32 7680, 7680
          %229 = vsyncadd %s223, %s228
          %s230 = smul.addr %s25, 60
          %s231 = smul.addr %s230, 128
          %s232 = scalar_lea.hbm %s0, %s231
          %s233 = sshll.u32 %s226, 4
          %s234 = int_to_ptr.vmem [resolvable:$true] %s233
          %239 = dma.hbm_to_vmem [thread:$0]  %s232, 7680, %s234, %s223, 128, 128, 8
        $region36: #{tpu_custom_call.1} parent=31 // pred_fallthru
          _
      $region32: #{tpu_custom_call.1} parent=5 // pred_fallthru
        _
      %p240 = scmp.le.s32.totalorder 1, %s18
      %p241 = scmp.lt.s32.totalorder %s18, 9
      %p242 = pnand %p240, %p241
      %p243 = pneg %p242
      // Predicated region
      $region37: #{tpu_custom_call.1} parent=5 // pred_check
        _
      $region38: #{tpu_custom_call.1} parent=5 // pred_check_branch
        %245 = sbr.rel (%p242) target = $region40
      $region39: #{tpu_custom_call.1} parent=5 // pred_region
        %s246 = ssub.s32 %s18, 1
        %s247 = sand.u32 %s43, 1
        %s248 = scalar_lea.sflag [#allocation4], %s247
        %s249 = sand.u32 %s43, 1
        %s250 = smul.addr %s249, 480
        %s251 = scalar_lea.vmem [#allocation3], %s250
        // Predicated region
        $region41: #{tpu_custom_call.1} parent=39 // pred_check
          %p252 = pneg %p56
        $region42: #{tpu_custom_call.1} parent=39 // pred_check_branch
          %254 = sbr.rel (%p252) target = $region44
        $region43: #{tpu_custom_call.1} parent=39 // pred_region
          %255 = dma.done %s248, 7680
        $region44: #{tpu_custom_call.1} parent=39 // pred_fallthru
          _
        // Predicated region
        $region45: #{tpu_custom_call.1} parent=39 // pred_check
          %p256 = pneg %p77
        $region46: #{tpu_custom_call.1} parent=39 // pred_check_branch
          %258 = sbr.rel (%p256) target = $region48
        $region47: #{tpu_custom_call.1} parent=39 // pred_region
          %259 = dma.done [#allocation7], 18432
        $region48: #{tpu_custom_call.1} parent=39 // pred_fallthru
          _
        // Predicated region
        $region49: #{tpu_custom_call.1} parent=39 // pred_check
          %p260 = pneg %p119
        $region50: #{tpu_custom_call.1} parent=39 // pred_check_branch
          %262 = sbr.rel (%p260) target = $region52
        $region51: #{tpu_custom_call.1} parent=39 // pred_region
          %263 = dma.done [#allocation7], 18432
        $region52: #{tpu_custom_call.1} parent=39 // pred_fallthru
          _
        %s264 = sand.u32 %s43, 1
        %s265 = scalar_lea.sflag [#allocation4], %s264
        %s266 = sand.u32 %s43, 1
        %s267 = smul.addr %s266, 480
        %s268 = scalar_lea.vmem [#allocation3], %s267
        %p269 = pneg %p56
        %p270 = pneg %p53
        %p271 = pneg %p77
        %p272 = pneg %p74
        %p273 = pneg %p98
        %p274 = pneg %p95
        %p275 = pneg %p119
        %p276 = pneg %p116
        %p277 = pneg %p140
        %p278 = pneg %p137
        %p279 = pneg %p168
        %p280 = pneg %p165
        %s281 = sand.u32 %s155, 1
        %s282 = scalar_lea.sflag [#allocation5], %s281
        %s283 = sand.u32 %s155, 1
        %s284 = smul.addr %s283, 64
        %s285 = scalar_lea.vmem [#allocation9], %s284
        %s286 = smul.u32 4, %s28
        %s287 = smul.u32 %s28, 4
        %s288 = smul.u32 %s287, 24
        %s289 = scalar_lea.vmem %s251, %s288 [#allocation3]
        %v290 = vld [vmem:[%s289] sm:$0xff]
        %v291 = vld [vmem:[%s289 + $0x8] sm:$0xff]
        %v292 = vld [vmem:[%s289 + $0x10] sm:$0xff]
        %v293 = vld [vmem:[%s289 + $0x18] sm:$0xff]
        %v294 = vld [vmem:[%s289 + $0x20] sm:$0xff]
        %v295 = vld [vmem:[%s289 + $0x28] sm:$0xff]
        %v296 = vld [vmem:[%s289 + $0x30] sm:$0xff]
        %v297 = vld [vmem:[%s289 + $0x38] sm:$0xff]
        %v298 = vld [vmem:[%s289 + $0x40] sm:$0xff]
        %v299 = vld [vmem:[%s289 + $0x48] sm:$0xff]
        %v300 = vld [vmem:[%s289 + $0x50] sm:$0xff]
        %v301 = vld [vmem:[%s289 + $0x58] sm:$0xff]
        %v302 = vld [vmem:[%s289 + $0x60] sm:$0xff]
        %v303 = vld [vmem:[%s289 + $0x68] sm:$0xff]
        %v304 = vld [vmem:[%s289 + $0x70] sm:$0xff]
        %v305 = vld [vmem:[%s289 + $0x78] sm:$0xff]
        %v306 = vld [vmem:[%s289 + $0x80] sm:$0xff]
        %v307 = vld [vmem:[%s289 + $0x88] sm:$0xff]
        %v308 = vld [vmem:[%s289 + $0x90] sm:$0xff]
        %v309 = vld [vmem:[%s289 + $0x98] sm:$0xff]
        %v310 = vld [vmem:[%s289 + $0xa0] sm:$0xff]
        %v311 = vld [vmem:[%s289 + $0xa8] sm:$0xff]
        %v312 = vld [vmem:[%s289 + $0xb0] sm:$0xff]
        %v313 = vld [vmem:[%s289 + $0xb8] sm:$0xff]
        %v314 = vld [vmem:[#allocation6] sm:$0xff]
        %v315 = vld [vmem:[#allocation6 + $0x8] sm:$0xff]
        %v316 = vld [vmem:[#allocation6 + $0x10] sm:$0xff]
        %v317 = vld [vmem:[#allocation6 + $0x18] sm:$0xff]
        %v318 = vld [vmem:[#allocation6 + $0x20] sm:$0xff]
        %v319 = vld [vmem:[#allocation6 + $0x28] sm:$0xff]
        %v320 = vld [vmem:[#allocation6 + $0x30] sm:$0xff]
        %v321 = vld [vmem:[#allocation6 + $0x38] sm:$0xff]
        %v322 = vld [vmem:[#allocation6 + $0x40] sm:$0xff]
        %v323 = vld [vmem:[#allocation6 + $0x48] sm:$0xff]
        %v324 = vld [vmem:[#allocation6 + $0x50] sm:$0xff]
        %v325 = vld [vmem:[#allocation6 + $0x58] sm:$0xff]
        %v326 = vld [vmem:[#allocation6 + $0x60] sm:$0xff]
        %v327 = vld [vmem:[#allocation6 + $0x68] sm:$0xff]
        %v328 = vld [vmem:[#allocation6 + $0x70] sm:$0xff]
        %v329 = vld [vmem:[#allocation6 + $0x78] sm:$0xff]
        %vm348 = vcmask 1046528
        %v349 = vrot.slane %v290, 1
        %v350 = vrot.slane %v291, 1
        %v351 = vsel %vm348, %v349, %v350
        %v352 = vrot.slane %v292, 1
        %v353 = vsel %vm348, %v350, %v352
        %v354 = vrot.slane %v293, 1
        %v355 = vrot.slane %v294, 1
        %v356 = vsel %vm348, %v354, %v355
        %v357 = vrot.slane %v295, 1
        %v358 = vsel %vm348, %v355, %v357
        %v359 = vrot.slane %v296, 1
        %v360 = vrot.slane %v297, 1
        %v361 = vsel %vm348, %v359, %v360
        %v362 = vrot.slane %v298, 1
        %v363 = vsel %vm348, %v360, %v362
        %v364 = vrot.slane %v299, 1
        %v365 = vrot.slane %v300, 1
        %v366 = vsel %vm348, %v364, %v365
        %v367 = vrot.slane %v301, 1
        %v368 = vsel %vm348, %v365, %v367
        %v369 = vrot.slane %v302, 1
        %v370 = vrot.slane %v303, 1
        %v371 = vsel %vm348, %v369, %v370
        %v372 = vrot.slane %v304, 1
        %v373 = vsel %vm348, %v370, %v372
        %v374 = vrot.slane %v305, 1
        %v375 = vrot.slane %v306, 1
        %v376 = vsel %vm348, %v374, %v375
        %v377 = vrot.slane %v307, 1
        %v378 = vsel %vm348, %v375, %v377
        %s391 = scalar_lea.vmem [#allocation6], 128
        %v392 = vld [vmem:[%s391] sm:$0xff]
        %v393 = vld [vmem:[%s391 + $0x8] sm:$0xff]
        %v394 = vld [vmem:[%s391 + $0x10] sm:$0xff]
        %v395 = vld [vmem:[%s391 + $0x18] sm:$0xff]
        %v396 = vld [vmem:[%s391 + $0x20] sm:$0xff]
        %v397 = vld [vmem:[%s391 + $0x28] sm:$0xff]
        %v398 = vld [vmem:[%s391 + $0x30] sm:$0xff]
        %v399 = vld [vmem:[%s391 + $0x38] sm:$0xff]
        %v400 = vld [vmem:[%s391 + $0x40] sm:$0xff]
        %v401 = vld [vmem:[%s391 + $0x48] sm:$0xff]
        %v402 = vld [vmem:[%s391 + $0x50] sm:$0xff]
        %v403 = vld [vmem:[%s391 + $0x58] sm:$0xff]
        %v404 = vld [vmem:[%s391 + $0x60] sm:$0xff]
        %v405 = vld [vmem:[%s391 + $0x68] sm:$0xff]
        %v406 = vld [vmem:[%s391 + $0x70] sm:$0xff]
        %v407 = vld [vmem:[%s391 + $0x78] sm:$0xff]
        %408 = vmatprep.subr.mxu0 0.0
        %409 = vmatpush1.msra.mxu0 %v407
        %410 = vmatprep.subr.mxu0 0.0
        %411 = vmatpush1.msra.mxu0 %v406
        %412 = vmatprep.subr.mxu0 0.0
        %413 = vmatpush1.msra.mxu0 %v405
        %414 = vmatprep.subr.mxu0 0.0
        %415 = vmatpush1.msra.mxu0 %v404
        %416 = vmatprep.subr.mxu0 0.0
        %417 = vmatpush1.msra.mxu0 %v403
        %418 = vmatprep.subr.mxu0 0.0
        %419 = vmatpush1.msra.mxu0 %v402
        %420 = vmatprep.subr.mxu0 0.0
        %421 = vmatpush1.msra.mxu0 %v401
        %422 = vmatprep.subr.mxu0 0.0
        %423 = vmatpush1.msra.mxu0 %v400
        %424 = vmatprep.subr.mxu0 0.0
        %425 = vmatpush1.msra.mxu0 %v399
        %426 = vmatprep.subr.mxu0 0.0
        %427 = vmatpush1.msra.mxu0 %v398
        %428 = vmatprep.subr.mxu0 0.0
        %429 = vmatpush1.msra.mxu0 %v397
        %430 = vmatprep.subr.mxu0 0.0
        %431 = vmatpush1.msra.mxu0 %v396
        %432 = vmatprep.subr.mxu0 0.0
        %433 = vmatpush1.msra.mxu0 %v395
        %434 = vmatprep.subr.mxu0 0.0
        %435 = vmatpush1.msra.mxu0 %v394
        %436 = vmatprep.subr.mxu0 0.0
        %437 = vmatpush1.msra.mxu0 %v393
        %438 = vmatprep.subr.mxu0 0.0
        %439 = vmatpush1.msra.mxu0 %v392
        %440 = vmatprep.subr.mxu0 0.0
        %441 = vmatpush2.msra.mxu0 0.0
        %442 = vmatprep.subr.mxu0 0.0
        %443 = vmatpush2.msra.mxu0 0.0
        %444 = vmatprep.subr.mxu0 0.0
        %445 = vmatpush2.msra.mxu0 0.0
        %446 = vmatprep.subr.mxu0 0.0
        %447 = vmatpush2.msra.mxu0 0.0
        %448 = vmatprep.subr.mxu0 0.0
        %449 = vmatpush2.msra.mxu0 0.0
        %450 = vmatprep.subr.mxu0 0.0
        %451 = vmatpush2.msra.mxu0 0.0
        %452 = vmatprep.subr.mxu0 0.0
        %453 = vmatpush2.msra.mxu0 0.0
        %454 = vmatprep.subr.mxu0 0.0
        %455 = vmatpush2.msra.mxu0 0.0
        %456 = vmatprep.subr.mxu0 0.0
        %457 = vmatpush2.msra.mxu0 0.0
        %458 = vmatprep.subr.mxu0 0.0
        %459 = vmatpush2.msra.mxu0 0.0
        %460 = vmatprep.subr.mxu0 0.0
        %461 = vmatpush2.msra.mxu0 0.0
        %462 = vmatprep.subr.mxu0 0.0
        %463 = vmatpush2.msra.mxu0 0.0
        %464 = vmatprep.subr.mxu0 0.0
        %465 = vmatpush2.msra.mxu0 0.0
        %466 = vmatprep.subr.mxu0 0.0
        %467 = vmatpush2.msra.mxu0 0.0
        %468 = vmatprep.subr.mxu0 0.0
        %469 = vmatpush2.msra.mxu0 0.0
        %470 = vmatprep.subr.mxu0 0.0
        %471 = vmatpush2.msra.mxu0 0.0
        %472 = vmatprep.mubr.f32.mxu0 0.0
        %473 = vmatmul.mubr.f32.gmra.mxu0 %v351
        %v474 = vpop.f32.mrf.mxu0
        %v475 = vadd.f32 0.0, %v474
        %v476 = vpop.f32.mrf.mxu0
        %477 = vmatprep.mubr.f32.mxu0 0.0
        %478 = vmatmul.mubr.f32.gmra.mxu0 %v353
        %v479 = vpop.f32.mrf.mxu0
        %v480 = vadd.f32 0.0, %v479
        %v481 = vpop.f32.mrf.mxu0
        %482 = vmatprep.mubr.f32.mxu0 0.0
        %483 = vmatmul.mubr.f32.gmra.mxu0 %v356
        %v484 = vpop.f32.mrf.mxu0
        %v485 = vadd.f32 0.0, %v484
        %v486 = vpop.f32.mrf.mxu0
        %487 = vmatprep.mubr.f32.mxu0 0.0
        %488 = vmatmul.mubr.f32.gmra.mxu0 %v358
        %v489 = vpop.f32.mrf.mxu0
        %v490 = vadd.f32 0.0, %v489
        %v491 = vpop.f32.mrf.mxu0
        %492 = vmatprep.mubr.f32.mxu0 0.0
        %493 = vmatmul.mubr.f32.gmra.mxu0 %v361
        %v494 = vpop.f32.mrf.mxu0
        %v495 = vadd.f32 0.0, %v494
        %v496 = vpop.f32.mrf.mxu0
        %497 = vmatprep.mubr.f32.mxu0 0.0
        %498 = vmatmul.mubr.f32.gmra.mxu0 %v363
        %v499 = vpop.f32.mrf.mxu0
        %v500 = vadd.f32 0.0, %v499
        %v501 = vpop.f32.mrf.mxu0
        %502 = vmatprep.mubr.f32.mxu0 0.0
        %503 = vmatmul.mubr.f32.gmra.mxu0 %v366
        %v504 = vpop.f32.mrf.mxu0
        %v505 = vadd.f32 0.0, %v504
        %v506 = vpop.f32.mrf.mxu0
        %507 = vmatprep.mubr.f32.mxu0 0.0
        %508 = vmatmul.mubr.f32.gmra.mxu0 %v368
        %v509 = vpop.f32.mrf.mxu0
        %v510 = vadd.f32 0.0, %v509
        %v511 = vpop.f32.mrf.mxu0
        %512 = vmatprep.mubr.f32.mxu0 0.0
        %513 = vmatmul.mubr.f32.gmra.mxu0 %v371
        %v514 = vpop.f32.mrf.mxu0
        %v515 = vadd.f32 0.0, %v514
        %v516 = vpop.f32.mrf.mxu0
        %517 = vmatprep.mubr.f32.mxu0 0.0
        %518 = vmatmul.mubr.f32.gmra.mxu0 %v373
        %v519 = vpop.f32.mrf.mxu0
        %v520 = vadd.f32 0.0, %v519
        %v521 = vpop.f32.mrf.mxu0
        %522 = vmatprep.mubr.f32.mxu0 0.0
        %523 = vmatmul.mubr.f32.gmra.mxu0 %v376
        %v524 = vpop.f32.mrf.mxu0
        %v525 = vadd.f32 0.0, %v524
        %v526 = vpop.f32.mrf.mxu0
        %527 = vmatprep.mubr.f32.mxu0 0.0
        %528 = vmatmul.mubr.f32.gmra.mxu0 %v378
        %v529 = vpop.f32.mrf.mxu0
        %v530 = vadd.f32 0.0, %v529
        %v531 = vpop.f32.mrf.mxu0
        %532 = vdwg.mxu0
        %533 = vmatprep.subr.mxu0 0.0
        %534 = vmatpush1.msra.mxu0 %v329
        %535 = vmatprep.subr.mxu0 0.0
        %536 = vmatpush1.msra.mxu0 %v328
        %537 = vmatprep.subr.mxu0 0.0
        %538 = vmatpush1.msra.mxu0 %v327
        %539 = vmatprep.subr.mxu0 0.0
        %540 = vmatpush1.msra.mxu0 %v326
        %541 = vmatprep.subr.mxu0 0.0
        %542 = vmatpush1.msra.mxu0 %v325
        %543 = vmatprep.subr.mxu0 0.0
        %544 = vmatpush1.msra.mxu0 %v324
        %545 = vmatprep.subr.mxu0 0.0
        %546 = vmatpush1.msra.mxu0 %v323
        %547 = vmatprep.subr.mxu0 0.0
        %548 = vmatpush1.msra.mxu0 %v322
        %549 = vmatprep.subr.mxu0 0.0
        %550 = vmatpush1.msra.mxu0 %v321
        %551 = vmatprep.subr.mxu0 0.0
        %552 = vmatpush1.msra.mxu0 %v320
        %553 = vmatprep.subr.mxu0 0.0
        %554 = vmatpush1.msra.mxu0 %v319
        %555 = vmatprep.subr.mxu0 0.0
        %556 = vmatpush1.msra.mxu0 %v318
        %557 = vmatprep.subr.mxu0 0.0
        %558 = vmatpush1.msra.mxu0 %v317
        %559 = vmatprep.subr.mxu0 0.0
        %560 = vmatpush1.msra.mxu0 %v316
        %561 = vmatprep.subr.mxu0 0.0
        %562 = vmatpush1.msra.mxu0 %v315
        %563 = vmatprep.subr.mxu0 0.0
        %564 = vmatpush1.msra.mxu0 %v314
        %565 = vmatprep.subr.mxu0 0.0
        %566 = vmatpush2.msra.mxu0 0.0
        %567 = vmatprep.subr.mxu0 0.0
        %568 = vmatpush2.msra.mxu0 0.0
        %569 = vmatprep.subr.mxu0 0.0
        %570 = vmatpush2.msra.mxu0 0.0
        %571 = vmatprep.subr.mxu0 0.0
        %572 = vmatpush2.msra.mxu0 0.0
        %573 = vmatprep.subr.mxu0 0.0
        %574 = vmatpush2.msra.mxu0 0.0
        %575 = vmatprep.subr.mxu0 0.0
        %576 = vmatpush2.msra.mxu0 0.0
        %577 = vmatprep.subr.mxu0 0.0
        %578 = vmatpush2.msra.mxu0 0.0
        %579 = vmatprep.subr.mxu0 0.0
        %580 = vmatpush2.msra.mxu0 0.0
        %581 = vmatprep.subr.mxu0 0.0
        %582 = vmatpush2.msra.mxu0 0.0
        %583 = vmatprep.subr.mxu0 0.0
        %584 = vmatpush2.msra.mxu0 0.0
        %585 = vmatprep.subr.mxu0 0.0
        %586 = vmatpush2.msra.mxu0 0.0
        %587 = vmatprep.subr.mxu0 0.0
        %588 = vmatpush2.msra.mxu0 0.0
        %589 = vmatprep.subr.mxu0 0.0
        %590 = vmatpush2.msra.mxu0 0.0
        %591 = vmatprep.subr.mxu0 0.0
        %592 = vmatpush2.msra.mxu0 0.0
        %593 = vmatprep.subr.mxu0 0.0
        %594 = vmatpush2.msra.mxu0 0.0
        %595 = vmatprep.subr.mxu0 0.0
        %596 = vmatpush2.msra.mxu0 0.0
        %597 = vmatprep.mubr.f32.mxu0 0.0
        %598 = vmatmul.mubr.f32.gmra.mxu0 %v290
        %v599 = vpop.f32.mrf.mxu0
        %v600 = vadd.f32 %v475, %v599
        %v601 = vpop.f32.mrf.mxu0
        %602 = vmatprep.mubr.f32.mxu0 0.0
        %603 = vmatmul.mubr.f32.gmra.mxu0 %v291
        %v604 = vpop.f32.mrf.mxu0
        %v605 = vadd.f32 %v480, %v604
        %v606 = vpop.f32.mrf.mxu0
        %607 = vmatprep.mubr.f32.mxu0 0.0
        %608 = vmatmul.mubr.f32.gmra.mxu0 %v293
        %v609 = vpop.f32.mrf.mxu0
        %v610 = vadd.f32 %v485, %v609
        %v611 = vpop.f32.mrf.mxu0
        %612 = vmatprep.mubr.f32.mxu0 0.0
        %613 = vmatmul.mubr.f32.gmra.mxu0 %v294
        %v614 = vpop.f32.mrf.mxu0
        %v615 = vadd.f32 %v490, %v614
        %v616 = vpop.f32.mrf.mxu0
        %617 = vmatprep.mubr.f32.mxu0 0.0
        %618 = vmatmul.mubr.f32.gmra.mxu0 %v296
        %v619 = vpop.f32.mrf.mxu0
        %v620 = vadd.f32 %v495, %v619
        %v621 = vpop.f32.mrf.mxu0
        %622 = vmatprep.mubr.f32.mxu0 0.0
        %623 = vmatmul.mubr.f32.gmra.mxu0 %v297
        %v624 = vpop.f32.mrf.mxu0
        %v625 = vadd.f32 %v500, %v624
        %v626 = vpop.f32.mrf.mxu0
        %627 = vmatprep.mubr.f32.mxu0 0.0
        %628 = vmatmul.mubr.f32.gmra.mxu0 %v299
        %v629 = vpop.f32.mrf.mxu0
        %v630 = vadd.f32 %v505, %v629
        %v631 = vpop.f32.mrf.mxu0
        %632 = vmatprep.mubr.f32.mxu0 0.0
        %633 = vmatmul.mubr.f32.gmra.mxu0 %v300
        %v634 = vpop.f32.mrf.mxu0
        %v635 = vadd.f32 %v510, %v634
        %v636 = vpop.f32.mrf.mxu0
        %637 = vmatprep.mubr.f32.mxu0 0.0
        %638 = vmatmul.mubr.f32.gmra.mxu0 %v302
        %v639 = vpop.f32.mrf.mxu0
        %v640 = vadd.f32 %v515, %v639
        %v641 = vpop.f32.mrf.mxu0
        %642 = vmatprep.mubr.f32.mxu0 0.0
        %643 = vmatmul.mubr.f32.gmra.mxu0 %v303
        %v644 = vpop.f32.mrf.mxu0
        %v645 = vadd.f32 %v520, %v644
        %v646 = vpop.f32.mrf.mxu0
        %647 = vmatprep.mubr.f32.mxu0 0.0
        %648 = vmatmul.mubr.f32.gmra.mxu0 %v305
        %v649 = vpop.f32.mrf.mxu0
        %v650 = vadd.f32 %v525, %v649
        %v651 = vpop.f32.mrf.mxu0
        %652 = vmatprep.mubr.f32.mxu0 0.0
        %653 = vmatmul.mubr.f32.gmra.mxu0 %v306
        %v654 = vpop.f32.mrf.mxu0
        %v655 = vadd.f32 %v530, %v654
        %v656 = vpop.f32.mrf.mxu0
        %657 = vdwg.mxu0
        %vm658 = vcmask 1045504
        %v659 = vrot.slane %v290, 2
        %v660 = vrot.slane %v291, 2
        %v661 = vsel %vm658, %v659, %v660
        %v662 = vrot.slane %v292, 2
        %v663 = vsel %vm658, %v660, %v662
        %v664 = vrot.slane %v293, 2
        %v665 = vrot.slane %v294, 2
        %v666 = vsel %vm658, %v664, %v665
        %v667 = vrot.slane %v295, 2
        %v668 = vsel %vm658, %v665, %v667
        %v669 = vrot.slane %v296, 2
        %v670 = vrot.slane %v297, 2
        %v671 = vsel %vm658, %v669, %v670
        %v672 = vrot.slane %v298, 2
        %v673 = vsel %vm658, %v670, %v672
        %v674 = vrot.slane %v299, 2
        %v675 = vrot.slane %v300, 2
        %v676 = vsel %vm658, %v674, %v675
        %v677 = vrot.slane %v301, 2
        %v678 = vsel %vm658, %v675, %v677
        %v679 = vrot.slane %v302, 2
        %v680 = vrot.slane %v303, 2
        %v681 = vsel %vm658, %v679, %v680
        %v682 = vrot.slane %v304, 2
        %v683 = vsel %vm658, %v680, %v682
        %v684 = vrot.slane %v305, 2
        %v685 = vrot.slane %v306, 2
        %v686 = vsel %vm658, %v684, %v685
        %v687 = vrot.slane %v307, 2
        %v688 = vsel %vm658, %v685, %v687
        %s701 = scalar_lea.vmem [#allocation6], 256
        %v702 = vld [vmem:[%s701] sm:$0xff]
        %v703 = vld [vmem:[%s701 + $0x8] sm:$0xff]
        %v704 = vld [vmem:[%s701 + $0x10] sm:$0xff]
        %v705 = vld [vmem:[%s701 + $0x18] sm:$0xff]
        %v706 = vld [vmem:[%s701 + $0x20] sm:$0xff]
        %v707 = vld [vmem:[%s701 + $0x28] sm:$0xff]
        %v708 = vld [vmem:[%s701 + $0x30] sm:$0xff]
        %v709 = vld [vmem:[%s701 + $0x38] sm:$0xff]
        %v710 = vld [vmem:[%s701 + $0x40] sm:$0xff]
        %v711 = vld [vmem:[%s701 + $0x48] sm:$0xff]
        %v712 = vld [vmem:[%s701 + $0x50] sm:$0xff]
        %v713 = vld [vmem:[%s701 + $0x58] sm:$0xff]
        %v714 = vld [vmem:[%s701 + $0x60] sm:$0xff]
        %v715 = vld [vmem:[%s701 + $0x68] sm:$0xff]
        %v716 = vld [vmem:[%s701 + $0x70] sm:$0xff]
        %v717 = vld [vmem:[%s701 + $0x78] sm:$0xff]
        %718 = vmatprep.subr.mxu0 0.0
        %719 = vmatpush1.msra.mxu0 %v717
        %720 = vmatprep.subr.mxu0 0.0
        %721 = vmatpush1.msra.mxu0 %v716
        %722 = vmatprep.subr.mxu0 0.0
        %723 = vmatpush1.msra.mxu0 %v715
        %724 = vmatprep.subr.mxu0 0.0
        %725 = vmatpush1.msra.mxu0 %v714
        %726 = vmatprep.subr.mxu0 0.0
        %727 = vmatpush1.msra.mxu0 %v713
        %728 = vmatprep.subr.mxu0 0.0
        %729 = vmatpush1.msra.mxu0 %v712
        %730 = vmatprep.subr.mxu0 0.0
        %731 = vmatpush1.msra.mxu0 %v711
        %732 = vmatprep.subr.mxu0 0.0
        %733 = vmatpush1.msra.mxu0 %v710
        %734 = vmatprep.subr.mxu0 0.0
        %735 = vmatpush1.msra.mxu0 %v709
        %736 = vmatprep.subr.mxu0 0.0
        %737 = vmatpush1.msra.mxu0 %v708
        %738 = vmatprep.subr.mxu0 0.0
        %739 = vmatpush1.msra.mxu0 %v707
        %740 = vmatprep.subr.mxu0 0.0
        %741 = vmatpush1.msra.mxu0 %v706
        %742 = vmatprep.subr.mxu0 0.0
        %743 = vmatpush1.msra.mxu0 %v705
        %744 = vmatprep.subr.mxu0 0.0
        %745 = vmatpush1.msra.mxu0 %v704
        %746 = vmatprep.subr.mxu0 0.0
        %747 = vmatpush1.msra.mxu0 %v703
        %748 = vmatprep.subr.mxu0 0.0
        %749 = vmatpush1.msra.mxu0 %v702
        %750 = vmatprep.subr.mxu0 0.0
        %751 = vmatpush2.msra.mxu0 0.0
        %752 = vmatprep.subr.mxu0 0.0
        %753 = vmatpush2.msra.mxu0 0.0
        %754 = vmatprep.subr.mxu0 0.0
        %755 = vmatpush2.msra.mxu0 0.0
        %756 = vmatprep.subr.mxu0 0.0
        %757 = vmatpush2.msra.mxu0 0.0
        %758 = vmatprep.subr.mxu0 0.0
        %759 = vmatpush2.msra.mxu0 0.0
        %760 = vmatprep.subr.mxu0 0.0
        %761 = vmatpush2.msra.mxu0 0.0
        %762 = vmatprep.subr.mxu0 0.0
        %763 = vmatpush2.msra.mxu0 0.0
        %764 = vmatprep.subr.mxu0 0.0
        %765 = vmatpush2.msra.mxu0 0.0
        %766 = vmatprep.subr.mxu0 0.0
        %767 = vmatpush2.msra.mxu0 0.0
        %768 = vmatprep.subr.mxu0 0.0
        %769 = vmatpush2.msra.mxu0 0.0
        %770 = vmatprep.subr.mxu0 0.0
        %771 = vmatpush2.msra.mxu0 0.0
        %772 = vmatprep.subr.mxu0 0.0
        %773 = vmatpush2.msra.mxu0 0.0
        %774 = vmatprep.subr.mxu0 0.0
        %775 = vmatpush2.msra.mxu0 0.0
        %776 = vmatprep.subr.mxu0 0.0
        %777 = vmatpush2.msra.mxu0 0.0
        %778 = vmatprep.subr.mxu0 0.0
        %779 = vmatpush2.msra.mxu0 0.0
        %780 = vmatprep.subr.mxu0 0.0
        %781 = vmatpush2.msra.mxu0 0.0
        %782 = vmatprep.mubr.f32.mxu0 0.0
        %783 = vmatmul.mubr.f32.gmra.mxu0 %v661
        %v784 = vpop.f32.mrf.mxu0
        %v785 = vadd.f32 0.0, %v784
        %v786 = vpop.f32.mrf.mxu0
        %787 = vmatprep.mubr.f32.mxu0 0.0
        %788 = vmatmul.mubr.f32.gmra.mxu0 %v663
        %v789 = vpop.f32.mrf.mxu0
        %v790 = vadd.f32 0.0, %v789
        %v791 = vpop.f32.mrf.mxu0
        %792 = vmatprep.mubr.f32.mxu0 0.0
        %793 = vmatmul.mubr.f32.gmra.mxu0 %v666
        %v794 = vpop.f32.mrf.mxu0
        %v795 = vadd.f32 0.0, %v794
        %v796 = vpop.f32.mrf.mxu0
        %797 = vmatprep.mubr.f32.mxu0 0.0
        %798 = vmatmul.mubr.f32.gmra.mxu0 %v668
        %v799 = vpop.f32.mrf.mxu0
        %v800 = vadd.f32 0.0, %v799
        %v801 = vpop.f32.mrf.mxu0
        %802 = vmatprep.mubr.f32.mxu0 0.0
        %803 = vmatmul.mubr.f32.gmra.mxu0 %v671
        %v804 = vpop.f32.mrf.mxu0
        %v805 = vadd.f32 0.0, %v804
        %v806 = vpop.f32.mrf.mxu0
        %807 = vmatprep.mubr.f32.mxu0 0.0
        %808 = vmatmul.mubr.f32.gmra.mxu0 %v673
        %v809 = vpop.f32.mrf.mxu0
        %v810 = vadd.f32 0.0, %v809
        %v811 = vpop.f32.mrf.mxu0
        %812 = vmatprep.mubr.f32.mxu0 0.0
        %813 = vmatmul.mubr.f32.gmra.mxu0 %v676
        %v814 = vpop.f32.mrf.mxu0
        %v815 = vadd.f32 0.0, %v814
        %v816 = vpop.f32.mrf.mxu0
        %817 = vmatprep.mubr.f32.mxu0 0.0
        %818 = vmatmul.mubr.f32.gmra.mxu0 %v678
        %v819 = vpop.f32.mrf.mxu0
        %v820 = vadd.f32 0.0, %v819
        %v821 = vpop.f32.mrf.mxu0
        %822 = vmatprep.mubr.f32.mxu0 0.0
        %823 = vmatmul.mubr.f32.gmra.mxu0 %v681
        %v824 = vpop.f32.mrf.mxu0
        %v825 = vadd.f32 0.0, %v824
        %v826 = vpop.f32.mrf.mxu0
        %827 = vmatprep.mubr.f32.mxu0 0.0
        %828 = vmatmul.mubr.f32.gmra.mxu0 %v683
        %v829 = vpop.f32.mrf.mxu0
        %v830 = vadd.f32 0.0, %v829
        %v831 = vpop.f32.mrf.mxu0
        %832 = vmatprep.mubr.f32.mxu0 0.0
        %833 = vmatmul.mubr.f32.gmra.mxu0 %v686
        %v834 = vpop.f32.mrf.mxu0
        %v835 = vadd.f32 0.0, %v834
        %v836 = vpop.f32.mrf.mxu0
        %837 = vmatprep.mubr.f32.mxu0 0.0
        %838 = vmatmul.mubr.f32.gmra.mxu0 %v688
        %v839 = vpop.f32.mrf.mxu0
        %v840 = vadd.f32 0.0, %v839
        %v841 = vpop.f32.mrf.mxu0
        %842 = vdwg.mxu0
        %v843 = vadd.f32 %v600, %v785
        %v844 = vadd.f32 %v605, %v790
        %v845 = vadd.f32 %v610, %v795
        %v846 = vadd.f32 %v615, %v800
        %v847 = vadd.f32 %v620, %v805
        %v848 = vadd.f32 %v625, %v810
        %v849 = vadd.f32 %v630, %v815
        %v850 = vadd.f32 %v635, %v820
        %v851 = vadd.f32 %v640, %v825
        %v852 = vadd.f32 %v645, %v830
        %v853 = vadd.f32 %v650, %v835
        %v854 = vadd.f32 %v655, %v840
        %s855 = scalar_lea.vmem [#allocation6], 384
        %v856 = vld [vmem:[%s855] sm:$0xff]
        %v857 = vld [vmem:[%s855 + $0x8] sm:$0xff]
        %v858 = vld [vmem:[%s855 + $0x10] sm:$0xff]
        %v859 = vld [vmem:[%s855 + $0x18] sm:$0xff]
        %v860 = vld [vmem:[%s855 + $0x20] sm:$0xff]
        %v861 = vld [vmem:[%s855 + $0x28] sm:$0xff]
        %v862 = vld [vmem:[%s855 + $0x30] sm:$0xff]
        %v863 = vld [vmem:[%s855 + $0x38] sm:$0xff]
        %v864 = vld [vmem:[%s855 + $0x40] sm:$0xff]
        %v865 = vld [vmem:[%s855 + $0x48] sm:$0xff]
        %v866 = vld [vmem:[%s855 + $0x50] sm:$0xff]
        %v867 = vld [vmem:[%s855 + $0x58] sm:$0xff]
        %v868 = vld [vmem:[%s855 + $0x60] sm:$0xff]
        %v869 = vld [vmem:[%s855 + $0x68] sm:$0xff]
        %v870 = vld [vmem:[%s855 + $0x70] sm:$0xff]
        %v871 = vld [vmem:[%s855 + $0x78] sm:$0xff]
        %872 = vmatprep.subr.mxu0 0.0
        %873 = vmatpush1.msra.mxu0 %v871
        %874 = vmatprep.subr.mxu0 0.0
        %875 = vmatpush1.msra.mxu0 %v870
        %876 = vmatprep.subr.mxu0 0.0
        %877 = vmatpush1.msra.mxu0 %v869
        %878 = vmatprep.subr.mxu0 0.0
        %879 = vmatpush1.msra.mxu0 %v868
        %880 = vmatprep.subr.mxu0 0.0
        %881 = vmatpush1.msra.mxu0 %v867
        %882 = vmatprep.subr.mxu0 0.0
        %883 = vmatpush1.msra.mxu0 %v866
        %884 = vmatprep.subr.mxu0 0.0
        %885 = vmatpush1.msra.mxu0 %v865
        %886 = vmatprep.subr.mxu0 0.0
        %887 = vmatpush1.msra.mxu0 %v864
        %888 = vmatprep.subr.mxu0 0.0
        %889 = vmatpush1.msra.mxu0 %v863
        %890 = vmatprep.subr.mxu0 0.0
        %891 = vmatpush1.msra.mxu0 %v862
        %892 = vmatprep.subr.mxu0 0.0
        %893 = vmatpush1.msra.mxu0 %v861
        %894 = vmatprep.subr.mxu0 0.0
        %895 = vmatpush1.msra.mxu0 %v860
        %896 = vmatprep.subr.mxu0 0.0
        %897 = vmatpush1.msra.mxu0 %v859
        %898 = vmatprep.subr.mxu0 0.0
        %899 = vmatpush1.msra.mxu0 %v858
        %900 = vmatprep.subr.mxu0 0.0
        %901 = vmatpush1.msra.mxu0 %v857
        %902 = vmatprep.subr.mxu0 0.0
        %903 = vmatpush1.msra.mxu0 %v856
        %904 = vmatprep.subr.mxu0 0.0
        %905 = vmatpush2.msra.mxu0 0.0
        %906 = vmatprep.subr.mxu0 0.0
        %907 = vmatpush2.msra.mxu0 0.0
        %908 = vmatprep.subr.mxu0 0.0
        %909 = vmatpush2.msra.mxu0 0.0
        %910 = vmatprep.subr.mxu0 0.0
        %911 = vmatpush2.msra.mxu0 0.0
        %912 = vmatprep.subr.mxu0 0.0
        %913 = vmatpush2.msra.mxu0 0.0
        %914 = vmatprep.subr.mxu0 0.0
        %915 = vmatpush2.msra.mxu0 0.0
        %916 = vmatprep.subr.mxu0 0.0
        %917 = vmatpush2.msra.mxu0 0.0
        %918 = vmatprep.subr.mxu0 0.0
        %919 = vmatpush2.msra.mxu0 0.0
        %920 = vmatprep.subr.mxu0 0.0
        %921 = vmatpush2.msra.mxu0 0.0
        %922 = vmatprep.subr.mxu0 0.0
        %923 = vmatpush2.msra.mxu0 0.0
        %924 = vmatprep.subr.mxu0 0.0
        %925 = vmatpush2.msra.mxu0 0.0
        %926 = vmatprep.subr.mxu0 0.0
        %927 = vmatpush2.msra.mxu0 0.0
        %928 = vmatprep.subr.mxu0 0.0
        %929 = vmatpush2.msra.mxu0 0.0
        %930 = vmatprep.subr.mxu0 0.0
        %931 = vmatpush2.msra.mxu0 0.0
        %932 = vmatprep.subr.mxu0 0.0
        %933 = vmatpush2.msra.mxu0 0.0
        %934 = vmatprep.subr.mxu0 0.0
        %935 = vmatpush2.msra.mxu0 0.0
        %936 = vmatprep.mubr.f32.mxu0 0.0
        %937 = vmatmul.mubr.f32.gmra.mxu0 %v293
        %v938 = vpop.f32.mrf.mxu0
        %v939 = vadd.f32 0.0, %v938
        %v940 = vpop.f32.mrf.mxu0
        %941 = vmatprep.mubr.f32.mxu0 0.0
        %942 = vmatmul.mubr.f32.gmra.mxu0 %v294
        %v943 = vpop.f32.mrf.mxu0
        %v944 = vadd.f32 0.0, %v943
        %v945 = vpop.f32.mrf.mxu0
        %946 = vmatprep.mubr.f32.mxu0 0.0
        %947 = vmatmul.mubr.f32.gmra.mxu0 %v296
        %v948 = vpop.f32.mrf.mxu0
        %v949 = vadd.f32 0.0, %v948
        %v950 = vpop.f32.mrf.mxu0
        %951 = vmatprep.mubr.f32.mxu0 0.0
        %952 = vmatmul.mubr.f32.gmra.mxu0 %v297
        %v953 = vpop.f32.mrf.mxu0
        %v954 = vadd.f32 0.0, %v953
        %v955 = vpop.f32.mrf.mxu0
        %956 = vmatprep.mubr.f32.mxu0 0.0
        %957 = vmatmul.mubr.f32.gmra.mxu0 %v299
        %v958 = vpop.f32.mrf.mxu0
        %v959 = vadd.f32 0.0, %v958
        %v960 = vpop.f32.mrf.mxu0
        %961 = vmatprep.mubr.f32.mxu0 0.0
        %962 = vmatmul.mubr.f32.gmra.mxu0 %v300
        %v963 = vpop.f32.mrf.mxu0
        %v964 = vadd.f32 0.0, %v963
        %v965 = vpop.f32.mrf.mxu0
        %966 = vmatprep.mubr.f32.mxu0 0.0
        %967 = vmatmul.mubr.f32.gmra.mxu0 %v302
        %v968 = vpop.f32.mrf.mxu0
        %v969 = vadd.f32 0.0, %v968
        %v970 = vpop.f32.mrf.mxu0
        %971 = vmatprep.mubr.f32.mxu0 0.0
        %972 = vmatmul.mubr.f32.gmra.mxu0 %v303
        %v973 = vpop.f32.mrf.mxu0
        %v974 = vadd.f32 0.0, %v973
        %v975 = vpop.f32.mrf.mxu0
        %976 = vmatprep.mubr.f32.mxu0 0.0
        %977 = vmatmul.mubr.f32.gmra.mxu0 %v305
        %v978 = vpop.f32.mrf.mxu0
        %v979 = vadd.f32 0.0, %v978
        %v980 = vpop.f32.mrf.mxu0
        %981 = vmatprep.mubr.f32.mxu0 0.0
        %982 = vmatmul.mubr.f32.gmra.mxu0 %v306
        %v983 = vpop.f32.mrf.mxu0
        %v984 = vadd.f32 0.0, %v983
        %v985 = vpop.f32.mrf.mxu0
        %986 = vmatprep.mubr.f32.mxu0 0.0
        %987 = vmatmul.mubr.f32.gmra.mxu0 %v308
        %v988 = vpop.f32.mrf.mxu0
        %v989 = vadd.f32 0.0, %v988
        %v990 = vpop.f32.mrf.mxu0
        %991 = vmatprep.mubr.f32.mxu0 0.0
        %992 = vmatmul.mubr.f32.gmra.mxu0 %v309
        %v993 = vpop.f32.mrf.mxu0
        %v994 = vadd.f32 0.0, %v993
        %v995 = vpop.f32.mrf.mxu0
        %996 = vdwg.mxu0
        %v997 = vadd.f32 %v843, %v939
        %v998 = vadd.f32 %v844, %v944
        %v999 = vadd.f32 %v845, %v949
        %v1000 = vadd.f32 %v846, %v954
        %v1001 = vadd.f32 %v847, %v959
        %v1002 = vadd.f32 %v848, %v964
        %v1003 = vadd.f32 %v849, %v969
        %v1004 = vadd.f32 %v850, %v974
        %v1005 = vadd.f32 %v851, %v979
        %v1006 = vadd.f32 %v852, %v984
        %v1007 = vadd.f32 %v853, %v989
        %v1008 = vadd.f32 %v854, %v994
        %v1012 = vrot.slane %v308, 1
        %v1013 = vrot.slane %v309, 1
        %v1014 = vsel %vm348, %v1012, %v1013
        %v1015 = vrot.slane %v310, 1
        %v1016 = vsel %vm348, %v1013, %v1015
        %s1019 = scalar_lea.vmem [#allocation6], 512
        %v1020 = vld [vmem:[%s1019] sm:$0xff]
        %v1021 = vld [vmem:[%s1019 + $0x8] sm:$0xff]
        %v1022 = vld [vmem:[%s1019 + $0x10] sm:$0xff]
        %v1023 = vld [vmem:[%s1019 + $0x18] sm:$0xff]
        %v1024 = vld [vmem:[%s1019 + $0x20] sm:$0xff]
        %v1025 = vld [vmem:[%s1019 + $0x28] sm:$0xff]
        %v1026 = vld [vmem:[%s1019 + $0x30] sm:$0xff]
        %v1027 = vld [vmem:[%s1019 + $0x38] sm:$0xff]
        %v1028 = vld [vmem:[%s1019 + $0x40] sm:$0xff]
        %v1029 = vld [vmem:[%s1019 + $0x48] sm:$0xff]
        %v1030 = vld [vmem:[%s1019 + $0x50] sm:$0xff]
        %v1031 = vld [vmem:[%s1019 + $0x58] sm:$0xff]
        %v1032 = vld [vmem:[%s1019 + $0x60] sm:$0xff]
        %v1033 = vld [vmem:[%s1019 + $0x68] sm:$0xff]
        %v1034 = vld [vmem:[%s1019 + $0x70] sm:$0xff]
        %v1035 = vld [vmem:[%s1019 + $0x78] sm:$0xff]
        %1036 = vmatprep.subr.mxu0 0.0
        %1037 = vmatpush1.msra.mxu0 %v1035
        %1038 = vmatprep.subr.mxu0 0.0
        %1039 = vmatpush1.msra.mxu0 %v1034
        %1040 = vmatprep.subr.mxu0 0.0
        %1041 = vmatpush1.msra.mxu0 %v1033
        %1042 = vmatprep.subr.mxu0 0.0
        %1043 = vmatpush1.msra.mxu0 %v1032
        %1044 = vmatprep.subr.mxu0 0.0
        %1045 = vmatpush1.msra.mxu0 %v1031
        %1046 = vmatprep.subr.mxu0 0.0
        %1047 = vmatpush1.msra.mxu0 %v1030
        %1048 = vmatprep.subr.mxu0 0.0
        %1049 = vmatpush1.msra.mxu0 %v1029
        %1050 = vmatprep.subr.mxu0 0.0
        %1051 = vmatpush1.msra.mxu0 %v1028
        %1052 = vmatprep.subr.mxu0 0.0
        %1053 = vmatpush1.msra.mxu0 %v1027
        %1054 = vmatprep.subr.mxu0 0.0
        %1055 = vmatpush1.msra.mxu0 %v1026
        %1056 = vmatprep.subr.mxu0 0.0
        %1057 = vmatpush1.msra.mxu0 %v1025
        %1058 = vmatprep.subr.mxu0 0.0
        %1059 = vmatpush1.msra.mxu0 %v1024
        %1060 = vmatprep.subr.mxu0 0.0
        %1061 = vmatpush1.msra.mxu0 %v1023
        %1062 = vmatprep.subr.mxu0 0.0
        %1063 = vmatpush1.msra.mxu0 %v1022
        %1064 = vmatprep.subr.mxu0 0.0
        %1065 = vmatpush1.msra.mxu0 %v1021
        %1066 = vmatprep.subr.mxu0 0.0
        %1067 = vmatpush1.msra.mxu0 %v1020
        %1068 = vmatprep.subr.mxu0 0.0
        %1069 = vmatpush2.msra.mxu0 0.0
        %1070 = vmatprep.subr.mxu0 0.0
        %1071 = vmatpush2.msra.mxu0 0.0
        %1072 = vmatprep.subr.mxu0 0.0
        %1073 = vmatpush2.msra.mxu0 0.0
        %1074 = vmatprep.subr.mxu0 0.0
        %1075 = vmatpush2.msra.mxu0 0.0
        %1076 = vmatprep.subr.mxu0 0.0
        %1077 = vmatpush2.msra.mxu0 0.0
        %1078 = vmatprep.subr.mxu0 0.0
        %1079 = vmatpush2.msra.mxu0 0.0
        %1080 = vmatprep.subr.mxu0 0.0
        %1081 = vmatpush2.msra.mxu0 0.0
        %1082 = vmatprep.subr.mxu0 0.0
        %1083 = vmatpush2.msra.mxu0 0.0
        %1084 = vmatprep.subr.mxu0 0.0
        %1085 = vmatpush2.msra.mxu0 0.0
        %1086 = vmatprep.subr.mxu0 0.0
        %1087 = vmatpush2.msra.mxu0 0.0
        %1088 = vmatprep.subr.mxu0 0.0
        %1089 = vmatpush2.msra.mxu0 0.0
        %1090 = vmatprep.subr.mxu0 0.0
        %1091 = vmatpush2.msra.mxu0 0.0
        %1092 = vmatprep.subr.mxu0 0.0
        %1093 = vmatpush2.msra.mxu0 0.0
        %1094 = vmatprep.subr.mxu0 0.0
        %1095 = vmatpush2.msra.mxu0 0.0
        %1096 = vmatprep.subr.mxu0 0.0
        %1097 = vmatpush2.msra.mxu0 0.0
        %1098 = vmatprep.subr.mxu0 0.0
        %1099 = vmatpush2.msra.mxu0 0.0
        %1100 = vmatprep.mubr.f32.mxu0 0.0
        %1101 = vmatmul.mubr.f32.gmra.mxu0 %v356
        %v1102 = vpop.f32.mrf.mxu0
        %v1103 = vadd.f32 0.0, %v1102
        %v1104 = vpop.f32.mrf.mxu0
        %1105 = vmatprep.mubr.f32.mxu0 0.0
        %1106 = vmatmul.mubr.f32.gmra.mxu0 %v358
        %v1107 = vpop.f32.mrf.mxu0
        %v1108 = vadd.f32 0.0, %v1107
        %v1109 = vpop.f32.mrf.mxu0
        %1110 = vmatprep.mubr.f32.mxu0 0.0
        %1111 = vmatmul.mubr.f32.gmra.mxu0 %v361
        %v1112 = vpop.f32.mrf.mxu0
        %v1113 = vadd.f32 0.0, %v1112
        %v1114 = vpop.f32.mrf.mxu0
        %1115 = vmatprep.mubr.f32.mxu0 0.0
        %1116 = vmatmul.mubr.f32.gmra.mxu0 %v363
        %v1117 = vpop.f32.mrf.mxu0
        %v1118 = vadd.f32 0.0, %v1117
        %v1119 = vpop.f32.mrf.mxu0
        %1120 = vmatprep.mubr.f32.mxu0 0.0
        %1121 = vmatmul.mubr.f32.gmra.mxu0 %v366
        %v1122 = vpop.f32.mrf.mxu0
        %v1123 = vadd.f32 0.0, %v1122
        %v1124 = vpop.f32.mrf.mxu0
        %1125 = vmatprep.mubr.f32.mxu0 0.0
        %1126 = vmatmul.mubr.f32.gmra.mxu0 %v368
        %v1127 = vpop.f32.mrf.mxu0
        %v1128 = vadd.f32 0.0, %v1127
        %v1129 = vpop.f32.mrf.mxu0
        %1130 = vmatprep.mubr.f32.mxu0 0.0
        %1131 = vmatmul.mubr.f32.gmra.mxu0 %v371
        %v1132 = vpop.f32.mrf.mxu0
        %v1133 = vadd.f32 0.0, %v1132
        %v1134 = vpop.f32.mrf.mxu0
        %1135 = vmatprep.mubr.f32.mxu0 0.0
        %1136 = vmatmul.mubr.f32.gmra.mxu0 %v373
        %v1137 = vpop.f32.mrf.mxu0
        %v1138 = vadd.f32 0.0, %v1137
        %v1139 = vpop.f32.mrf.mxu0
        %1140 = vmatprep.mubr.f32.mxu0 0.0
        %1141 = vmatmul.mubr.f32.gmra.mxu0 %v376
        %v1142 = vpop.f32.mrf.mxu0
        %v1143 = vadd.f32 0.0, %v1142
        %v1144 = vpop.f32.mrf.mxu0
        %1145 = vmatprep.mubr.f32.mxu0 0.0
        %1146 = vmatmul.mubr.f32.gmra.mxu0 %v378
        %v1147 = vpop.f32.mrf.mxu0
        %v1148 = vadd.f32 0.0, %v1147
        %v1149 = vpop.f32.mrf.mxu0
        %1150 = vmatprep.mubr.f32.mxu0 0.0
        %1151 = vmatmul.mubr.f32.gmra.mxu0 %v1014
        %v1152 = vpop.f32.mrf.mxu0
        %v1153 = vadd.f32 0.0, %v1152
        %v1154 = vpop.f32.mrf.mxu0
        %1155 = vmatprep.mubr.f32.mxu0 0.0
        %1156 = vmatmul.mubr.f32.gmra.mxu0 %v1016
        %v1157 = vpop.f32.mrf.mxu0
        %v1158 = vadd.f32 0.0, %v1157
        %v1159 = vpop.f32.mrf.mxu0
        %1160 = vdwg.mxu0
        %v1161 = vadd.f32 %v997, %v1103
        %v1162 = vadd.f32 %v998, %v1108
        %v1163 = vadd.f32 %v999, %v1113
        %v1164 = vadd.f32 %v1000, %v1118
        %v1165 = vadd.f32 %v1001, %v1123
        %v1166 = vadd.f32 %v1002, %v1128
        %v1167 = vadd.f32 %v1003, %v1133
        %v1168 = vadd.f32 %v1004, %v1138
        %v1169 = vadd.f32 %v1005, %v1143
        %v1170 = vadd.f32 %v1006, %v1148
        %v1171 = vadd.f32 %v1007, %v1153
        %v1172 = vadd.f32 %v1008, %v1158
        %v1173 = vrot.slane %v308, 2
        %v1174 = vrot.slane %v309, 2
        %v1175 = vsel %vm658, %v1173, %v1174
        %v1176 = vrot.slane %v310, 2
        %v1177 = vsel %vm658, %v1174, %v1176
        %s1180 = scalar_lea.vmem [#allocation6], 640
        %v1181 = vld [vmem:[%s1180] sm:$0xff]
        %v1182 = vld [vmem:[%s1180 + $0x8] sm:$0xff]
        %v1183 = vld [vmem:[%s1180 + $0x10] sm:$0xff]
        %v1184 = vld [vmem:[%s1180 + $0x18] sm:$0xff]
        %v1185 = vld [vmem:[%s1180 + $0x20] sm:$0xff]
        %v1186 = vld [vmem:[%s1180 + $0x28] sm:$0xff]
        %v1187 = vld [vmem:[%s1180 + $0x30] sm:$0xff]
        %v1188 = vld [vmem:[%s1180 + $0x38] sm:$0xff]
        %v1189 = vld [vmem:[%s1180 + $0x40] sm:$0xff]
        %v1190 = vld [vmem:[%s1180 + $0x48] sm:$0xff]
        %v1191 = vld [vmem:[%s1180 + $0x50] sm:$0xff]
        %v1192 = vld [vmem:[%s1180 + $0x58] sm:$0xff]
        %v1193 = vld [vmem:[%s1180 + $0x60] sm:$0xff]
        %v1194 = vld [vmem:[%s1180 + $0x68] sm:$0xff]
        %v1195 = vld [vmem:[%s1180 + $0x70] sm:$0xff]
        %v1196 = vld [vmem:[%s1180 + $0x78] sm:$0xff]
        %1197 = vmatprep.subr.mxu0 0.0
        %1198 = vmatpush1.msra.mxu0 %v1196
        %1199 = vmatprep.subr.mxu0 0.0
        %1200 = vmatpush1.msra.mxu0 %v1195
        %1201 = vmatprep.subr.mxu0 0.0
        %1202 = vmatpush1.msra.mxu0 %v1194
        %1203 = vmatprep.subr.mxu0 0.0
        %1204 = vmatpush1.msra.mxu0 %v1193
        %1205 = vmatprep.subr.mxu0 0.0
        %1206 = vmatpush1.msra.mxu0 %v1192
        %1207 = vmatprep.subr.mxu0 0.0
        %1208 = vmatpush1.msra.mxu0 %v1191
        %1209 = vmatprep.subr.mxu0 0.0
        %1210 = vmatpush1.msra.mxu0 %v1190
        %1211 = vmatprep.subr.mxu0 0.0
        %1212 = vmatpush1.msra.mxu0 %v1189
        %1213 = vmatprep.subr.mxu0 0.0
        %1214 = vmatpush1.msra.mxu0 %v1188
        %1215 = vmatprep.subr.mxu0 0.0
        %1216 = vmatpush1.msra.mxu0 %v1187
        %1217 = vmatprep.subr.mxu0 0.0
        %1218 = vmatpush1.msra.mxu0 %v1186
        %1219 = vmatprep.subr.mxu0 0.0
        %1220 = vmatpush1.msra.mxu0 %v1185
        %1221 = vmatprep.subr.mxu0 0.0
        %1222 = vmatpush1.msra.mxu0 %v1184
        %1223 = vmatprep.subr.mxu0 0.0
        %1224 = vmatpush1.msra.mxu0 %v1183
        %1225 = vmatprep.subr.mxu0 0.0
        %1226 = vmatpush1.msra.mxu0 %v1182
        %1227 = vmatprep.subr.mxu0 0.0
        %1228 = vmatpush1.msra.mxu0 %v1181
        %1229 = vmatprep.subr.mxu0 0.0
        %1230 = vmatpush2.msra.mxu0 0.0
        %1231 = vmatprep.subr.mxu0 0.0
        %1232 = vmatpush2.msra.mxu0 0.0
        %1233 = vmatprep.subr.mxu0 0.0
        %1234 = vmatpush2.msra.mxu0 0.0
        %1235 = vmatprep.subr.mxu0 0.0
        %1236 = vmatpush2.msra.mxu0 0.0
        %1237 = vmatprep.subr.mxu0 0.0
        %1238 = vmatpush2.msra.mxu0 0.0
        %1239 = vmatprep.subr.mxu0 0.0
        %1240 = vmatpush2.msra.mxu0 0.0
        %1241 = vmatprep.subr.mxu0 0.0
        %1242 = vmatpush2.msra.mxu0 0.0
        %1243 = vmatprep.subr.mxu0 0.0
        %1244 = vmatpush2.msra.mxu0 0.0
        %1245 = vmatprep.subr.mxu0 0.0
        %1246 = vmatpush2.msra.mxu0 0.0
        %1247 = vmatprep.subr.mxu0 0.0
        %1248 = vmatpush2.msra.mxu0 0.0
        %1249 = vmatprep.subr.mxu0 0.0
        %1250 = vmatpush2.msra.mxu0 0.0
        %1251 = vmatprep.subr.mxu0 0.0
        %1252 = vmatpush2.msra.mxu0 0.0
        %1253 = vmatprep.subr.mxu0 0.0
        %1254 = vmatpush2.msra.mxu0 0.0
        %1255 = vmatprep.subr.mxu0 0.0
        %1256 = vmatpush2.msra.mxu0 0.0
        %1257 = vmatprep.subr.mxu0 0.0
        %1258 = vmatpush2.msra.mxu0 0.0
        %1259 = vmatprep.subr.mxu0 0.0
        %1260 = vmatpush2.msra.mxu0 0.0
        %1261 = vmatprep.mubr.f32.mxu0 0.0
        %1262 = vmatmul.mubr.f32.gmra.mxu0 %v666
        %v1263 = vpop.f32.mrf.mxu0
        %v1264 = vadd.f32 0.0, %v1263
        %v1265 = vpop.f32.mrf.mxu0
        %1266 = vmatprep.mubr.f32.mxu0 0.0
        %1267 = vmatmul.mubr.f32.gmra.mxu0 %v668
        %v1268 = vpop.f32.mrf.mxu0
        %v1269 = vadd.f32 0.0, %v1268
        %v1270 = vpop.f32.mrf.mxu0
        %1271 = vmatprep.mubr.f32.mxu0 0.0
        %1272 = vmatmul.mubr.f32.gmra.mxu0 %v671
        %v1273 = vpop.f32.mrf.mxu0
        %v1274 = vadd.f32 0.0, %v1273
        %v1275 = vpop.f32.mrf.mxu0
        %1276 = vmatprep.mubr.f32.mxu0 0.0
        %1277 = vmatmul.mubr.f32.gmra.mxu0 %v673
        %v1278 = vpop.f32.mrf.mxu0
        %v1279 = vadd.f32 0.0, %v1278
        %v1280 = vpop.f32.mrf.mxu0
        %1281 = vmatprep.mubr.f32.mxu0 0.0
        %1282 = vmatmul.mubr.f32.gmra.mxu0 %v676
        %v1283 = vpop.f32.mrf.mxu0
        %v1284 = vadd.f32 0.0, %v1283
        %v1285 = vpop.f32.mrf.mxu0
        %1286 = vmatprep.mubr.f32.mxu0 0.0
        %1287 = vmatmul.mubr.f32.gmra.mxu0 %v678
        %v1288 = vpop.f32.mrf.mxu0
        %v1289 = vadd.f32 0.0, %v1288
        %v1290 = vpop.f32.mrf.mxu0
        %1291 = vmatprep.mubr.f32.mxu0 0.0
        %1292 = vmatmul.mubr.f32.gmra.mxu0 %v681
        %v1293 = vpop.f32.mrf.mxu0
        %v1294 = vadd.f32 0.0, %v1293
        %v1295 = vpop.f32.mrf.mxu0
        %1296 = vmatprep.mubr.f32.mxu0 0.0
        %1297 = vmatmul.mubr.f32.gmra.mxu0 %v683
        %v1298 = vpop.f32.mrf.mxu0
        %v1299 = vadd.f32 0.0, %v1298
        %v1300 = vpop.f32.mrf.mxu0
        %1301 = vmatprep.mubr.f32.mxu0 0.0
        %1302 = vmatmul.mubr.f32.gmra.mxu0 %v686
        %v1303 = vpop.f32.mrf.mxu0
        %v1304 = vadd.f32 0.0, %v1303
        %v1305 = vpop.f32.mrf.mxu0
        %1306 = vmatprep.mubr.f32.mxu0 0.0
        %1307 = vmatmul.mubr.f32.gmra.mxu0 %v688
        %v1308 = vpop.f32.mrf.mxu0
        %v1309 = vadd.f32 0.0, %v1308
        %v1310 = vpop.f32.mrf.mxu0
        %1311 = vmatprep.mubr.f32.mxu0 0.0
        %1312 = vmatmul.mubr.f32.gmra.mxu0 %v1175
        %v1313 = vpop.f32.mrf.mxu0
        %v1314 = vadd.f32 0.0, %v1313
        %v1315 = vpop.f32.mrf.mxu0
        %1316 = vmatprep.mubr.f32.mxu0 0.0
        %1317 = vmatmul.mubr.f32.gmra.mxu0 %v1177
        %v1318 = vpop.f32.mrf.mxu0
        %v1319 = vadd.f32 0.0, %v1318
        %v1320 = vpop.f32.mrf.mxu0
        %1321 = vdwg.mxu0
        %v1322 = vadd.f32 %v1161, %v1264
        %v1323 = vadd.f32 %v1162, %v1269
        %v1324 = vadd.f32 %v1163, %v1274
        %v1325 = vadd.f32 %v1164, %v1279
        %v1326 = vadd.f32 %v1165, %v1284
        %v1327 = vadd.f32 %v1166, %v1289
        %v1328 = vadd.f32 %v1167, %v1294
        %v1329 = vadd.f32 %v1168, %v1299
        %v1330 = vadd.f32 %v1169, %v1304
        %v1331 = vadd.f32 %v1170, %v1309
        %v1332 = vadd.f32 %v1171, %v1314
        %v1333 = vadd.f32 %v1172, %v1319
        %s1334 = scalar_lea.vmem [#allocation6], 768
        %v1335 = vld [vmem:[%s1334] sm:$0xff]
        %v1336 = vld [vmem:[%s1334 + $0x8] sm:$0xff]
        %v1337 = vld [vmem:[%s1334 + $0x10] sm:$0xff]
        %v1338 = vld [vmem:[%s1334 + $0x18] sm:$0xff]
        %v1339 = vld [vmem:[%s1334 + $0x20] sm:$0xff]
        %v1340 = vld [vmem:[%s1334 + $0x28] sm:$0xff]
        %v1341 = vld [vmem:[%s1334 + $0x30] sm:$0xff]
        %v1342 = vld [vmem:[%s1334 + $0x38] sm:$0xff]
        %v1343 = vld [vmem:[%s1334 + $0x40] sm:$0xff]
        %v1344 = vld [vmem:[%s1334 + $0x48] sm:$0xff]
        %v1345 = vld [vmem:[%s1334 + $0x50] sm:$0xff]
        %v1346 = vld [vmem:[%s1334 + $0x58] sm:$0xff]
        %v1347 = vld [vmem:[%s1334 + $0x60] sm:$0xff]
        %v1348 = vld [vmem:[%s1334 + $0x68] sm:$0xff]
        %v1349 = vld [vmem:[%s1334 + $0x70] sm:$0xff]
        %v1350 = vld [vmem:[%s1334 + $0x78] sm:$0xff]
        %1351 = vmatprep.subr.mxu0 0.0
        %1352 = vmatpush1.msra.mxu0 %v1350
        %1353 = vmatprep.subr.mxu0 0.0
        %1354 = vmatpush1.msra.mxu0 %v1349
        %1355 = vmatprep.subr.mxu0 0.0
        %1356 = vmatpush1.msra.mxu0 %v1348
        %1357 = vmatprep.subr.mxu0 0.0
        %1358 = vmatpush1.msra.mxu0 %v1347
        %1359 = vmatprep.subr.mxu0 0.0
        %1360 = vmatpush1.msra.mxu0 %v1346
        %1361 = vmatprep.subr.mxu0 0.0
        %1362 = vmatpush1.msra.mxu0 %v1345
        %1363 = vmatprep.subr.mxu0 0.0
        %1364 = vmatpush1.msra.mxu0 %v1344
        %1365 = vmatprep.subr.mxu0 0.0
        %1366 = vmatpush1.msra.mxu0 %v1343
        %1367 = vmatprep.subr.mxu0 0.0
        %1368 = vmatpush1.msra.mxu0 %v1342
        %1369 = vmatprep.subr.mxu0 0.0
        %1370 = vmatpush1.msra.mxu0 %v1341
        %1371 = vmatprep.subr.mxu0 0.0
        %1372 = vmatpush1.msra.mxu0 %v1340
        %1373 = vmatprep.subr.mxu0 0.0
        %1374 = vmatpush1.msra.mxu0 %v1339
        %1375 = vmatprep.subr.mxu0 0.0
        %1376 = vmatpush1.msra.mxu0 %v1338
        %1377 = vmatprep.subr.mxu0 0.0
        %1378 = vmatpush1.msra.mxu0 %v1337
        %1379 = vmatprep.subr.mxu0 0.0
        %1380 = vmatpush1.msra.mxu0 %v1336
        %1381 = vmatprep.subr.mxu0 0.0
        %1382 = vmatpush1.msra.mxu0 %v1335
        %1383 = vmatprep.subr.mxu0 0.0
        %1384 = vmatpush2.msra.mxu0 0.0
        %1385 = vmatprep.subr.mxu0 0.0
        %1386 = vmatpush2.msra.mxu0 0.0
        %1387 = vmatprep.subr.mxu0 0.0
        %1388 = vmatpush2.msra.mxu0 0.0
        %1389 = vmatprep.subr.mxu0 0.0
        %1390 = vmatpush2.msra.mxu0 0.0
        %1391 = vmatprep.subr.mxu0 0.0
        %1392 = vmatpush2.msra.mxu0 0.0
        %1393 = vmatprep.subr.mxu0 0.0
        %1394 = vmatpush2.msra.mxu0 0.0
        %1395 = vmatprep.subr.mxu0 0.0
        %1396 = vmatpush2.msra.mxu0 0.0
        %1397 = vmatprep.subr.mxu0 0.0
        %1398 = vmatpush2.msra.mxu0 0.0
        %1399 = vmatprep.subr.mxu0 0.0
        %1400 = vmatpush2.msra.mxu0 0.0
        %1401 = vmatprep.subr.mxu0 0.0
        %1402 = vmatpush2.msra.mxu0 0.0
        %1403 = vmatprep.subr.mxu0 0.0
        %1404 = vmatpush2.msra.mxu0 0.0
        %1405 = vmatprep.subr.mxu0 0.0
        %1406 = vmatpush2.msra.mxu0 0.0
        %1407 = vmatprep.subr.mxu0 0.0
        %1408 = vmatpush2.msra.mxu0 0.0
        %1409 = vmatprep.subr.mxu0 0.0
        %1410 = vmatpush2.msra.mxu0 0.0
        %1411 = vmatprep.subr.mxu0 0.0
        %1412 = vmatpush2.msra.mxu0 0.0
        %1413 = vmatprep.subr.mxu0 0.0
        %1414 = vmatpush2.msra.mxu0 0.0
        %1415 = vmatprep.mubr.f32.mxu0 0.0
        %1416 = vmatmul.mubr.f32.gmra.mxu0 %v296
        %v1417 = vpop.f32.mrf.mxu0
        %v1418 = vadd.f32 0.0, %v1417
        %v1419 = vpop.f32.mrf.mxu0
        %1420 = vmatprep.mubr.f32.mxu0 0.0
        %1421 = vmatmul.mubr.f32.gmra.mxu0 %v297
        %v1422 = vpop.f32.mrf.mxu0
        %v1423 = vadd.f32 0.0, %v1422
        %v1424 = vpop.f32.mrf.mxu0
        %1425 = vmatprep.mubr.f32.mxu0 0.0
        %1426 = vmatmul.mubr.f32.gmra.mxu0 %v299
        %v1427 = vpop.f32.mrf.mxu0
        %v1428 = vadd.f32 0.0, %v1427
        %v1429 = vpop.f32.mrf.mxu0
        %1430 = vmatprep.mubr.f32.mxu0 0.0
        %1431 = vmatmul.mubr.f32.gmra.mxu0 %v300
        %v1432 = vpop.f32.mrf.mxu0
        %v1433 = vadd.f32 0.0, %v1432
        %v1434 = vpop.f32.mrf.mxu0
        %1435 = vmatprep.mubr.f32.mxu0 0.0
        %1436 = vmatmul.mubr.f32.gmra.mxu0 %v302
        %v1437 = vpop.f32.mrf.mxu0
        %v1438 = vadd.f32 0.0, %v1437
        %v1439 = vpop.f32.mrf.mxu0
        %1440 = vmatprep.mubr.f32.mxu0 0.0
        %1441 = vmatmul.mubr.f32.gmra.mxu0 %v303
        %v1442 = vpop.f32.mrf.mxu0
        %v1443 = vadd.f32 0.0, %v1442
        %v1444 = vpop.f32.mrf.mxu0
        %1445 = vmatprep.mubr.f32.mxu0 0.0
        %1446 = vmatmul.mubr.f32.gmra.mxu0 %v305
        %v1447 = vpop.f32.mrf.mxu0
        %v1448 = vadd.f32 0.0, %v1447
        %v1449 = vpop.f32.mrf.mxu0
        %1450 = vmatprep.mubr.f32.mxu0 0.0
        %1451 = vmatmul.mubr.f32.gmra.mxu0 %v306
        %v1452 = vpop.f32.mrf.mxu0
        %v1453 = vadd.f32 0.0, %v1452
        %v1454 = vpop.f32.mrf.mxu0
        %1455 = vmatprep.mubr.f32.mxu0 0.0
        %1456 = vmatmul.mubr.f32.gmra.mxu0 %v308
        %v1457 = vpop.f32.mrf.mxu0
        %v1458 = vadd.f32 0.0, %v1457
        %v1459 = vpop.f32.mrf.mxu0
        %1460 = vmatprep.mubr.f32.mxu0 0.0
        %1461 = vmatmul.mubr.f32.gmra.mxu0 %v309
        %v1462 = vpop.f32.mrf.mxu0
        %v1463 = vadd.f32 0.0, %v1462
        %v1464 = vpop.f32.mrf.mxu0
        %1465 = vmatprep.mubr.f32.mxu0 0.0
        %1466 = vmatmul.mubr.f32.gmra.mxu0 %v311
        %v1467 = vpop.f32.mrf.mxu0
        %v1468 = vadd.f32 0.0, %v1467
        %v1469 = vpop.f32.mrf.mxu0
        %1470 = vmatprep.mubr.f32.mxu0 0.0
        %1471 = vmatmul.mubr.f32.gmra.mxu0 %v312
        %v1472 = vpop.f32.mrf.mxu0
        %v1473 = vadd.f32 0.0, %v1472
        %v1474 = vpop.f32.mrf.mxu0
        %1475 = vdwg.mxu0
        %v1476 = vadd.f32 %v1322, %v1418
        %v1477 = vadd.f32 %v1323, %v1423
        %v1478 = vadd.f32 %v1324, %v1428
        %v1479 = vadd.f32 %v1325, %v1433
        %v1480 = vadd.f32 %v1326, %v1438
        %v1481 = vadd.f32 %v1327, %v1443
        %v1482 = vadd.f32 %v1328, %v1448
        %v1483 = vadd.f32 %v1329, %v1453
        %v1484 = vadd.f32 %v1330, %v1458
        %v1485 = vadd.f32 %v1331, %v1463
        %v1486 = vadd.f32 %v1332, %v1468
        %v1487 = vadd.f32 %v1333, %v1473
        %v1491 = vrot.slane %v311, 1
        %v1492 = vrot.slane %v312, 1
        %v1493 = vsel %vm348, %v1491, %v1492
        %v1494 = vrot.slane %v313, 1
        %v1495 = vsel %vm348, %v1492, %v1494
        %s1498 = scalar_lea.vmem [#allocation6], 896
        %v1499 = vld [vmem:[%s1498] sm:$0xff]
        %v1500 = vld [vmem:[%s1498 + $0x8] sm:$0xff]
        %v1501 = vld [vmem:[%s1498 + $0x10] sm:$0xff]
        %v1502 = vld [vmem:[%s1498 + $0x18] sm:$0xff]
        %v1503 = vld [vmem:[%s1498 + $0x20] sm:$0xff]
        %v1504 = vld [vmem:[%s1498 + $0x28] sm:$0xff]
        %v1505 = vld [vmem:[%s1498 + $0x30] sm:$0xff]
        %v1506 = vld [vmem:[%s1498 + $0x38] sm:$0xff]
        %v1507 = vld [vmem:[%s1498 + $0x40] sm:$0xff]
        %v1508 = vld [vmem:[%s1498 + $0x48] sm:$0xff]
        %v1509 = vld [vmem:[%s1498 + $0x50] sm:$0xff]
        %v1510 = vld [vmem:[%s1498 + $0x58] sm:$0xff]
        %v1511 = vld [vmem:[%s1498 + $0x60] sm:$0xff]
        %v1512 = vld [vmem:[%s1498 + $0x68] sm:$0xff]
        %v1513 = vld [vmem:[%s1498 + $0x70] sm:$0xff]
        %v1514 = vld [vmem:[%s1498 + $0x78] sm:$0xff]
        %1515 = vmatprep.subr.mxu0 0.0
        %1516 = vmatpush1.msra.mxu0 %v1514
        %1517 = vmatprep.subr.mxu0 0.0
        %1518 = vmatpush1.msra.mxu0 %v1513
        %1519 = vmatprep.subr.mxu0 0.0
        %1520 = vmatpush1.msra.mxu0 %v1512
        %1521 = vmatprep.subr.mxu0 0.0
        %1522 = vmatpush1.msra.mxu0 %v1511
        %1523 = vmatprep.subr.mxu0 0.0
        %1524 = vmatpush1.msra.mxu0 %v1510
        %1525 = vmatprep.subr.mxu0 0.0
        %1526 = vmatpush1.msra.mxu0 %v1509
        %1527 = vmatprep.subr.mxu0 0.0
        %1528 = vmatpush1.msra.mxu0 %v1508
        %1529 = vmatprep.subr.mxu0 0.0
        %1530 = vmatpush1.msra.mxu0 %v1507
        %1531 = vmatprep.subr.mxu0 0.0
        %1532 = vmatpush1.msra.mxu0 %v1506
        %1533 = vmatprep.subr.mxu0 0.0
        %1534 = vmatpush1.msra.mxu0 %v1505
        %1535 = vmatprep.subr.mxu0 0.0
        %1536 = vmatpush1.msra.mxu0 %v1504
        %1537 = vmatprep.subr.mxu0 0.0
        %1538 = vmatpush1.msra.mxu0 %v1503
        %1539 = vmatprep.subr.mxu0 0.0
        %1540 = vmatpush1.msra.mxu0 %v1502
        %1541 = vmatprep.subr.mxu0 0.0
        %1542 = vmatpush1.msra.mxu0 %v1501
        %1543 = vmatprep.subr.mxu0 0.0
        %1544 = vmatpush1.msra.mxu0 %v1500
        %1545 = vmatprep.subr.mxu0 0.0
        %1546 = vmatpush1.msra.mxu0 %v1499
        %1547 = vmatprep.subr.mxu0 0.0
        %1548 = vmatpush2.msra.mxu0 0.0
        %1549 = vmatprep.subr.mxu0 0.0
        %1550 = vmatpush2.msra.mxu0 0.0
        %1551 = vmatprep.subr.mxu0 0.0
        %1552 = vmatpush2.msra.mxu0 0.0
        %1553 = vmatprep.subr.mxu0 0.0
        %1554 = vmatpush2.msra.mxu0 0.0
        %1555 = vmatprep.subr.mxu0 0.0
        %1556 = vmatpush2.msra.mxu0 0.0
        %1557 = vmatprep.subr.mxu0 0.0
        %1558 = vmatpush2.msra.mxu0 0.0
        %1559 = vmatprep.subr.mxu0 0.0
        %1560 = vmatpush2.msra.mxu0 0.0
        %1561 = vmatprep.subr.mxu0 0.0
        %1562 = vmatpush2.msra.mxu0 0.0
        %1563 = vmatprep.subr.mxu0 0.0
        %1564 = vmatpush2.msra.mxu0 0.0
        %1565 = vmatprep.subr.mxu0 0.0
        %1566 = vmatpush2.msra.mxu0 0.0
        %1567 = vmatprep.subr.mxu0 0.0
        %1568 = vmatpush2.msra.mxu0 0.0
        %1569 = vmatprep.subr.mxu0 0.0
        %1570 = vmatpush2.msra.mxu0 0.0
        %1571 = vmatprep.subr.mxu0 0.0
        %1572 = vmatpush2.msra.mxu0 0.0
        %1573 = vmatprep.subr.mxu0 0.0
        %1574 = vmatpush2.msra.mxu0 0.0
        %1575 = vmatprep.subr.mxu0 0.0
        %1576 = vmatpush2.msra.mxu0 0.0
        %1577 = vmatprep.subr.mxu0 0.0
        %1578 = vmatpush2.msra.mxu0 0.0
        %1579 = vmatprep.mubr.f32.mxu0 0.0
        %1580 = vmatmul.mubr.f32.gmra.mxu0 %v361
        %v1581 = vpop.f32.mrf.mxu0
        %v1582 = vadd.f32 0.0, %v1581
        %v1583 = vpop.f32.mrf.mxu0
        %1584 = vmatprep.mubr.f32.mxu0 0.0
        %1585 = vmatmul.mubr.f32.gmra.mxu0 %v363
        %v1586 = vpop.f32.mrf.mxu0
        %v1587 = vadd.f32 0.0, %v1586
        %v1588 = vpop.f32.mrf.mxu0
        %1589 = vmatprep.mubr.f32.mxu0 0.0
        %1590 = vmatmul.mubr.f32.gmra.mxu0 %v366
        %v1591 = vpop.f32.mrf.mxu0
        %v1592 = vadd.f32 0.0, %v1591
        %v1593 = vpop.f32.mrf.mxu0
        %1594 = vmatprep.mubr.f32.mxu0 0.0
        %1595 = vmatmul.mubr.f32.gmra.mxu0 %v368
        %v1596 = vpop.f32.mrf.mxu0
        %v1597 = vadd.f32 0.0, %v1596
        %v1598 = vpop.f32.mrf.mxu0
        %1599 = vmatprep.mubr.f32.mxu0 0.0
        %1600 = vmatmul.mubr.f32.gmra.mxu0 %v371
        %v1601 = vpop.f32.mrf.mxu0
        %v1602 = vadd.f32 0.0, %v1601
        %v1603 = vpop.f32.mrf.mxu0
        %1604 = vmatprep.mubr.f32.mxu0 0.0
        %1605 = vmatmul.mubr.f32.gmra.mxu0 %v373
        %v1606 = vpop.f32.mrf.mxu0
        %v1607 = vadd.f32 0.0, %v1606
        %v1608 = vpop.f32.mrf.mxu0
        %1609 = vmatprep.mubr.f32.mxu0 0.0
        %1610 = vmatmul.mubr.f32.gmra.mxu0 %v376
        %v1611 = vpop.f32.mrf.mxu0
        %v1612 = vadd.f32 0.0, %v1611
        %v1613 = vpop.f32.mrf.mxu0
        %1614 = vmatprep.mubr.f32.mxu0 0.0
        %1615 = vmatmul.mubr.f32.gmra.mxu0 %v378
        %v1616 = vpop.f32.mrf.mxu0
        %v1617 = vadd.f32 0.0, %v1616
        %v1618 = vpop.f32.mrf.mxu0
        %1619 = vmatprep.mubr.f32.mxu0 0.0
        %1620 = vmatmul.mubr.f32.gmra.mxu0 %v1014
        %v1621 = vpop.f32.mrf.mxu0
        %v1622 = vadd.f32 0.0, %v1621
        %v1623 = vpop.f32.mrf.mxu0
        %1624 = vmatprep.mubr.f32.mxu0 0.0
        %1625 = vmatmul.mubr.f32.gmra.mxu0 %v1016
        %v1626 = vpop.f32.mrf.mxu0
        %v1627 = vadd.f32 0.0, %v1626
        %v1628 = vpop.f32.mrf.mxu0
        %1629 = vmatprep.mubr.f32.mxu0 0.0
        %1630 = vmatmul.mubr.f32.gmra.mxu0 %v1493
        %v1631 = vpop.f32.mrf.mxu0
        %v1632 = vadd.f32 0.0, %v1631
        %v1633 = vpop.f32.mrf.mxu0
        %1634 = vmatprep.mubr.f32.mxu0 0.0
        %1635 = vmatmul.mubr.f32.gmra.mxu0 %v1495
        %v1636 = vpop.f32.mrf.mxu0
        %v1637 = vadd.f32 0.0, %v1636
        %v1638 = vpop.f32.mrf.mxu0
        %1639 = vdwg.mxu0
        %v1640 = vadd.f32 %v1476, %v1582
        %v1641 = vadd.f32 %v1477, %v1587
        %v1642 = vadd.f32 %v1478, %v1592
        %v1643 = vadd.f32 %v1479, %v1597
        %v1644 = vadd.f32 %v1480, %v1602
        %v1645 = vadd.f32 %v1481, %v1607
        %v1646 = vadd.f32 %v1482, %v1612
        %v1647 = vadd.f32 %v1483, %v1617
        %v1648 = vadd.f32 %v1484, %v1622
        %v1649 = vadd.f32 %v1485, %v1627
        %v1650 = vadd.f32 %v1486, %v1632
        %v1651 = vadd.f32 %v1487, %v1637
        %v1652 = vrot.slane %v311, 2
        %v1653 = vrot.slane %v312, 2
        %v1654 = vsel %vm658, %v1652, %v1653
        %v1655 = vrot.slane %v313, 2
        %v1656 = vsel %vm658, %v1653, %v1655
        %s1659 = scalar_lea.vmem [#allocation6], 1024
        %v1660 = vld [vmem:[%s1659] sm:$0xff]
        %v1661 = vld [vmem:[%s1659 + $0x8] sm:$0xff]
        %v1662 = vld [vmem:[%s1659 + $0x10] sm:$0xff]
        %v1663 = vld [vmem:[%s1659 + $0x18] sm:$0xff]
        %v1664 = vld [vmem:[%s1659 + $0x20] sm:$0xff]
        %v1665 = vld [vmem:[%s1659 + $0x28] sm:$0xff]
        %v1666 = vld [vmem:[%s1659 + $0x30] sm:$0xff]
        %v1667 = vld [vmem:[%s1659 + $0x38] sm:$0xff]
        %v1668 = vld [vmem:[%s1659 + $0x40] sm:$0xff]
        %v1669 = vld [vmem:[%s1659 + $0x48] sm:$0xff]
        %v1670 = vld [vmem:[%s1659 + $0x50] sm:$0xff]
        %v1671 = vld [vmem:[%s1659 + $0x58] sm:$0xff]
        %v1672 = vld [vmem:[%s1659 + $0x60] sm:$0xff]
        %v1673 = vld [vmem:[%s1659 + $0x68] sm:$0xff]
        %v1674 = vld [vmem:[%s1659 + $0x70] sm:$0xff]
        %v1675 = vld [vmem:[%s1659 + $0x78] sm:$0xff]
        %1676 = vmatprep.subr.mxu0 0.0
        %1677 = vmatpush1.msra.mxu0 %v1675
        %1678 = vmatprep.subr.mxu0 0.0
        %1679 = vmatpush1.msra.mxu0 %v1674
        %1680 = vmatprep.subr.mxu0 0.0
        %1681 = vmatpush1.msra.mxu0 %v1673
        %1682 = vmatprep.subr.mxu0 0.0
        %1683 = vmatpush1.msra.mxu0 %v1672
        %1684 = vmatprep.subr.mxu0 0.0
        %1685 = vmatpush1.msra.mxu0 %v1671
        %1686 = vmatprep.subr.mxu0 0.0
        %1687 = vmatpush1.msra.mxu0 %v1670
        %1688 = vmatprep.subr.mxu0 0.0
        %1689 = vmatpush1.msra.mxu0 %v1669
        %1690 = vmatprep.subr.mxu0 0.0
        %1691 = vmatpush1.msra.mxu0 %v1668
        %1692 = vmatprep.subr.mxu0 0.0
        %1693 = vmatpush1.msra.mxu0 %v1667
        %1694 = vmatprep.subr.mxu0 0.0
        %1695 = vmatpush1.msra.mxu0 %v1666
        %1696 = vmatprep.subr.mxu0 0.0
        %1697 = vmatpush1.msra.mxu0 %v1665
        %1698 = vmatprep.subr.mxu0 0.0
        %1699 = vmatpush1.msra.mxu0 %v1664
        %1700 = vmatprep.subr.mxu0 0.0
        %1701 = vmatpush1.msra.mxu0 %v1663
        %1702 = vmatprep.subr.mxu0 0.0
        %1703 = vmatpush1.msra.mxu0 %v1662
        %1704 = vmatprep.subr.mxu0 0.0
        %1705 = vmatpush1.msra.mxu0 %v1661
        %1706 = vmatprep.subr.mxu0 0.0
        %1707 = vmatpush1.msra.mxu0 %v1660
        %1708 = vmatprep.subr.mxu0 0.0
        %1709 = vmatpush2.msra.mxu0 0.0
        %1710 = vmatprep.subr.mxu0 0.0
        %1711 = vmatpush2.msra.mxu0 0.0
        %1712 = vmatprep.subr.mxu0 0.0
        %1713 = vmatpush2.msra.mxu0 0.0
        %1714 = vmatprep.subr.mxu0 0.0
        %1715 = vmatpush2.msra.mxu0 0.0
        %1716 = vmatprep.subr.mxu0 0.0
        %1717 = vmatpush2.msra.mxu0 0.0
        %1718 = vmatprep.subr.mxu0 0.0
        %1719 = vmatpush2.msra.mxu0 0.0
        %1720 = vmatprep.subr.mxu0 0.0
        %1721 = vmatpush2.msra.mxu0 0.0
        %1722 = vmatprep.subr.mxu0 0.0
        %1723 = vmatpush2.msra.mxu0 0.0
        %1724 = vmatprep.subr.mxu0 0.0
        %1725 = vmatpush2.msra.mxu0 0.0
        %1726 = vmatprep.subr.mxu0 0.0
        %1727 = vmatpush2.msra.mxu0 0.0
        %1728 = vmatprep.subr.mxu0 0.0
        %1729 = vmatpush2.msra.mxu0 0.0
        %1730 = vmatprep.subr.mxu0 0.0
        %1731 = vmatpush2.msra.mxu0 0.0
        %1732 = vmatprep.subr.mxu0 0.0
        %1733 = vmatpush2.msra.mxu0 0.0
        %1734 = vmatprep.subr.mxu0 0.0
        %1735 = vmatpush2.msra.mxu0 0.0
        %1736 = vmatprep.subr.mxu0 0.0
        %1737 = vmatpush2.msra.mxu0 0.0
        %1738 = vmatprep.subr.mxu0 0.0
        %1739 = vmatpush2.msra.mxu0 0.0
        %1740 = vmatprep.mubr.f32.mxu0 0.0
        %1741 = vmatmul.mubr.f32.gmra.mxu0 %v671
        %v1742 = vpop.f32.mrf.mxu0
        %v1743 = vadd.f32 0.0, %v1742
        %v1744 = vpop.f32.mrf.mxu0
        %1745 = vmatprep.mubr.f32.mxu0 0.0
        %1746 = vmatmul.mubr.f32.gmra.mxu0 %v673
        %v1747 = vpop.f32.mrf.mxu0
        %v1748 = vadd.f32 0.0, %v1747
        %v1749 = vpop.f32.mrf.mxu0
        %1750 = vmatprep.mubr.f32.mxu0 0.0
        %1751 = vmatmul.mubr.f32.gmra.mxu0 %v676
        %v1752 = vpop.f32.mrf.mxu0
        %v1753 = vadd.f32 0.0, %v1752
        %v1754 = vpop.f32.mrf.mxu0
        %1755 = vmatprep.mubr.f32.mxu0 0.0
        %1756 = vmatmul.mubr.f32.gmra.mxu0 %v678
        %v1757 = vpop.f32.mrf.mxu0
        %v1758 = vadd.f32 0.0, %v1757
        %v1759 = vpop.f32.mrf.mxu0
        %1760 = vmatprep.mubr.f32.mxu0 0.0
        %1761 = vmatmul.mubr.f32.gmra.mxu0 %v681
        %v1762 = vpop.f32.mrf.mxu0
        %v1763 = vadd.f32 0.0, %v1762
        %v1764 = vpop.f32.mrf.mxu0
        %1765 = vmatprep.mubr.f32.mxu0 0.0
        %1766 = vmatmul.mubr.f32.gmra.mxu0 %v683
        %v1767 = vpop.f32.mrf.mxu0
        %v1768 = vadd.f32 0.0, %v1767
        %v1769 = vpop.f32.mrf.mxu0
        %1770 = vmatprep.mubr.f32.mxu0 0.0
        %1771 = vmatmul.mubr.f32.gmra.mxu0 %v686
        %v1772 = vpop.f32.mrf.mxu0
        %v1773 = vadd.f32 0.0, %v1772
        %v1774 = vpop.f32.mrf.mxu0
        %1775 = vmatprep.mubr.f32.mxu0 0.0
        %1776 = vmatmul.mubr.f32.gmra.mxu0 %v688
        %v1777 = vpop.f32.mrf.mxu0
        %v1778 = vadd.f32 0.0, %v1777
        %v1779 = vpop.f32.mrf.mxu0
        %1780 = vmatprep.mubr.f32.mxu0 0.0
        %1781 = vmatmul.mubr.f32.gmra.mxu0 %v1175
        %v1782 = vpop.f32.mrf.mxu0
        %v1783 = vadd.f32 0.0, %v1782
        %v1784 = vpop.f32.mrf.mxu0
        %1785 = vmatprep.mubr.f32.mxu0 0.0
        %1786 = vmatmul.mubr.f32.gmra.mxu0 %v1177
        %v1787 = vpop.f32.mrf.mxu0
        %v1788 = vadd.f32 0.0, %v1787
        %v1789 = vpop.f32.mrf.mxu0
        %1790 = vmatprep.mubr.f32.mxu0 0.0
        %1791 = vmatmul.mubr.f32.gmra.mxu0 %v1654
        %v1792 = vpop.f32.mrf.mxu0
        %v1793 = vadd.f32 0.0, %v1792
        %v1794 = vpop.f32.mrf.mxu0
        %1795 = vmatprep.mubr.f32.mxu0 0.0
        %1796 = vmatmul.mubr.f32.gmra.mxu0 %v1656
        %v1797 = vpop.f32.mrf.mxu0
        %v1798 = vadd.f32 0.0, %v1797
        %v1799 = vpop.f32.mrf.mxu0
        %1800 = vdwg.mxu0
        %v1801 = vadd.f32 %v1640, %v1743
        %v1802 = vadd.f32 %v1641, %v1748
        %v1803 = vadd.f32 %v1642, %v1753
        %v1804 = vadd.f32 %v1643, %v1758
        %v1805 = vadd.f32 %v1644, %v1763
        %v1806 = vadd.f32 %v1645, %v1768
        %v1807 = vadd.f32 %v1646, %v1773
        %v1808 = vadd.f32 %v1647, %v1778
        %v1809 = vadd.f32 %v1648, %v1783
        %v1810 = vadd.f32 %v1649, %v1788
        %v1811 = vadd.f32 %v1650, %v1793
        %v1812 = vadd.f32 %v1651, %v1798
        %v1813 = vld [vmem:[%s2] sm:$0x1]
        %v1815 = vlaneseq
        %v1816 = vshrl.u32 %v1815, 7
        %v1817 = vsub.s32 0, %v1816
        %v1818 = vrot.slane %v1813, %v1817
        %v1820 = vadd.f32 %v1801, %v1818
        %v1821 = vadd.f32 %v1802, %v1818
        %v1822 = vadd.f32 %v1803, %v1818
        %v1823 = vadd.f32 %v1804, %v1818
        %v1824 = vadd.f32 %v1805, %v1818
        %v1825 = vadd.f32 %v1806, %v1818
        %v1826 = vadd.f32 %v1807, %v1818
        %v1827 = vadd.f32 %v1808, %v1818
        %v1828 = vadd.f32 %v1809, %v1818
        %v1829 = vadd.f32 %v1810, %v1818
        %v1830 = vadd.f32 %v1811, %v1818
        %v1831 = vadd.f32 %v1812, %v1818
        %v1832 = vmax.f32 %v1820, 0.0
        %v1833 = vmax.f32 %v1821, 0.0
        %v1834 = vmax.f32 %v1822, 0.0
        %v1835 = vmax.f32 %v1823, 0.0
        %v1836 = vmax.f32 %v1824, 0.0
        %v1837 = vmax.f32 %v1825, 0.0
        %v1838 = vmax.f32 %v1826, 0.0
        %v1839 = vmax.f32 %v1827, 0.0
        %v1840 = vmax.f32 %v1828, 0.0
        %v1841 = vmax.f32 %v1829, 0.0
        %v1842 = vmax.f32 %v1830, 0.0
        %v1843 = vmax.f32 %v1831, 0.0
        %1844 = vst [vmem:[#allocation2] sm:$0x1] 0.0
        %1845 = vst [vmem:[#allocation2 + $0x18] sm:$0x1] 0.0
        %1846 = vst [vmem:[#allocation2 + $0x30] sm:$0x1] 0.0
        %1847 = vst [vmem:[#allocation2 + $0x48] sm:$0x1] 0.0
        %1848 = vst [vmem:[#allocation2 + $0x60] sm:$0x1] 0.0
        %1849 = vst [vmem:[#allocation2 + $0x78] sm:$0x1] 0.0
        %1850 = vst [vmem:[#allocation2 + $0x11] sm:$0x1] 0.0
        %1851 = vst [vmem:[#allocation2 + $0x29] sm:$0x1] 0.0
        %1852 = vst [vmem:[#allocation2 + $0x41] sm:$0x1] 0.0
        %1853 = vst [vmem:[#allocation2 + $0x59] sm:$0x1] 0.0
        %1854 = vst [vmem:[#allocation2 + $0x71] sm:$0x1] 0.0
        %1855 = vst [vmem:[#allocation2 + $0x89] sm:$0x1] 0.0
        %1856 = vst [vmem:[#allocation2 + $0x1] sm:$0xff] %v1832
        %1857 = vst [vmem:[#allocation2 + $0x9] sm:$0xff] %v1833
        %1858 = vst [vmem:[#allocation2 + $0x19] sm:$0xff] %v1834
        %1859 = vst [vmem:[#allocation2 + $0x21] sm:$0xff] %v1835
        %1860 = vst [vmem:[#allocation2 + $0x31] sm:$0xff] %v1836
        %1861 = vst [vmem:[#allocation2 + $0x39] sm:$0xff] %v1837
        %1862 = vst [vmem:[#allocation2 + $0x49] sm:$0xff] %v1838
        %1863 = vst [vmem:[#allocation2 + $0x51] sm:$0xff] %v1839
        %1864 = vst [vmem:[#allocation2 + $0x61] sm:$0xff] %v1840
        %1865 = vst [vmem:[#allocation2 + $0x69] sm:$0xff] %v1841
        %1866 = vst [vmem:[#allocation2 + $0x79] sm:$0xff] %v1842
        %1867 = vst [vmem:[#allocation2 + $0x81] sm:$0xff] %v1843
        %p1868 = scmp.eq.s32.totalorder %s28, 0
        // Predicated region
        $region53: #{tpu_custom_call.1} parent=39 // pred_check
          %p1869 = pneg %p1868
        $region54: #{tpu_custom_call.1} parent=39 // pred_check_branch
          %1871 = sbr.rel (%p1869) target = $region56
        $region55: #{tpu_custom_call.1} parent=39 // pred_region
          %1872 = vst [vmem:[#allocation2 + $0x1] sm:$0xff] 0.0
          %1873 = vst [vmem:[#allocation2 + $0x9] sm:$0xff] 0.0
        $region56: #{tpu_custom_call.1} parent=39 // pred_fallthru
          _
        %p1874 = scmp.eq.s32.totalorder %s28, 3
        // Predicated region
        $region57: #{tpu_custom_call.1} parent=39 // pred_check
          %p1875 = pneg %p1874
        $region58: #{tpu_custom_call.1} parent=39 // pred_check_branch
          %1877 = sbr.rel (%p1875) target = $region60
        $region59: #{tpu_custom_call.1} parent=39 // pred_region
          %s1878 = scalar_lea.vmem [#allocation2], 120
          %1879 = vst [vmem:[%s1878 + $0x1] sm:$0xff] 0.0
          %1880 = vst [vmem:[%s1878 + $0x9] sm:$0xff] 0.0
        $region60: #{tpu_custom_call.1} parent=39 // pred_fallthru
          _
        %v1881 = vld [vmem:[#allocation2] sm:$0xff]
        %v1882 = vld [vmem:[#allocation2 + $0x8] sm:$0xff]
        %v1883 = vld [vmem:[#allocation2 + $0x10] sm:$0xff]
        %v1884 = vld [vmem:[#allocation2 + $0x18] sm:$0xff]
        %v1885 = vld [vmem:[#allocation2 + $0x20] sm:$0xff]
        %v1886 = vld [vmem:[#allocation2 + $0x28] sm:$0xff]
        %v1887 = vld [vmem:[#allocation2 + $0x30] sm:$0xff]
        %v1888 = vld [vmem:[#allocation2 + $0x38] sm:$0xff]
        %v1889 = vld [vmem:[#allocation2 + $0x40] sm:$0xff]
        %v1890 = vld [vmem:[#allocation2 + $0x48] sm:$0xff]
        %v1891 = vld [vmem:[#allocation2 + $0x50] sm:$0xff]
        %v1892 = vld [vmem:[#allocation2 + $0x58] sm:$0xff]
        %v1893 = vld [vmem:[#allocation2 + $0x60] sm:$0xff]
        %v1894 = vld [vmem:[#allocation2 + $0x68] sm:$0xff]
        %v1895 = vld [vmem:[#allocation2 + $0x70] sm:$0xff]
        %v1896 = vld [vmem:[#allocation2 + $0x78] sm:$0xff]
        %v1897 = vld [vmem:[#allocation2 + $0x80] sm:$0xff]
        %v1898 = vld [vmem:[#allocation2 + $0x88] sm:$0xff]
        %v1899 = vld [vmem:[#allocation8] sm:$0xff]
        %v1900 = vld [vmem:[#allocation8 + $0x8] sm:$0xff]
        %v1901 = vld [vmem:[#allocation8 + $0x10] sm:$0xff]
        %v1902 = vld [vmem:[#allocation8 + $0x18] sm:$0xff]
        %v1903 = vld [vmem:[#allocation8 + $0x20] sm:$0xff]
        %v1904 = vld [vmem:[#allocation8 + $0x28] sm:$0xff]
        %v1905 = vld [vmem:[#allocation8 + $0x30] sm:$0xff]
        %v1906 = vld [vmem:[#allocation8 + $0x38] sm:$0xff]
        %v1907 = vld [vmem:[#allocation8 + $0x40] sm:$0xff]
        %v1908 = vld [vmem:[#allocation8 + $0x48] sm:$0xff]
        %v1909 = vld [vmem:[#allocation8 + $0x50] sm:$0xff]
        %v1910 = vld [vmem:[#allocation8 + $0x58] sm:$0xff]
        %v1911 = vld [vmem:[#allocation8 + $0x60] sm:$0xff]
        %v1912 = vld [vmem:[#allocation8 + $0x68] sm:$0xff]
        %v1913 = vld [vmem:[#allocation8 + $0x70] sm:$0xff]
        %v1914 = vld [vmem:[#allocation8 + $0x78] sm:$0xff]
        %v1927 = vrot.slane %v1881, 1
        %v1928 = vrot.slane %v1882, 1
        %v1929 = vsel %vm348, %v1927, %v1928
        %v1930 = vrot.slane %v1883, 1
        %v1931 = vsel %vm348, %v1928, %v1930
        %v1932 = vrot.slane %v1884, 1
        %v1933 = vrot.slane %v1885, 1
        %v1934 = vsel %vm348, %v1932, %v1933
        %v1935 = vrot.slane %v1886, 1
        %v1936 = vsel %vm348, %v1933, %v1935
        %v1937 = vrot.slane %v1887, 1
        %v1938 = vrot.slane %v1888, 1
        %v1939 = vsel %vm348, %v1937, %v1938
        %v1940 = vrot.slane %v1889, 1
        %v1941 = vsel %vm348, %v1938, %v1940
        %v1942 = vrot.slane %v1890, 1
        %v1943 = vrot.slane %v1891, 1
        %v1944 = vsel %vm348, %v1942, %v1943
        %v1945 = vrot.slane %v1892, 1
        %v1946 = vsel %vm348, %v1943, %v1945
        %s1955 = scalar_lea.vmem [#allocation8], 128
        %v1956 = vld [vmem:[%s1955] sm:$0xff]
        %v1957 = vld [vmem:[%s1955 + $0x8] sm:$0xff]
        %v1958 = vld [vmem:[%s1955 + $0x10] sm:$0xff]
        %v1959 = vld [vmem:[%s1955 + $0x18] sm:$0xff]
        %v1960 = vld [vmem:[%s1955 + $0x20] sm:$0xff]
        %v1961 = vld [vmem:[%s1955 + $0x28] sm:$0xff]
        %v1962 = vld [vmem:[%s1955 + $0x30] sm:$0xff]
        %v1963 = vld [vmem:[%s1955 + $0x38] sm:$0xff]
        %v1964 = vld [vmem:[%s1955 + $0x40] sm:$0xff]
        %v1965 = vld [vmem:[%s1955 + $0x48] sm:$0xff]
        %v1966 = vld [vmem:[%s1955 + $0x50] sm:$0xff]
        %v1967 = vld [vmem:[%s1955 + $0x58] sm:$0xff]
        %v1968 = vld [vmem:[%s1955 + $0x60] sm:$0xff]
        %v1969 = vld [vmem:[%s1955 + $0x68] sm:$0xff]
        %v1970 = vld [vmem:[%s1955 + $0x70] sm:$0xff]
        %v1971 = vld [vmem:[%s1955 + $0x78] sm:$0xff]
        %1972 = vmatprep.subr.mxu0 0.0
        %1973 = vmatpush1.msra.mxu0 %v1971
        %1974 = vmatprep.subr.mxu0 0.0
        %1975 = vmatpush1.msra.mxu0 %v1970
        %1976 = vmatprep.subr.mxu0 0.0
        %1977 = vmatpush1.msra.mxu0 %v1969
        %1978 = vmatprep.subr.mxu0 0.0
        %1979 = vmatpush1.msra.mxu0 %v1968
        %1980 = vmatprep.subr.mxu0 0.0
        %1981 = vmatpush1.msra.mxu0 %v1967
        %1982 = vmatprep.subr.mxu0 0.0
        %1983 = vmatpush1.msra.mxu0 %v1966
        %1984 = vmatprep.subr.mxu0 0.0
        %1985 = vmatpush1.msra.mxu0 %v1965
        %1986 = vmatprep.subr.mxu0 0.0
        %1987 = vmatpush1.msra.mxu0 %v1964
        %1988 = vmatprep.subr.mxu0 0.0
        %1989 = vmatpush1.msra.mxu0 %v1963
        %1990 = vmatprep.subr.mxu0 0.0
        %1991 = vmatpush1.msra.mxu0 %v1962
        %1992 = vmatprep.subr.mxu0 0.0
        %1993 = vmatpush1.msra.mxu0 %v1961
        %1994 = vmatprep.subr.mxu0 0.0
        %1995 = vmatpush1.msra.mxu0 %v1960
        %1996 = vmatprep.subr.mxu0 0.0
        %1997 = vmatpush1.msra.mxu0 %v1959
        %1998 = vmatprep.subr.mxu0 0.0
        %1999 = vmatpush1.msra.mxu0 %v1958
        %2000 = vmatprep.subr.mxu0 0.0
        %2001 = vmatpush1.msra.mxu0 %v1957
        %2002 = vmatprep.subr.mxu0 0.0
        %2003 = vmatpush1.msra.mxu0 %v1956
        %2004 = vmatprep.subr.mxu0 0.0
        %2005 = vmatpush2.msra.mxu0 0.0
        %2006 = vmatprep.subr.mxu0 0.0
        %2007 = vmatpush2.msra.mxu0 0.0
        %2008 = vmatprep.subr.mxu0 0.0
        %2009 = vmatpush2.msra.mxu0 0.0
        %2010 = vmatprep.subr.mxu0 0.0
        %2011 = vmatpush2.msra.mxu0 0.0
        %2012 = vmatprep.subr.mxu0 0.0
        %2013 = vmatpush2.msra.mxu0 0.0
        %2014 = vmatprep.subr.mxu0 0.0
        %2015 = vmatpush2.msra.mxu0 0.0
        %2016 = vmatprep.subr.mxu0 0.0
        %2017 = vmatpush2.msra.mxu0 0.0
        %2018 = vmatprep.subr.mxu0 0.0
        %2019 = vmatpush2.msra.mxu0 0.0
        %2020 = vmatprep.subr.mxu0 0.0
        %2021 = vmatpush2.msra.mxu0 0.0
        %2022 = vmatprep.subr.mxu0 0.0
        %2023 = vmatpush2.msra.mxu0 0.0
        %2024 = vmatprep.subr.mxu0 0.0
        %2025 = vmatpush2.msra.mxu0 0.0
        %2026 = vmatprep.subr.mxu0 0.0
        %2027 = vmatpush2.msra.mxu0 0.0
        %2028 = vmatprep.subr.mxu0 0.0
        %2029 = vmatpush2.msra.mxu0 0.0
        %2030 = vmatprep.subr.mxu0 0.0
        %2031 = vmatpush2.msra.mxu0 0.0
        %2032 = vmatprep.subr.mxu0 0.0
        %2033 = vmatpush2.msra.mxu0 0.0
        %2034 = vmatprep.subr.mxu0 0.0
        %2035 = vmatpush2.msra.mxu0 0.0
        %2036 = vmatprep.mubr.f32.mxu0 0.0
        %2037 = vmatmul.mubr.f32.gmra.mxu0 %v1929
        %v2038 = vpop.f32.mrf.mxu0
        %v2039 = vadd.f32 0.0, %v2038
        %v2040 = vpop.f32.mrf.mxu0
        %2041 = vmatprep.mubr.f32.mxu0 0.0
        %2042 = vmatmul.mubr.f32.gmra.mxu0 %v1931
        %v2043 = vpop.f32.mrf.mxu0
        %v2044 = vadd.f32 0.0, %v2043
        %v2045 = vpop.f32.mrf.mxu0
        %2046 = vmatprep.mubr.f32.mxu0 0.0
        %2047 = vmatmul.mubr.f32.gmra.mxu0 %v1934
        %v2048 = vpop.f32.mrf.mxu0
        %v2049 = vadd.f32 0.0, %v2048
        %v2050 = vpop.f32.mrf.mxu0
        %2051 = vmatprep.mubr.f32.mxu0 0.0
        %2052 = vmatmul.mubr.f32.gmra.mxu0 %v1936
        %v2053 = vpop.f32.mrf.mxu0
        %v2054 = vadd.f32 0.0, %v2053
        %v2055 = vpop.f32.mrf.mxu0
        %2056 = vmatprep.mubr.f32.mxu0 0.0
        %2057 = vmatmul.mubr.f32.gmra.mxu0 %v1939
        %v2058 = vpop.f32.mrf.mxu0
        %v2059 = vadd.f32 0.0, %v2058
        %v2060 = vpop.f32.mrf.mxu0
        %2061 = vmatprep.mubr.f32.mxu0 0.0
        %2062 = vmatmul.mubr.f32.gmra.mxu0 %v1941
        %v2063 = vpop.f32.mrf.mxu0
        %v2064 = vadd.f32 0.0, %v2063
        %v2065 = vpop.f32.mrf.mxu0
        %2066 = vmatprep.mubr.f32.mxu0 0.0
        %2067 = vmatmul.mubr.f32.gmra.mxu0 %v1944
        %v2068 = vpop.f32.mrf.mxu0
        %v2069 = vadd.f32 0.0, %v2068
        %v2070 = vpop.f32.mrf.mxu0
        %2071 = vmatprep.mubr.f32.mxu0 0.0
        %2072 = vmatmul.mubr.f32.gmra.mxu0 %v1946
        %v2073 = vpop.f32.mrf.mxu0
        %v2074 = vadd.f32 0.0, %v2073
        %v2075 = vpop.f32.mrf.mxu0
        %2076 = vdwg.mxu0
        %2077 = vmatprep.subr.mxu0 0.0
        %2078 = vmatpush1.msra.mxu0 %v1914
        %2079 = vmatprep.subr.mxu0 0.0
        %2080 = vmatpush1.msra.mxu0 %v1913
        %2081 = vmatprep.subr.mxu0 0.0
        %2082 = vmatpush1.msra.mxu0 %v1912
        %2083 = vmatprep.subr.mxu0 0.0
        %2084 = vmatpush1.msra.mxu0 %v1911
        %2085 = vmatprep.subr.mxu0 0.0
        %2086 = vmatpush1.msra.mxu0 %v1910
        %2087 = vmatprep.subr.mxu0 0.0
        %2088 = vmatpush1.msra.mxu0 %v1909
        %2089 = vmatprep.subr.mxu0 0.0
        %2090 = vmatpush1.msra.mxu0 %v1908
        %2091 = vmatprep.subr.mxu0 0.0
        %2092 = vmatpush1.msra.mxu0 %v1907
        %2093 = vmatprep.subr.mxu0 0.0
        %2094 = vmatpush1.msra.mxu0 %v1906
        %2095 = vmatprep.subr.mxu0 0.0
        %2096 = vmatpush1.msra.mxu0 %v1905
        %2097 = vmatprep.subr.mxu0 0.0
        %2098 = vmatpush1.msra.mxu0 %v1904
        %2099 = vmatprep.subr.mxu0 0.0
        %2100 = vmatpush1.msra.mxu0 %v1903
        %2101 = vmatprep.subr.mxu0 0.0
        %2102 = vmatpush1.msra.mxu0 %v1902
        %2103 = vmatprep.subr.mxu0 0.0
        %2104 = vmatpush1.msra.mxu0 %v1901
        %2105 = vmatprep.subr.mxu0 0.0
        %2106 = vmatpush1.msra.mxu0 %v1900
        %2107 = vmatprep.subr.mxu0 0.0
        %2108 = vmatpush1.msra.mxu0 %v1899
        %2109 = vmatprep.subr.mxu0 0.0
        %2110 = vmatpush2.msra.mxu0 0.0
        %2111 = vmatprep.subr.mxu0 0.0
        %2112 = vmatpush2.msra.mxu0 0.0
        %2113 = vmatprep.subr.mxu0 0.0
        %2114 = vmatpush2.msra.mxu0 0.0
        %2115 = vmatprep.subr.mxu0 0.0
        %2116 = vmatpush2.msra.mxu0 0.0
        %2117 = vmatprep.subr.mxu0 0.0
        %2118 = vmatpush2.msra.mxu0 0.0
        %2119 = vmatprep.subr.mxu0 0.0
        %2120 = vmatpush2.msra.mxu0 0.0
        %2121 = vmatprep.subr.mxu0 0.0
        %2122 = vmatpush2.msra.mxu0 0.0
        %2123 = vmatprep.subr.mxu0 0.0
        %2124 = vmatpush2.msra.mxu0 0.0
        %2125 = vmatprep.subr.mxu0 0.0
        %2126 = vmatpush2.msra.mxu0 0.0
        %2127 = vmatprep.subr.mxu0 0.0
        %2128 = vmatpush2.msra.mxu0 0.0
        %2129 = vmatprep.subr.mxu0 0.0
        %2130 = vmatpush2.msra.mxu0 0.0
        %2131 = vmatprep.subr.mxu0 0.0
        %2132 = vmatpush2.msra.mxu0 0.0
        %2133 = vmatprep.subr.mxu0 0.0
        %2134 = vmatpush2.msra.mxu0 0.0
        %2135 = vmatprep.subr.mxu0 0.0
        %2136 = vmatpush2.msra.mxu0 0.0
        %2137 = vmatprep.subr.mxu0 0.0
        %2138 = vmatpush2.msra.mxu0 0.0
        %2139 = vmatprep.subr.mxu0 0.0
        %2140 = vmatpush2.msra.mxu0 0.0
        %2141 = vmatprep.mubr.f32.mxu0 0.0
        %2142 = vmatmul.mubr.f32.gmra.mxu0 %v1881
        %v2143 = vpop.f32.mrf.mxu0
        %v2144 = vadd.f32 %v2039, %v2143
        %v2145 = vpop.f32.mrf.mxu0
        %2146 = vmatprep.mubr.f32.mxu0 0.0
        %2147 = vmatmul.mubr.f32.gmra.mxu0 %v1882
        %v2148 = vpop.f32.mrf.mxu0
        %v2149 = vadd.f32 %v2044, %v2148
        %v2150 = vpop.f32.mrf.mxu0
        %2151 = vmatprep.mubr.f32.mxu0 0.0
        %2152 = vmatmul.mubr.f32.gmra.mxu0 %v1884
        %v2153 = vpop.f32.mrf.mxu0
        %v2154 = vadd.f32 %v2049, %v2153
        %v2155 = vpop.f32.mrf.mxu0
        %2156 = vmatprep.mubr.f32.mxu0 0.0
        %2157 = vmatmul.mubr.f32.gmra.mxu0 %v1885
        %v2158 = vpop.f32.mrf.mxu0
        %v2159 = vadd.f32 %v2054, %v2158
        %v2160 = vpop.f32.mrf.mxu0
        %2161 = vmatprep.mubr.f32.mxu0 0.0
        %2162 = vmatmul.mubr.f32.gmra.mxu0 %v1887
        %v2163 = vpop.f32.mrf.mxu0
        %v2164 = vadd.f32 %v2059, %v2163
        %v2165 = vpop.f32.mrf.mxu0
        %2166 = vmatprep.mubr.f32.mxu0 0.0
        %2167 = vmatmul.mubr.f32.gmra.mxu0 %v1888
        %v2168 = vpop.f32.mrf.mxu0
        %v2169 = vadd.f32 %v2064, %v2168
        %v2170 = vpop.f32.mrf.mxu0
        %2171 = vmatprep.mubr.f32.mxu0 0.0
        %2172 = vmatmul.mubr.f32.gmra.mxu0 %v1890
        %v2173 = vpop.f32.mrf.mxu0
        %v2174 = vadd.f32 %v2069, %v2173
        %v2175 = vpop.f32.mrf.mxu0
        %2176 = vmatprep.mubr.f32.mxu0 0.0
        %2177 = vmatmul.mubr.f32.gmra.mxu0 %v1891
        %v2178 = vpop.f32.mrf.mxu0
        %v2179 = vadd.f32 %v2074, %v2178
        %v2180 = vpop.f32.mrf.mxu0
        %2181 = vdwg.mxu0
        %v2182 = vrot.slane %v1881, 2
        %v2183 = vrot.slane %v1882, 2
        %v2184 = vsel %vm658, %v2182, %v2183
        %v2185 = vrot.slane %v1883, 2
        %v2186 = vsel %vm658, %v2183, %v2185
        %v2187 = vrot.slane %v1884, 2
        %v2188 = vrot.slane %v1885, 2
        %v2189 = vsel %vm658, %v2187, %v2188
        %v2190 = vrot.slane %v1886, 2
        %v2191 = vsel %vm658, %v2188, %v2190
        %v2192 = vrot.slane %v1887, 2
        %v2193 = vrot.slane %v1888, 2
        %v2194 = vsel %vm658, %v2192, %v2193
        %v2195 = vrot.slane %v1889, 2
        %v2196 = vsel %vm658, %v2193, %v2195
        %v2197 = vrot.slane %v1890, 2
        %v2198 = vrot.slane %v1891, 2
        %v2199 = vsel %vm658, %v2197, %v2198
        %v2200 = vrot.slane %v1892, 2
        %v2201 = vsel %vm658, %v2198, %v2200
        %s2210 = scalar_lea.vmem [#allocation8], 256
        %v2211 = vld [vmem:[%s2210] sm:$0xff]
        %v2212 = vld [vmem:[%s2210 + $0x8] sm:$0xff]
        %v2213 = vld [vmem:[%s2210 + $0x10] sm:$0xff]
        %v2214 = vld [vmem:[%s2210 + $0x18] sm:$0xff]
        %v2215 = vld [vmem:[%s2210 + $0x20] sm:$0xff]
        %v2216 = vld [vmem:[%s2210 + $0x28] sm:$0xff]
        %v2217 = vld [vmem:[%s2210 + $0x30] sm:$0xff]
        %v2218 = vld [vmem:[%s2210 + $0x38] sm:$0xff]
        %v2219 = vld [vmem:[%s2210 + $0x40] sm:$0xff]
        %v2220 = vld [vmem:[%s2210 + $0x48] sm:$0xff]
        %v2221 = vld [vmem:[%s2210 + $0x50] sm:$0xff]
        %v2222 = vld [vmem:[%s2210 + $0x58] sm:$0xff]
        %v2223 = vld [vmem:[%s2210 + $0x60] sm:$0xff]
        %v2224 = vld [vmem:[%s2210 + $0x68] sm:$0xff]
        %v2225 = vld [vmem:[%s2210 + $0x70] sm:$0xff]
        %v2226 = vld [vmem:[%s2210 + $0x78] sm:$0xff]
        %2227 = vmatprep.subr.mxu0 0.0
        %2228 = vmatpush1.msra.mxu0 %v2226
        %2229 = vmatprep.subr.mxu0 0.0
        %2230 = vmatpush1.msra.mxu0 %v2225
        %2231 = vmatprep.subr.mxu0 0.0
        %2232 = vmatpush1.msra.mxu0 %v2224
        %2233 = vmatprep.subr.mxu0 0.0
        %2234 = vmatpush1.msra.mxu0 %v2223
        %2235 = vmatprep.subr.mxu0 0.0
        %2236 = vmatpush1.msra.mxu0 %v2222
        %2237 = vmatprep.subr.mxu0 0.0
        %2238 = vmatpush1.msra.mxu0 %v2221
        %2239 = vmatprep.subr.mxu0 0.0
        %2240 = vmatpush1.msra.mxu0 %v2220
        %2241 = vmatprep.subr.mxu0 0.0
        %2242 = vmatpush1.msra.mxu0 %v2219
        %2243 = vmatprep.subr.mxu0 0.0
        %2244 = vmatpush1.msra.mxu0 %v2218
        %2245 = vmatprep.subr.mxu0 0.0
        %2246 = vmatpush1.msra.mxu0 %v2217
        %2247 = vmatprep.subr.mxu0 0.0
        %2248 = vmatpush1.msra.mxu0 %v2216
        %2249 = vmatprep.subr.mxu0 0.0
        %2250 = vmatpush1.msra.mxu0 %v2215
        %2251 = vmatprep.subr.mxu0 0.0
        %2252 = vmatpush1.msra.mxu0 %v2214
        %2253 = vmatprep.subr.mxu0 0.0
        %2254 = vmatpush1.msra.mxu0 %v2213
        %2255 = vmatprep.subr.mxu0 0.0
        %2256 = vmatpush1.msra.mxu0 %v2212
        %2257 = vmatprep.subr.mxu0 0.0
        %2258 = vmatpush1.msra.mxu0 %v2211
        %2259 = vmatprep.subr.mxu0 0.0
        %2260 = vmatpush2.msra.mxu0 0.0
        %2261 = vmatprep.subr.mxu0 0.0
        %2262 = vmatpush2.msra.mxu0 0.0
        %2263 = vmatprep.subr.mxu0 0.0
        %2264 = vmatpush2.msra.mxu0 0.0
        %2265 = vmatprep.subr.mxu0 0.0
        %2266 = vmatpush2.msra.mxu0 0.0
        %2267 = vmatprep.subr.mxu0 0.0
        %2268 = vmatpush2.msra.mxu0 0.0
        %2269 = vmatprep.subr.mxu0 0.0
        %2270 = vmatpush2.msra.mxu0 0.0
        %2271 = vmatprep.subr.mxu0 0.0
        %2272 = vmatpush2.msra.mxu0 0.0
        %2273 = vmatprep.subr.mxu0 0.0
        %2274 = vmatpush2.msra.mxu0 0.0
        %2275 = vmatprep.subr.mxu0 0.0
        %2276 = vmatpush2.msra.mxu0 0.0
        %2277 = vmatprep.subr.mxu0 0.0
        %2278 = vmatpush2.msra.mxu0 0.0
        %2279 = vmatprep.subr.mxu0 0.0
        %2280 = vmatpush2.msra.mxu0 0.0
        %2281 = vmatprep.subr.mxu0 0.0
        %2282 = vmatpush2.msra.mxu0 0.0
        %2283 = vmatprep.subr.mxu0 0.0
        %2284 = vmatpush2.msra.mxu0 0.0
        %2285 = vmatprep.subr.mxu0 0.0
        %2286 = vmatpush2.msra.mxu0 0.0
        %2287 = vmatprep.subr.mxu0 0.0
        %2288 = vmatpush2.msra.mxu0 0.0
        %2289 = vmatprep.subr.mxu0 0.0
        %2290 = vmatpush2.msra.mxu0 0.0
        %2291 = vmatprep.mubr.f32.mxu0 0.0
        %2292 = vmatmul.mubr.f32.gmra.mxu0 %v2184
        %v2293 = vpop.f32.mrf.mxu0
        %v2294 = vadd.f32 0.0, %v2293
        %v2295 = vpop.f32.mrf.mxu0
        %2296 = vmatprep.mubr.f32.mxu0 0.0
        %2297 = vmatmul.mubr.f32.gmra.mxu0 %v2186
        %v2298 = vpop.f32.mrf.mxu0
        %v2299 = vadd.f32 0.0, %v2298
        %v2300 = vpop.f32.mrf.mxu0
        %2301 = vmatprep.mubr.f32.mxu0 0.0
        %2302 = vmatmul.mubr.f32.gmra.mxu0 %v2189
        %v2303 = vpop.f32.mrf.mxu0
        %v2304 = vadd.f32 0.0, %v2303
        %v2305 = vpop.f32.mrf.mxu0
        %2306 = vmatprep.mubr.f32.mxu0 0.0
        %2307 = vmatmul.mubr.f32.gmra.mxu0 %v2191
        %v2308 = vpop.f32.mrf.mxu0
        %v2309 = vadd.f32 0.0, %v2308
        %v2310 = vpop.f32.mrf.mxu0
        %2311 = vmatprep.mubr.f32.mxu0 0.0
        %2312 = vmatmul.mubr.f32.gmra.mxu0 %v2194
        %v2313 = vpop.f32.mrf.mxu0
        %v2314 = vadd.f32 0.0, %v2313
        %v2315 = vpop.f32.mrf.mxu0
        %2316 = vmatprep.mubr.f32.mxu0 0.0
        %2317 = vmatmul.mubr.f32.gmra.mxu0 %v2196
        %v2318 = vpop.f32.mrf.mxu0
        %v2319 = vadd.f32 0.0, %v2318
        %v2320 = vpop.f32.mrf.mxu0
        %2321 = vmatprep.mubr.f32.mxu0 0.0
        %2322 = vmatmul.mubr.f32.gmra.mxu0 %v2199
        %v2323 = vpop.f32.mrf.mxu0
        %v2324 = vadd.f32 0.0, %v2323
        %v2325 = vpop.f32.mrf.mxu0
        %2326 = vmatprep.mubr.f32.mxu0 0.0
        %2327 = vmatmul.mubr.f32.gmra.mxu0 %v2201
        %v2328 = vpop.f32.mrf.mxu0
        %v2329 = vadd.f32 0.0, %v2328
        %v2330 = vpop.f32.mrf.mxu0
        %2331 = vdwg.mxu0
        %v2332 = vadd.f32 %v2144, %v2294
        %v2333 = vadd.f32 %v2149, %v2299
        %v2334 = vadd.f32 %v2154, %v2304
        %v2335 = vadd.f32 %v2159, %v2309
        %v2336 = vadd.f32 %v2164, %v2314
        %v2337 = vadd.f32 %v2169, %v2319
        %v2338 = vadd.f32 %v2174, %v2324
        %v2339 = vadd.f32 %v2179, %v2329
        %s2340 = scalar_lea.vmem [#allocation8], 384
        %v2341 = vld [vmem:[%s2340] sm:$0xff]
        %v2342 = vld [vmem:[%s2340 + $0x8] sm:$0xff]
        %v2343 = vld [vmem:[%s2340 + $0x10] sm:$0xff]
        %v2344 = vld [vmem:[%s2340 + $0x18] sm:$0xff]
        %v2345 = vld [vmem:[%s2340 + $0x20] sm:$0xff]
        %v2346 = vld [vmem:[%s2340 + $0x28] sm:$0xff]
        %v2347 = vld [vmem:[%s2340 + $0x30] sm:$0xff]
        %v2348 = vld [vmem:[%s2340 + $0x38] sm:$0xff]
        %v2349 = vld [vmem:[%s2340 + $0x40] sm:$0xff]
        %v2350 = vld [vmem:[%s2340 + $0x48] sm:$0xff]
        %v2351 = vld [vmem:[%s2340 + $0x50] sm:$0xff]
        %v2352 = vld [vmem:[%s2340 + $0x58] sm:$0xff]
        %v2353 = vld [vmem:[%s2340 + $0x60] sm:$0xff]
        %v2354 = vld [vmem:[%s2340 + $0x68] sm:$0xff]
        %v2355 = vld [vmem:[%s2340 + $0x70] sm:$0xff]
        %v2356 = vld [vmem:[%s2340 + $0x78] sm:$0xff]
        %2357 = vmatprep.subr.mxu0 0.0
        %2358 = vmatpush1.msra.mxu0 %v2356
        %2359 = vmatprep.subr.mxu0 0.0
        %2360 = vmatpush1.msra.mxu0 %v2355
        %2361 = vmatprep.subr.mxu0 0.0
        %2362 = vmatpush1.msra.mxu0 %v2354
        %2363 = vmatprep.subr.mxu0 0.0
        %2364 = vmatpush1.msra.mxu0 %v2353
        %2365 = vmatprep.subr.mxu0 0.0
        %2366 = vmatpush1.msra.mxu0 %v2352
        %2367 = vmatprep.subr.mxu0 0.0
        %2368 = vmatpush1.msra.mxu0 %v2351
        %2369 = vmatprep.subr.mxu0 0.0
        %2370 = vmatpush1.msra.mxu0 %v2350
        %2371 = vmatprep.subr.mxu0 0.0
        %2372 = vmatpush1.msra.mxu0 %v2349
        %2373 = vmatprep.subr.mxu0 0.0
        %2374 = vmatpush1.msra.mxu0 %v2348
        %2375 = vmatprep.subr.mxu0 0.0
        %2376 = vmatpush1.msra.mxu0 %v2347
        %2377 = vmatprep.subr.mxu0 0.0
        %2378 = vmatpush1.msra.mxu0 %v2346
        %2379 = vmatprep.subr.mxu0 0.0
        %2380 = vmatpush1.msra.mxu0 %v2345
        %2381 = vmatprep.subr.mxu0 0.0
        %2382 = vmatpush1.msra.mxu0 %v2344
        %2383 = vmatprep.subr.mxu0 0.0
        %2384 = vmatpush1.msra.mxu0 %v2343
        %2385 = vmatprep.subr.mxu0 0.0
        %2386 = vmatpush1.msra.mxu0 %v2342
        %2387 = vmatprep.subr.mxu0 0.0
        %2388 = vmatpush1.msra.mxu0 %v2341
        %2389 = vmatprep.subr.mxu0 0.0
        %2390 = vmatpush2.msra.mxu0 0.0
        %2391 = vmatprep.subr.mxu0 0.0
        %2392 = vmatpush2.msra.mxu0 0.0
        %2393 = vmatprep.subr.mxu0 0.0
        %2394 = vmatpush2.msra.mxu0 0.0
        %2395 = vmatprep.subr.mxu0 0.0
        %2396 = vmatpush2.msra.mxu0 0.0
        %2397 = vmatprep.subr.mxu0 0.0
        %2398 = vmatpush2.msra.mxu0 0.0
        %2399 = vmatprep.subr.mxu0 0.0
        %2400 = vmatpush2.msra.mxu0 0.0
        %2401 = vmatprep.subr.mxu0 0.0
        %2402 = vmatpush2.msra.mxu0 0.0
        %2403 = vmatprep.subr.mxu0 0.0
        %2404 = vmatpush2.msra.mxu0 0.0
        %2405 = vmatprep.subr.mxu0 0.0
        %2406 = vmatpush2.msra.mxu0 0.0
        %2407 = vmatprep.subr.mxu0 0.0
        %2408 = vmatpush2.msra.mxu0 0.0
        %2409 = vmatprep.subr.mxu0 0.0
        %2410 = vmatpush2.msra.mxu0 0.0
        %2411 = vmatprep.subr.mxu0 0.0
        %2412 = vmatpush2.msra.mxu0 0.0
        %2413 = vmatprep.subr.mxu0 0.0
        %2414 = vmatpush2.msra.mxu0 0.0
        %2415 = vmatprep.subr.mxu0 0.0
        %2416 = vmatpush2.msra.mxu0 0.0
        %2417 = vmatprep.subr.mxu0 0.0
        %2418 = vmatpush2.msra.mxu0 0.0
        %2419 = vmatprep.subr.mxu0 0.0
        %2420 = vmatpush2.msra.mxu0 0.0
        %2421 = vmatprep.mubr.f32.mxu0 0.0
        %2422 = vmatmul.mubr.f32.gmra.mxu0 %v1884
        %v2423 = vpop.f32.mrf.mxu0
        %v2424 = vadd.f32 0.0, %v2423
        %v2425 = vpop.f32.mrf.mxu0
        %2426 = vmatprep.mubr.f32.mxu0 0.0
        %2427 = vmatmul.mubr.f32.gmra.mxu0 %v1885
        %v2428 = vpop.f32.mrf.mxu0
        %v2429 = vadd.f32 0.0, %v2428
        %v2430 = vpop.f32.mrf.mxu0
        %2431 = vmatprep.mubr.f32.mxu0 0.0
        %2432 = vmatmul.mubr.f32.gmra.mxu0 %v1887
        %v2433 = vpop.f32.mrf.mxu0
        %v2434 = vadd.f32 0.0, %v2433
        %v2435 = vpop.f32.mrf.mxu0
        %2436 = vmatprep.mubr.f32.mxu0 0.0
        %2437 = vmatmul.mubr.f32.gmra.mxu0 %v1888
        %v2438 = vpop.f32.mrf.mxu0
        %v2439 = vadd.f32 0.0, %v2438
        %v2440 = vpop.f32.mrf.mxu0
        %2441 = vmatprep.mubr.f32.mxu0 0.0
        %2442 = vmatmul.mubr.f32.gmra.mxu0 %v1890
        %v2443 = vpop.f32.mrf.mxu0
        %v2444 = vadd.f32 0.0, %v2443
        %v2445 = vpop.f32.mrf.mxu0
        %2446 = vmatprep.mubr.f32.mxu0 0.0
        %2447 = vmatmul.mubr.f32.gmra.mxu0 %v1891
        %v2448 = vpop.f32.mrf.mxu0
        %v2449 = vadd.f32 0.0, %v2448
        %v2450 = vpop.f32.mrf.mxu0
        %2451 = vmatprep.mubr.f32.mxu0 0.0
        %2452 = vmatmul.mubr.f32.gmra.mxu0 %v1893
        %v2453 = vpop.f32.mrf.mxu0
        %v2454 = vadd.f32 0.0, %v2453
        %v2455 = vpop.f32.mrf.mxu0
        %2456 = vmatprep.mubr.f32.mxu0 0.0
        %2457 = vmatmul.mubr.f32.gmra.mxu0 %v1894
        %v2458 = vpop.f32.mrf.mxu0
        %v2459 = vadd.f32 0.0, %v2458
        %v2460 = vpop.f32.mrf.mxu0
        %2461 = vdwg.mxu0
        %v2462 = vadd.f32 %v2332, %v2424
        %v2463 = vadd.f32 %v2333, %v2429
        %v2464 = vadd.f32 %v2334, %v2434
        %v2465 = vadd.f32 %v2335, %v2439
        %v2466 = vadd.f32 %v2336, %v2444
        %v2467 = vadd.f32 %v2337, %v2449
        %v2468 = vadd.f32 %v2338, %v2454
        %v2469 = vadd.f32 %v2339, %v2459
        %v2473 = vrot.slane %v1893, 1
        %v2474 = vrot.slane %v1894, 1
        %v2475 = vsel %vm348, %v2473, %v2474
        %v2476 = vrot.slane %v1895, 1
        %v2477 = vsel %vm348, %v2474, %v2476
        %s2480 = scalar_lea.vmem [#allocation8], 512
        %v2481 = vld [vmem:[%s2480] sm:$0xff]
        %v2482 = vld [vmem:[%s2480 + $0x8] sm:$0xff]
        %v2483 = vld [vmem:[%s2480 + $0x10] sm:$0xff]
        %v2484 = vld [vmem:[%s2480 + $0x18] sm:$0xff]
        %v2485 = vld [vmem:[%s2480 + $0x20] sm:$0xff]
        %v2486 = vld [vmem:[%s2480 + $0x28] sm:$0xff]
        %v2487 = vld [vmem:[%s2480 + $0x30] sm:$0xff]
        %v2488 = vld [vmem:[%s2480 + $0x38] sm:$0xff]
        %v2489 = vld [vmem:[%s2480 + $0x40] sm:$0xff]
        %v2490 = vld [vmem:[%s2480 + $0x48] sm:$0xff]
        %v2491 = vld [vmem:[%s2480 + $0x50] sm:$0xff]
        %v2492 = vld [vmem:[%s2480 + $0x58] sm:$0xff]
        %v2493 = vld [vmem:[%s2480 + $0x60] sm:$0xff]
        %v2494 = vld [vmem:[%s2480 + $0x68] sm:$0xff]
        %v2495 = vld [vmem:[%s2480 + $0x70] sm:$0xff]
        %v2496 = vld [vmem:[%s2480 + $0x78] sm:$0xff]
        %2497 = vmatprep.subr.mxu0 0.0
        %2498 = vmatpush1.msra.mxu0 %v2496
        %2499 = vmatprep.subr.mxu0 0.0
        %2500 = vmatpush1.msra.mxu0 %v2495
        %2501 = vmatprep.subr.mxu0 0.0
        %2502 = vmatpush1.msra.mxu0 %v2494
        %2503 = vmatprep.subr.mxu0 0.0
        %2504 = vmatpush1.msra.mxu0 %v2493
        %2505 = vmatprep.subr.mxu0 0.0
        %2506 = vmatpush1.msra.mxu0 %v2492
        %2507 = vmatprep.subr.mxu0 0.0
        %2508 = vmatpush1.msra.mxu0 %v2491
        %2509 = vmatprep.subr.mxu0 0.0
        %2510 = vmatpush1.msra.mxu0 %v2490
        %2511 = vmatprep.subr.mxu0 0.0
        %2512 = vmatpush1.msra.mxu0 %v2489
        %2513 = vmatprep.subr.mxu0 0.0
        %2514 = vmatpush1.msra.mxu0 %v2488
        %2515 = vmatprep.subr.mxu0 0.0
        %2516 = vmatpush1.msra.mxu0 %v2487
        %2517 = vmatprep.subr.mxu0 0.0
        %2518 = vmatpush1.msra.mxu0 %v2486
        %2519 = vmatprep.subr.mxu0 0.0
        %2520 = vmatpush1.msra.mxu0 %v2485
        %2521 = vmatprep.subr.mxu0 0.0
        %2522 = vmatpush1.msra.mxu0 %v2484
        %2523 = vmatprep.subr.mxu0 0.0
        %2524 = vmatpush1.msra.mxu0 %v2483
        %2525 = vmatprep.subr.mxu0 0.0
        %2526 = vmatpush1.msra.mxu0 %v2482
        %2527 = vmatprep.subr.mxu0 0.0
        %2528 = vmatpush1.msra.mxu0 %v2481
        %2529 = vmatprep.subr.mxu0 0.0
        %2530 = vmatpush2.msra.mxu0 0.0
        %2531 = vmatprep.subr.mxu0 0.0
        %2532 = vmatpush2.msra.mxu0 0.0
        %2533 = vmatprep.subr.mxu0 0.0
        %2534 = vmatpush2.msra.mxu0 0.0
        %2535 = vmatprep.subr.mxu0 0.0
        %2536 = vmatpush2.msra.mxu0 0.0
        %2537 = vmatprep.subr.mxu0 0.0
        %2538 = vmatpush2.msra.mxu0 0.0
        %2539 = vmatprep.subr.mxu0 0.0
        %2540 = vmatpush2.msra.mxu0 0.0
        %2541 = vmatprep.subr.mxu0 0.0
        %2542 = vmatpush2.msra.mxu0 0.0
        %2543 = vmatprep.subr.mxu0 0.0
        %2544 = vmatpush2.msra.mxu0 0.0
        %2545 = vmatprep.subr.mxu0 0.0
        %2546 = vmatpush2.msra.mxu0 0.0
        %2547 = vmatprep.subr.mxu0 0.0
        %2548 = vmatpush2.msra.mxu0 0.0
        %2549 = vmatprep.subr.mxu0 0.0
        %2550 = vmatpush2.msra.mxu0 0.0
        %2551 = vmatprep.subr.mxu0 0.0
        %2552 = vmatpush2.msra.mxu0 0.0
        %2553 = vmatprep.subr.mxu0 0.0
        %2554 = vmatpush2.msra.mxu0 0.0
        %2555 = vmatprep.subr.mxu0 0.0
        %2556 = vmatpush2.msra.mxu0 0.0
        %2557 = vmatprep.subr.mxu0 0.0
        %2558 = vmatpush2.msra.mxu0 0.0
        %2559 = vmatprep.subr.mxu0 0.0
        %2560 = vmatpush2.msra.mxu0 0.0
        %2561 = vmatprep.mubr.f32.mxu0 0.0
        %2562 = vmatmul.mubr.f32.gmra.mxu0 %v1934
        %v2563 = vpop.f32.mrf.mxu0
        %v2564 = vadd.f32 0.0, %v2563
        %v2565 = vpop.f32.mrf.mxu0
        %2566 = vmatprep.mubr.f32.mxu0 0.0
        %2567 = vmatmul.mubr.f32.gmra.mxu0 %v1936
        %v2568 = vpop.f32.mrf.mxu0
        %v2569 = vadd.f32 0.0, %v2568
        %v2570 = vpop.f32.mrf.mxu0
        %2571 = vmatprep.mubr.f32.mxu0 0.0
        %2572 = vmatmul.mubr.f32.gmra.mxu0 %v1939
        %v2573 = vpop.f32.mrf.mxu0
        %v2574 = vadd.f32 0.0, %v2573
        %v2575 = vpop.f32.mrf.mxu0
        %2576 = vmatprep.mubr.f32.mxu0 0.0
        %2577 = vmatmul.mubr.f32.gmra.mxu0 %v1941
        %v2578 = vpop.f32.mrf.mxu0
        %v2579 = vadd.f32 0.0, %v2578
        %v2580 = vpop.f32.mrf.mxu0
        %2581 = vmatprep.mubr.f32.mxu0 0.0
        %2582 = vmatmul.mubr.f32.gmra.mxu0 %v1944
        %v2583 = vpop.f32.mrf.mxu0
        %v2584 = vadd.f32 0.0, %v2583
        %v2585 = vpop.f32.mrf.mxu0
        %2586 = vmatprep.mubr.f32.mxu0 0.0
        %2587 = vmatmul.mubr.f32.gmra.mxu0 %v1946
        %v2588 = vpop.f32.mrf.mxu0
        %v2589 = vadd.f32 0.0, %v2588
        %v2590 = vpop.f32.mrf.mxu0
        %2591 = vmatprep.mubr.f32.mxu0 0.0
        %2592 = vmatmul.mubr.f32.gmra.mxu0 %v2475
        %v2593 = vpop.f32.mrf.mxu0
        %v2594 = vadd.f32 0.0, %v2593
        %v2595 = vpop.f32.mrf.mxu0
        %2596 = vmatprep.mubr.f32.mxu0 0.0
        %2597 = vmatmul.mubr.f32.gmra.mxu0 %v2477
        %v2598 = vpop.f32.mrf.mxu0
        %v2599 = vadd.f32 0.0, %v2598
        %v2600 = vpop.f32.mrf.mxu0
        %2601 = vdwg.mxu0
        %v2602 = vadd.f32 %v2462, %v2564
        %v2603 = vadd.f32 %v2463, %v2569
        %v2604 = vadd.f32 %v2464, %v2574
        %v2605 = vadd.f32 %v2465, %v2579
        %v2606 = vadd.f32 %v2466, %v2584
        %v2607 = vadd.f32 %v2467, %v2589
        %v2608 = vadd.f32 %v2468, %v2594
        %v2609 = vadd.f32 %v2469, %v2599
        %v2610 = vrot.slane %v1893, 2
        %v2611 = vrot.slane %v1894, 2
        %v2612 = vsel %vm658, %v2610, %v2611
        %v2613 = vrot.slane %v1895, 2
        %v2614 = vsel %vm658, %v2611, %v2613
        %s2617 = scalar_lea.vmem [#allocation8], 640
        %v2618 = vld [vmem:[%s2617] sm:$0xff]
        %v2619 = vld [vmem:[%s2617 + $0x8] sm:$0xff]
        %v2620 = vld [vmem:[%s2617 + $0x10] sm:$0xff]
        %v2621 = vld [vmem:[%s2617 + $0x18] sm:$0xff]
        %v2622 = vld [vmem:[%s2617 + $0x20] sm:$0xff]
        %v2623 = vld [vmem:[%s2617 + $0x28] sm:$0xff]
        %v2624 = vld [vmem:[%s2617 + $0x30] sm:$0xff]
        %v2625 = vld [vmem:[%s2617 + $0x38] sm:$0xff]
        %v2626 = vld [vmem:[%s2617 + $0x40] sm:$0xff]
        %v2627 = vld [vmem:[%s2617 + $0x48] sm:$0xff]
        %v2628 = vld [vmem:[%s2617 + $0x50] sm:$0xff]
        %v2629 = vld [vmem:[%s2617 + $0x58] sm:$0xff]
        %v2630 = vld [vmem:[%s2617 + $0x60] sm:$0xff]
        %v2631 = vld [vmem:[%s2617 + $0x68] sm:$0xff]
        %v2632 = vld [vmem:[%s2617 + $0x70] sm:$0xff]
        %v2633 = vld [vmem:[%s2617 + $0x78] sm:$0xff]
        %2634 = vmatprep.subr.mxu0 0.0
        %2635 = vmatpush1.msra.mxu0 %v2633
        %2636 = vmatprep.subr.mxu0 0.0
        %2637 = vmatpush1.msra.mxu0 %v2632
        %2638 = vmatprep.subr.mxu0 0.0
        %2639 = vmatpush1.msra.mxu0 %v2631
        %2640 = vmatprep.subr.mxu0 0.0
        %2641 = vmatpush1.msra.mxu0 %v2630
        %2642 = vmatprep.subr.mxu0 0.0
        %2643 = vmatpush1.msra.mxu0 %v2629
        %2644 = vmatprep.subr.mxu0 0.0
        %2645 = vmatpush1.msra.mxu0 %v2628
        %2646 = vmatprep.subr.mxu0 0.0
        %2647 = vmatpush1.msra.mxu0 %v2627
        %2648 = vmatprep.subr.mxu0 0.0
        %2649 = vmatpush1.msra.mxu0 %v2626
        %2650 = vmatprep.subr.mxu0 0.0
        %2651 = vmatpush1.msra.mxu0 %v2625
        %2652 = vmatprep.subr.mxu0 0.0
        %2653 = vmatpush1.msra.mxu0 %v2624
        %2654 = vmatprep.subr.mxu0 0.0
        %2655 = vmatpush1.msra.mxu0 %v2623
        %2656 = vmatprep.subr.mxu0 0.0
        %2657 = vmatpush1.msra.mxu0 %v2622
        %2658 = vmatprep.subr.mxu0 0.0
        %2659 = vmatpush1.msra.mxu0 %v2621
        %2660 = vmatprep.subr.mxu0 0.0
        %2661 = vmatpush1.msra.mxu0 %v2620
        %2662 = vmatprep.subr.mxu0 0.0
        %2663 = vmatpush1.msra.mxu0 %v2619
        %2664 = vmatprep.subr.mxu0 0.0
        %2665 = vmatpush1.msra.mxu0 %v2618
        %2666 = vmatprep.subr.mxu0 0.0
        %2667 = vmatpush2.msra.mxu0 0.0
        %2668 = vmatprep.subr.mxu0 0.0
        %2669 = vmatpush2.msra.mxu0 0.0
        %2670 = vmatprep.subr.mxu0 0.0
        %2671 = vmatpush2.msra.mxu0 0.0
        %2672 = vmatprep.subr.mxu0 0.0
        %2673 = vmatpush2.msra.mxu0 0.0
        %2674 = vmatprep.subr.mxu0 0.0
        %2675 = vmatpush2.msra.mxu0 0.0
        %2676 = vmatprep.subr.mxu0 0.0
        %2677 = vmatpush2.msra.mxu0 0.0
        %2678 = vmatprep.subr.mxu0 0.0
        %2679 = vmatpush2.msra.mxu0 0.0
        %2680 = vmatprep.subr.mxu0 0.0
        %2681 = vmatpush2.msra.mxu0 0.0
        %2682 = vmatprep.subr.mxu0 0.0
        %2683 = vmatpush2.msra.mxu0 0.0
        %2684 = vmatprep.subr.mxu0 0.0
        %2685 = vmatpush2.msra.mxu0 0.0
        %2686 = vmatprep.subr.mxu0 0.0
        %2687 = vmatpush2.msra.mxu0 0.0
        %2688 = vmatprep.subr.mxu0 0.0
        %2689 = vmatpush2.msra.mxu0 0.0
        %2690 = vmatprep.subr.mxu0 0.0
        %2691 = vmatpush2.msra.mxu0 0.0
        %2692 = vmatprep.subr.mxu0 0.0
        %2693 = vmatpush2.msra.mxu0 0.0
        %2694 = vmatprep.subr.mxu0 0.0
        %2695 = vmatpush2.msra.mxu0 0.0
        %2696 = vmatprep.subr.mxu0 0.0
        %2697 = vmatpush2.msra.mxu0 0.0
        %2698 = vmatprep.mubr.f32.mxu0 0.0
        %2699 = vmatmul.mubr.f32.gmra.mxu0 %v2189
        %v2700 = vpop.f32.mrf.mxu0
        %v2701 = vadd.f32 0.0, %v2700
        %v2702 = vpop.f32.mrf.mxu0
        %2703 = vmatprep.mubr.f32.mxu0 0.0
        %2704 = vmatmul.mubr.f32.gmra.mxu0 %v2191
        %v2705 = vpop.f32.mrf.mxu0
        %v2706 = vadd.f32 0.0, %v2705
        %v2707 = vpop.f32.mrf.mxu0
        %2708 = vmatprep.mubr.f32.mxu0 0.0
        %2709 = vmatmul.mubr.f32.gmra.mxu0 %v2194
        %v2710 = vpop.f32.mrf.mxu0
        %v2711 = vadd.f32 0.0, %v2710
        %v2712 = vpop.f32.mrf.mxu0
        %2713 = vmatprep.mubr.f32.mxu0 0.0
        %2714 = vmatmul.mubr.f32.gmra.mxu0 %v2196
        %v2715 = vpop.f32.mrf.mxu0
        %v2716 = vadd.f32 0.0, %v2715
        %v2717 = vpop.f32.mrf.mxu0
        %2718 = vmatprep.mubr.f32.mxu0 0.0
        %2719 = vmatmul.mubr.f32.gmra.mxu0 %v2199
        %v2720 = vpop.f32.mrf.mxu0
        %v2721 = vadd.f32 0.0, %v2720
        %v2722 = vpop.f32.mrf.mxu0
        %2723 = vmatprep.mubr.f32.mxu0 0.0
        %2724 = vmatmul.mubr.f32.gmra.mxu0 %v2201
        %v2725 = vpop.f32.mrf.mxu0
        %v2726 = vadd.f32 0.0, %v2725
        %v2727 = vpop.f32.mrf.mxu0
        %2728 = vmatprep.mubr.f32.mxu0 0.0
        %2729 = vmatmul.mubr.f32.gmra.mxu0 %v2612
        %v2730 = vpop.f32.mrf.mxu0
        %v2731 = vadd.f32 0.0, %v2730
        %v2732 = vpop.f32.mrf.mxu0
        %2733 = vmatprep.mubr.f32.mxu0 0.0
        %2734 = vmatmul.mubr.f32.gmra.mxu0 %v2614
        %v2735 = vpop.f32.mrf.mxu0
        %v2736 = vadd.f32 0.0, %v2735
        %v2737 = vpop.f32.mrf.mxu0
        %2738 = vdwg.mxu0
        %v2739 = vadd.f32 %v2602, %v2701
        %v2740 = vadd.f32 %v2603, %v2706
        %v2741 = vadd.f32 %v2604, %v2711
        %v2742 = vadd.f32 %v2605, %v2716
        %v2743 = vadd.f32 %v2606, %v2721
        %v2744 = vadd.f32 %v2607, %v2726
        %v2745 = vadd.f32 %v2608, %v2731
        %v2746 = vadd.f32 %v2609, %v2736
        %s2747 = scalar_lea.vmem [#allocation8], 768
        %v2748 = vld [vmem:[%s2747] sm:$0xff]
        %v2749 = vld [vmem:[%s2747 + $0x8] sm:$0xff]
        %v2750 = vld [vmem:[%s2747 + $0x10] sm:$0xff]
        %v2751 = vld [vmem:[%s2747 + $0x18] sm:$0xff]
        %v2752 = vld [vmem:[%s2747 + $0x20] sm:$0xff]
        %v2753 = vld [vmem:[%s2747 + $0x28] sm:$0xff]
        %v2754 = vld [vmem:[%s2747 + $0x30] sm:$0xff]
        %v2755 = vld [vmem:[%s2747 + $0x38] sm:$0xff]
        %v2756 = vld [vmem:[%s2747 + $0x40] sm:$0xff]
        %v2757 = vld [vmem:[%s2747 + $0x48] sm:$0xff]
        %v2758 = vld [vmem:[%s2747 + $0x50] sm:$0xff]
        %v2759 = vld [vmem:[%s2747 + $0x58] sm:$0xff]
        %v2760 = vld [vmem:[%s2747 + $0x60] sm:$0xff]
        %v2761 = vld [vmem:[%s2747 + $0x68] sm:$0xff]
        %v2762 = vld [vmem:[%s2747 + $0x70] sm:$0xff]
        %v2763 = vld [vmem:[%s2747 + $0x78] sm:$0xff]
        %2764 = vmatprep.subr.mxu0 0.0
        %2765 = vmatpush1.msra.mxu0 %v2763
        %2766 = vmatprep.subr.mxu0 0.0
        %2767 = vmatpush1.msra.mxu0 %v2762
        %2768 = vmatprep.subr.mxu0 0.0
        %2769 = vmatpush1.msra.mxu0 %v2761
        %2770 = vmatprep.subr.mxu0 0.0
        %2771 = vmatpush1.msra.mxu0 %v2760
        %2772 = vmatprep.subr.mxu0 0.0
        %2773 = vmatpush1.msra.mxu0 %v2759
        %2774 = vmatprep.subr.mxu0 0.0
        %2775 = vmatpush1.msra.mxu0 %v2758
        %2776 = vmatprep.subr.mxu0 0.0
        %2777 = vmatpush1.msra.mxu0 %v2757
        %2778 = vmatprep.subr.mxu0 0.0
        %2779 = vmatpush1.msra.mxu0 %v2756
        %2780 = vmatprep.subr.mxu0 0.0
        %2781 = vmatpush1.msra.mxu0 %v2755
        %2782 = vmatprep.subr.mxu0 0.0
        %2783 = vmatpush1.msra.mxu0 %v2754
        %2784 = vmatprep.subr.mxu0 0.0
        %2785 = vmatpush1.msra.mxu0 %v2753
        %2786 = vmatprep.subr.mxu0 0.0
        %2787 = vmatpush1.msra.mxu0 %v2752
        %2788 = vmatprep.subr.mxu0 0.0
        %2789 = vmatpush1.msra.mxu0 %v2751
        %2790 = vmatprep.subr.mxu0 0.0
        %2791 = vmatpush1.msra.mxu0 %v2750
        %2792 = vmatprep.subr.mxu0 0.0
        %2793 = vmatpush1.msra.mxu0 %v2749
        %2794 = vmatprep.subr.mxu0 0.0
        %2795 = vmatpush1.msra.mxu0 %v2748
        %2796 = vmatprep.subr.mxu0 0.0
        %2797 = vmatpush2.msra.mxu0 0.0
        %2798 = vmatprep.subr.mxu0 0.0
        %2799 = vmatpush2.msra.mxu0 0.0
        %2800 = vmatprep.subr.mxu0 0.0
        %2801 = vmatpush2.msra.mxu0 0.0
        %2802 = vmatprep.subr.mxu0 0.0
        %2803 = vmatpush2.msra.mxu0 0.0
        %2804 = vmatprep.subr.mxu0 0.0
        %2805 = vmatpush2.msra.mxu0 0.0
        %2806 = vmatprep.subr.mxu0 0.0
        %2807 = vmatpush2.msra.mxu0 0.0
        %2808 = vmatprep.subr.mxu0 0.0
        %2809 = vmatpush2.msra.mxu0 0.0
        %2810 = vmatprep.subr.mxu0 0.0
        %2811 = vmatpush2.msra.mxu0 0.0
        %2812 = vmatprep.subr.mxu0 0.0
        %2813 = vmatpush2.msra.mxu0 0.0
        %2814 = vmatprep.subr.mxu0 0.0
        %2815 = vmatpush2.msra.mxu0 0.0
        %2816 = vmatprep.subr.mxu0 0.0
        %2817 = vmatpush2.msra.mxu0 0.0
        %2818 = vmatprep.subr.mxu0 0.0
        %2819 = vmatpush2.msra.mxu0 0.0
        %2820 = vmatprep.subr.mxu0 0.0
        %2821 = vmatpush2.msra.mxu0 0.0
        %2822 = vmatprep.subr.mxu0 0.0
        %2823 = vmatpush2.msra.mxu0 0.0
        %2824 = vmatprep.subr.mxu0 0.0
        %2825 = vmatpush2.msra.mxu0 0.0
        %2826 = vmatprep.subr.mxu0 0.0
        %2827 = vmatpush2.msra.mxu0 0.0
        %2828 = vmatprep.mubr.f32.mxu0 0.0
        %2829 = vmatmul.mubr.f32.gmra.mxu0 %v1887
        %v2830 = vpop.f32.mrf.mxu0
        %v2831 = vadd.f32 0.0, %v2830
        %v2832 = vpop.f32.mrf.mxu0
        %2833 = vmatprep.mubr.f32.mxu0 0.0
        %2834 = vmatmul.mubr.f32.gmra.mxu0 %v1888
        %v2835 = vpop.f32.mrf.mxu0
        %v2836 = vadd.f32 0.0, %v2835
        %v2837 = vpop.f32.mrf.mxu0
        %2838 = vmatprep.mubr.f32.mxu0 0.0
        %2839 = vmatmul.mubr.f32.gmra.mxu0 %v1890
        %v2840 = vpop.f32.mrf.mxu0
        %v2841 = vadd.f32 0.0, %v2840
        %v2842 = vpop.f32.mrf.mxu0
        %2843 = vmatprep.mubr.f32.mxu0 0.0
        %2844 = vmatmul.mubr.f32.gmra.mxu0 %v1891
        %v2845 = vpop.f32.mrf.mxu0
        %v2846 = vadd.f32 0.0, %v2845
        %v2847 = vpop.f32.mrf.mxu0
        %2848 = vmatprep.mubr.f32.mxu0 0.0
        %2849 = vmatmul.mubr.f32.gmra.mxu0 %v1893
        %v2850 = vpop.f32.mrf.mxu0
        %v2851 = vadd.f32 0.0, %v2850
        %v2852 = vpop.f32.mrf.mxu0
        %2853 = vmatprep.mubr.f32.mxu0 0.0
        %2854 = vmatmul.mubr.f32.gmra.mxu0 %v1894
        %v2855 = vpop.f32.mrf.mxu0
        %v2856 = vadd.f32 0.0, %v2855
        %v2857 = vpop.f32.mrf.mxu0
        %2858 = vmatprep.mubr.f32.mxu0 0.0
        %2859 = vmatmul.mubr.f32.gmra.mxu0 %v1896
        %v2860 = vpop.f32.mrf.mxu0
        %v2861 = vadd.f32 0.0, %v2860
        %v2862 = vpop.f32.mrf.mxu0
        %2863 = vmatprep.mubr.f32.mxu0 0.0
        %2864 = vmatmul.mubr.f32.gmra.mxu0 %v1897
        %v2865 = vpop.f32.mrf.mxu0
        %v2866 = vadd.f32 0.0, %v2865
        %v2867 = vpop.f32.mrf.mxu0
        %2868 = vdwg.mxu0
        %v2869 = vadd.f32 %v2739, %v2831
        %v2870 = vadd.f32 %v2740, %v2836
        %v2871 = vadd.f32 %v2741, %v2841
        %v2872 = vadd.f32 %v2742, %v2846
        %v2873 = vadd.f32 %v2743, %v2851
        %v2874 = vadd.f32 %v2744, %v2856
        %v2875 = vadd.f32 %v2745, %v2861
        %v2876 = vadd.f32 %v2746, %v2866
        %v2880 = vrot.slane %v1896, 1
        %v2881 = vrot.slane %v1897, 1
        %v2882 = vsel %vm348, %v2880, %v2881
        %v2883 = vrot.slane %v1898, 1
        %v2884 = vsel %vm348, %v2881, %v2883
        %s2887 = scalar_lea.vmem [#allocation8], 896
        %v2888 = vld [vmem:[%s2887] sm:$0xff]
        %v2889 = vld [vmem:[%s2887 + $0x8] sm:$0xff]
        %v2890 = vld [vmem:[%s2887 + $0x10] sm:$0xff]
        %v2891 = vld [vmem:[%s2887 + $0x18] sm:$0xff]
        %v2892 = vld [vmem:[%s2887 + $0x20] sm:$0xff]
        %v2893 = vld [vmem:[%s2887 + $0x28] sm:$0xff]
        %v2894 = vld [vmem:[%s2887 + $0x30] sm:$0xff]
        %v2895 = vld [vmem:[%s2887 + $0x38] sm:$0xff]
        %v2896 = vld [vmem:[%s2887 + $0x40] sm:$0xff]
        %v2897 = vld [vmem:[%s2887 + $0x48] sm:$0xff]
        %v2898 = vld [vmem:[%s2887 + $0x50] sm:$0xff]
        %v2899 = vld [vmem:[%s2887 + $0x58] sm:$0xff]
        %v2900 = vld [vmem:[%s2887 + $0x60] sm:$0xff]
        %v2901 = vld [vmem:[%s2887 + $0x68] sm:$0xff]
        %v2902 = vld [vmem:[%s2887 + $0x70] sm:$0xff]
        %v2903 = vld [vmem:[%s2887 + $0x78] sm:$0xff]
        %2904 = vmatprep.subr.mxu0 0.0
        %2905 = vmatpush1.msra.mxu0 %v2903
        %2906 = vmatprep.subr.mxu0 0.0
        %2907 = vmatpush1.msra.mxu0 %v2902
        %2908 = vmatprep.subr.mxu0 0.0
        %2909 = vmatpush1.msra.mxu0 %v2901
        %2910 = vmatprep.subr.mxu0 0.0
        %2911 = vmatpush1.msra.mxu0 %v2900
        %2912 = vmatprep.subr.mxu0 0.0
        %2913 = vmatpush1.msra.mxu0 %v2899
        %2914 = vmatprep.subr.mxu0 0.0
        %2915 = vmatpush1.msra.mxu0 %v2898
        %2916 = vmatprep.subr.mxu0 0.0
        %2917 = vmatpush1.msra.mxu0 %v2897
        %2918 = vmatprep.subr.mxu0 0.0
        %2919 = vmatpush1.msra.mxu0 %v2896
        %2920 = vmatprep.subr.mxu0 0.0
        %2921 = vmatpush1.msra.mxu0 %v2895
        %2922 = vmatprep.subr.mxu0 0.0
        %2923 = vmatpush1.msra.mxu0 %v2894
        %2924 = vmatprep.subr.mxu0 0.0
        %2925 = vmatpush1.msra.mxu0 %v2893
        %2926 = vmatprep.subr.mxu0 0.0
        %2927 = vmatpush1.msra.mxu0 %v2892
        %2928 = vmatprep.subr.mxu0 0.0
        %2929 = vmatpush1.msra.mxu0 %v2891
        %2930 = vmatprep.subr.mxu0 0.0
        %2931 = vmatpush1.msra.mxu0 %v2890
        %2932 = vmatprep.subr.mxu0 0.0
        %2933 = vmatpush1.msra.mxu0 %v2889
        %2934 = vmatprep.subr.mxu0 0.0
        %2935 = vmatpush1.msra.mxu0 %v2888
        %2936 = vmatprep.subr.mxu0 0.0
        %2937 = vmatpush2.msra.mxu0 0.0
        %2938 = vmatprep.subr.mxu0 0.0
        %2939 = vmatpush2.msra.mxu0 0.0
        %2940 = vmatprep.subr.mxu0 0.0
        %2941 = vmatpush2.msra.mxu0 0.0
        %2942 = vmatprep.subr.mxu0 0.0
        %2943 = vmatpush2.msra.mxu0 0.0
        %2944 = vmatprep.subr.mxu0 0.0
        %2945 = vmatpush2.msra.mxu0 0.0
        %2946 = vmatprep.subr.mxu0 0.0
        %2947 = vmatpush2.msra.mxu0 0.0
        %2948 = vmatprep.subr.mxu0 0.0
        %2949 = vmatpush2.msra.mxu0 0.0
        %2950 = vmatprep.subr.mxu0 0.0
        %2951 = vmatpush2.msra.mxu0 0.0
        %2952 = vmatprep.subr.mxu0 0.0
        %2953 = vmatpush2.msra.mxu0 0.0
        %2954 = vmatprep.subr.mxu0 0.0
        %2955 = vmatpush2.msra.mxu0 0.0
        %2956 = vmatprep.subr.mxu0 0.0
        %2957 = vmatpush2.msra.mxu0 0.0
        %2958 = vmatprep.subr.mxu0 0.0
        %2959 = vmatpush2.msra.mxu0 0.0
        %2960 = vmatprep.subr.mxu0 0.0
        %2961 = vmatpush2.msra.mxu0 0.0
        %2962 = vmatprep.subr.mxu0 0.0
        %2963 = vmatpush2.msra.mxu0 0.0
        %2964 = vmatprep.subr.mxu0 0.0
        %2965 = vmatpush2.msra.mxu0 0.0
        %2966 = vmatprep.subr.mxu0 0.0
        %2967 = vmatpush2.msra.mxu0 0.0
        %2968 = vmatprep.mubr.f32.mxu0 0.0
        %2969 = vmatmul.mubr.f32.gmra.mxu0 %v1939
        %v2970 = vpop.f32.mrf.mxu0
        %v2971 = vadd.f32 0.0, %v2970
        %v2972 = vpop.f32.mrf.mxu0
        %2973 = vmatprep.mubr.f32.mxu0 0.0
        %2974 = vmatmul.mubr.f32.gmra.mxu0 %v1941
        %v2975 = vpop.f32.mrf.mxu0
        %v2976 = vadd.f32 0.0, %v2975
        %v2977 = vpop.f32.mrf.mxu0
        %2978 = vmatprep.mubr.f32.mxu0 0.0
        %2979 = vmatmul.mubr.f32.gmra.mxu0 %v1944
        %v2980 = vpop.f32.mrf.mxu0
        %v2981 = vadd.f32 0.0, %v2980
        %v2982 = vpop.f32.mrf.mxu0
        %2983 = vmatprep.mubr.f32.mxu0 0.0
        %2984 = vmatmul.mubr.f32.gmra.mxu0 %v1946
        %v2985 = vpop.f32.mrf.mxu0
        %v2986 = vadd.f32 0.0, %v2985
        %v2987 = vpop.f32.mrf.mxu0
        %2988 = vmatprep.mubr.f32.mxu0 0.0
        %2989 = vmatmul.mubr.f32.gmra.mxu0 %v2475
        %v2990 = vpop.f32.mrf.mxu0
        %v2991 = vadd.f32 0.0, %v2990
        %v2992 = vpop.f32.mrf.mxu0
        %2993 = vmatprep.mubr.f32.mxu0 0.0
        %2994 = vmatmul.mubr.f32.gmra.mxu0 %v2477
        %v2995 = vpop.f32.mrf.mxu0
        %v2996 = vadd.f32 0.0, %v2995
        %v2997 = vpop.f32.mrf.mxu0
        %2998 = vmatprep.mubr.f32.mxu0 0.0
        %2999 = vmatmul.mubr.f32.gmra.mxu0 %v2882
        %v3000 = vpop.f32.mrf.mxu0
        %v3001 = vadd.f32 0.0, %v3000
        %v3002 = vpop.f32.mrf.mxu0
        %3003 = vmatprep.mubr.f32.mxu0 0.0
        %3004 = vmatmul.mubr.f32.gmra.mxu0 %v2884
        %v3005 = vpop.f32.mrf.mxu0
        %v3006 = vadd.f32 0.0, %v3005
        %v3007 = vpop.f32.mrf.mxu0
        %3008 = vdwg.mxu0
        %v3009 = vadd.f32 %v2869, %v2971
        %v3010 = vadd.f32 %v2870, %v2976
        %v3011 = vadd.f32 %v2871, %v2981
        %v3012 = vadd.f32 %v2872, %v2986
        %v3013 = vadd.f32 %v2873, %v2991
        %v3014 = vadd.f32 %v2874, %v2996
        %v3015 = vadd.f32 %v2875, %v3001
        %v3016 = vadd.f32 %v2876, %v3006
        %v3017 = vrot.slane %v1896, 2
        %v3018 = vrot.slane %v1897, 2
        %v3019 = vsel %vm658, %v3017, %v3018
        %v3020 = vrot.slane %v1898, 2
        %v3021 = vsel %vm658, %v3018, %v3020
        %s3024 = scalar_lea.vmem [#allocation8], 1024
        %v3025 = vld [vmem:[%s3024] sm:$0xff]
        %v3026 = vld [vmem:[%s3024 + $0x8] sm:$0xff]
        %v3027 = vld [vmem:[%s3024 + $0x10] sm:$0xff]
        %v3028 = vld [vmem:[%s3024 + $0x18] sm:$0xff]
        %v3029 = vld [vmem:[%s3024 + $0x20] sm:$0xff]
        %v3030 = vld [vmem:[%s3024 + $0x28] sm:$0xff]
        %v3031 = vld [vmem:[%s3024 + $0x30] sm:$0xff]
        %v3032 = vld [vmem:[%s3024 + $0x38] sm:$0xff]
        %v3033 = vld [vmem:[%s3024 + $0x40] sm:$0xff]
        %v3034 = vld [vmem:[%s3024 + $0x48] sm:$0xff]
        %v3035 = vld [vmem:[%s3024 + $0x50] sm:$0xff]
        %v3036 = vld [vmem:[%s3024 + $0x58] sm:$0xff]
        %v3037 = vld [vmem:[%s3024 + $0x60] sm:$0xff]
        %v3038 = vld [vmem:[%s3024 + $0x68] sm:$0xff]
        %v3039 = vld [vmem:[%s3024 + $0x70] sm:$0xff]
        %v3040 = vld [vmem:[%s3024 + $0x78] sm:$0xff]
        %3041 = vmatprep.subr.mxu0 0.0
        %3042 = vmatpush1.msra.mxu0 %v3040
        %3043 = vmatprep.subr.mxu0 0.0
        %3044 = vmatpush1.msra.mxu0 %v3039
        %3045 = vmatprep.subr.mxu0 0.0
        %3046 = vmatpush1.msra.mxu0 %v3038
        %3047 = vmatprep.subr.mxu0 0.0
        %3048 = vmatpush1.msra.mxu0 %v3037
        %3049 = vmatprep.subr.mxu0 0.0
        %3050 = vmatpush1.msra.mxu0 %v3036
        %3051 = vmatprep.subr.mxu0 0.0
        %3052 = vmatpush1.msra.mxu0 %v3035
        %3053 = vmatprep.subr.mxu0 0.0
        %3054 = vmatpush1.msra.mxu0 %v3034
        %3055 = vmatprep.subr.mxu0 0.0
        %3056 = vmatpush1.msra.mxu0 %v3033
        %3057 = vmatprep.subr.mxu0 0.0
        %3058 = vmatpush1.msra.mxu0 %v3032
        %3059 = vmatprep.subr.mxu0 0.0
        %3060 = vmatpush1.msra.mxu0 %v3031
        %3061 = vmatprep.subr.mxu0 0.0
        %3062 = vmatpush1.msra.mxu0 %v3030
        %3063 = vmatprep.subr.mxu0 0.0
        %3064 = vmatpush1.msra.mxu0 %v3029
        %3065 = vmatprep.subr.mxu0 0.0
        %3066 = vmatpush1.msra.mxu0 %v3028
        %3067 = vmatprep.subr.mxu0 0.0
        %3068 = vmatpush1.msra.mxu0 %v3027
        %3069 = vmatprep.subr.mxu0 0.0
        %3070 = vmatpush1.msra.mxu0 %v3026
        %3071 = vmatprep.subr.mxu0 0.0
        %3072 = vmatpush1.msra.mxu0 %v3025
        %3073 = vmatprep.subr.mxu0 0.0
        %3074 = vmatpush2.msra.mxu0 0.0
        %3075 = vmatprep.subr.mxu0 0.0
        %3076 = vmatpush2.msra.mxu0 0.0
        %3077 = vmatprep.subr.mxu0 0.0
        %3078 = vmatpush2.msra.mxu0 0.0
        %3079 = vmatprep.subr.mxu0 0.0
        %3080 = vmatpush2.msra.mxu0 0.0
        %3081 = vmatprep.subr.mxu0 0.0
        %3082 = vmatpush2.msra.mxu0 0.0
        %3083 = vmatprep.subr.mxu0 0.0
        %3084 = vmatpush2.msra.mxu0 0.0
        %3085 = vmatprep.subr.mxu0 0.0
        %3086 = vmatpush2.msra.mxu0 0.0
        %3087 = vmatprep.subr.mxu0 0.0
        %3088 = vmatpush2.msra.mxu0 0.0
        %3089 = vmatprep.subr.mxu0 0.0
        %3090 = vmatpush2.msra.mxu0 0.0
        %3091 = vmatprep.subr.mxu0 0.0
        %3092 = vmatpush2.msra.mxu0 0.0
        %3093 = vmatprep.subr.mxu0 0.0
        %3094 = vmatpush2.msra.mxu0 0.0
        %3095 = vmatprep.subr.mxu0 0.0
        %3096 = vmatpush2.msra.mxu0 0.0
        %3097 = vmatprep.subr.mxu0 0.0
        %3098 = vmatpush2.msra.mxu0 0.0
        %3099 = vmatprep.subr.mxu0 0.0
        %3100 = vmatpush2.msra.mxu0 0.0
        %3101 = vmatprep.subr.mxu0 0.0
        %3102 = vmatpush2.msra.mxu0 0.0
        %3103 = vmatprep.subr.mxu0 0.0
        %3104 = vmatpush2.msra.mxu0 0.0
        %3105 = vmatprep.mubr.f32.mxu0 0.0
        %3106 = vmatmul.mubr.f32.gmra.mxu0 %v2194
        %v3107 = vpop.f32.mrf.mxu0
        %v3108 = vadd.f32 0.0, %v3107
        %v3109 = vpop.f32.mrf.mxu0
        %3110 = vmatprep.mubr.f32.mxu0 0.0
        %3111 = vmatmul.mubr.f32.gmra.mxu0 %v2196
        %v3112 = vpop.f32.mrf.mxu0
        %v3113 = vadd.f32 0.0, %v3112
        %v3114 = vpop.f32.mrf.mxu0
        %3115 = vmatprep.mubr.f32.mxu0 0.0
        %3116 = vmatmul.mubr.f32.gmra.mxu0 %v2199
        %v3117 = vpop.f32.mrf.mxu0
        %v3118 = vadd.f32 0.0, %v3117
        %v3119 = vpop.f32.mrf.mxu0
        %3120 = vmatprep.mubr.f32.mxu0 0.0
        %3121 = vmatmul.mubr.f32.gmra.mxu0 %v2201
        %v3122 = vpop.f32.mrf.mxu0
        %v3123 = vadd.f32 0.0, %v3122
        %v3124 = vpop.f32.mrf.mxu0
        %3125 = vmatprep.mubr.f32.mxu0 0.0
        %3126 = vmatmul.mubr.f32.gmra.mxu0 %v2612
        %v3127 = vpop.f32.mrf.mxu0
        %v3128 = vadd.f32 0.0, %v3127
        %v3129 = vpop.f32.mrf.mxu0
        %3130 = vmatprep.mubr.f32.mxu0 0.0
        %3131 = vmatmul.mubr.f32.gmra.mxu0 %v2614
        %v3132 = vpop.f32.mrf.mxu0
        %v3133 = vadd.f32 0.0, %v3132
        %v3134 = vpop.f32.mrf.mxu0
        %3135 = vmatprep.mubr.f32.mxu0 0.0
        %3136 = vmatmul.mubr.f32.gmra.mxu0 %v3019
        %v3137 = vpop.f32.mrf.mxu0
        %v3138 = vadd.f32 0.0, %v3137
        %v3139 = vpop.f32.mrf.mxu0
        %3140 = vmatprep.mubr.f32.mxu0 0.0
        %3141 = vmatmul.mubr.f32.gmra.mxu0 %v3021
        %v3142 = vpop.f32.mrf.mxu0
        %v3143 = vadd.f32 0.0, %v3142
        %v3144 = vpop.f32.mrf.mxu0
        %3145 = vdwg.mxu0
        %v3146 = vadd.f32 %v3009, %v3108
        %v3147 = vadd.f32 %v3010, %v3113
        %v3148 = vadd.f32 %v3011, %v3118
        %v3149 = vadd.f32 %v3012, %v3123
        %v3150 = vadd.f32 %v3013, %v3128
        %v3151 = vadd.f32 %v3014, %v3133
        %v3152 = vadd.f32 %v3015, %v3138
        %v3153 = vadd.f32 %v3016, %v3143
        %v3154 = vld [vmem:[%s4] sm:$0x1]
        %v3156 = vlaneseq
        %v3157 = vshrl.u32 %v3156, 7
        %v3158 = vsub.s32 0, %v3157
        %v3159 = vrot.slane %v3154, %v3158
        %v3161 = vadd.f32 %v3146, %v3159
        %v3162 = vadd.f32 %v3147, %v3159
        %v3163 = vadd.f32 %v3148, %v3159
        %v3164 = vadd.f32 %v3149, %v3159
        %v3165 = vadd.f32 %v3150, %v3159
        %v3166 = vadd.f32 %v3151, %v3159
        %v3167 = vadd.f32 %v3152, %v3159
        %v3168 = vadd.f32 %v3153, %v3159
        %v3169 = vadd.f32 %v3161, %v361
        %v3170 = vadd.f32 %v3162, %v363
        %v3171 = vadd.f32 %v3163, %v366
        %v3172 = vadd.f32 %v3164, %v368
        %v3173 = vadd.f32 %v3165, %v371
        %v3174 = vadd.f32 %v3166, %v373
        %v3175 = vadd.f32 %v3167, %v376
        %v3176 = vadd.f32 %v3168, %v378
        %v3177 = vmax.f32 %v3169, 0.0
        %v3178 = vmax.f32 %v3170, 0.0
        %v3179 = vmax.f32 %v3171, 0.0
        %v3180 = vmax.f32 %v3172, 0.0
        %v3181 = vmax.f32 %v3173, 0.0
        %v3182 = vmax.f32 %v3174, 0.0
        %v3183 = vmax.f32 %v3175, 0.0
        %v3184 = vmax.f32 %v3176, 0.0
        %3185 = vst [vmem:[%s285] sm:$0xff] %v3177
        %3186 = vst [vmem:[%s285 + $0x8] sm:$0xff] %v3178
        %3187 = vst [vmem:[%s285 + $0x10] sm:$0xff] %v3179
        %3188 = vst [vmem:[%s285 + $0x18] sm:$0xff] %v3180
        %3189 = vst [vmem:[%s285 + $0x20] sm:$0xff] %v3181
        %3190 = vst [vmem:[%s285 + $0x28] sm:$0xff] %v3182
        %3191 = vst [vmem:[%s285 + $0x30] sm:$0xff] %v3183
        %3192 = vst [vmem:[%s285 + $0x38] sm:$0xff] %v3184
        %s3193 = sand.u32 %s155, 1
        %s3194 = scalar_lea.sflag [#allocation5], %s3193
        %s3195 = sand.u32 %s155, 1
        %s3196 = smul.addr %s3195, 64
        %s3197 = scalar_lea.vmem [#allocation9], %s3196
        // Predicated region
        $region61: #{tpu_custom_call.1} parent=39 // pred_check
          %p3198 = pneg %p165
        $region62: #{tpu_custom_call.1} parent=39 // pred_check_branch
          %3200 = sbr.rel (%p3198) target = $region64
        $region63: #{tpu_custom_call.1} parent=39 // pred_region
          %s3201 = smul.u32 4, %s28
          %s3203 = ssub.s32 1024, 1024
          %3204 = vsyncadd %s3194, %s3203
          %s3205 = smul.addr %s3201, 2
          %s3206 = smul.addr %s27, 32
          %s3207 = sadd.s32 %s3205, %s3206
          %s3208 = smul.addr %s3207, 128
          %s3209 = scalar_lea.hbm %s5, %s3208
          %s3210 = sshll.u32 %s3197, 4
          %s3211 = int_to_ptr.vmem [resolvable:$true] %s3210
          %3216 = dma.vmem_to_hbm [thread:$0]  %s3211, 1024, %s3209, %s3194, 128, 128, 8
        $region64: #{tpu_custom_call.1} parent=39 // pred_fallthru
          _
      $region40: #{tpu_custom_call.1} parent=5 // pred_fallthru
        _
      %p3217 = scmp.le.s32.totalorder 2, %s18
      // Predicated region
      $region65: #{tpu_custom_call.1} parent=5 // pred_check
        %p3218 = pneg %p3217
      $region66: #{tpu_custom_call.1} parent=5 // pred_check_branch
        %3220 = sbr.rel (%p3218) target = $region68
      $region67: #{tpu_custom_call.1} parent=5 // pred_region
        %s3221 = ssub.s32 %s18, 2
        // Predicated region
        $region69: #{tpu_custom_call.1} parent=67 // pred_check
          %p3222 = pneg %p171
        $region70: #{tpu_custom_call.1} parent=67 // pred_check_branch
          %3224 = sbr.rel (%p3222) target = $region72
        $region71: #{tpu_custom_call.1} parent=67 // pred_region
          %s3225 = sand.u32 %s156, 1
          %s3226 = scalar_lea.sflag [#allocation5], %s3225
          %s3227 = sand.u32 %s156, 1
          %s3228 = smul.addr %s3227, 64
          %s3229 = scalar_lea.vmem [#allocation9], %s3228
          %3230 = dma.done %s3226, 1024
        $region72: #{tpu_custom_call.1} parent=67 // pred_fallthru
          _
      $region68: #{tpu_custom_call.1} parent=5 // pred_fallthru
        _
    $region6: #{tpu_custom_call.1} parent=1 // loop_footer
      %s22 = sadd.s32 1, %s18
    $region7: #{tpu_custom_call.1} parent=1 // loop_footer_branch
      %17 = sbr.rel target = $region3
    $region8: #{tpu_custom_call.1} parent=1 // loop_exit
      _
    %3231 = vsyncpa [#allocation4], 1
    %s3232 = scalar_lea.sflag [#allocation4], 1
    %3233 = vsyncpa %s3232, 1
    %3234 = vsyncpa [#allocation7], 1
    %3235 = vsyncpa [#allocation5], 1
    %s3236 = scalar_lea.sflag [#allocation5], 1
    %3237 = vsyncpa %s3236, 1

</llo_original>
